<compile_context>
chip_gen: v7x
topology: tpu7x:2x2x1
jax: 0.10.0
libtpu: 0.0.40
codegen_flags: <defaults>
</compile_context>

<pallas_src>
import jax
import jax.numpy as jnp
from jax.experimental import pallas as pl
from jax.experimental.pallas import tpu as pltpu


def _downconv_kernel(x_ref, w_ref, b_ref, o_ref):
    # x_ref: (IC, T_OH, 2*W)  one batch image, T_OH output rows (2 input rows each,
    #                         packed on the lane axis as [kh=0 row | kh=1 row])
    # w_ref: (2, 2, OC, IC)   w_ref[kh, kw, oc, ic] == torch_weight[oc, ic, kh, kw]
    # b_ref: (OC, 1)          float32
    # o_ref: (OC, T_OH, OW)   NCHW output tile (OW on the lane axis)
    _, t_oh, w2 = x_ref.shape
    w_in = w2 // 2
    ow = o_ref.shape[2]
    cdtype = x_ref.dtype

    # Constant 0/1 selection matrices: s_kw[w, ow] = 1 iff w == 2*ow + kw, so
    # (x_row @ s_kw)[ic, ow] == x_row[ic, 2*ow + kw]  (MXU-based lane de-interleave).
    rows = jax.lax.broadcasted_iota(jnp.int32, (w_in, ow), 0)
    cols = jax.lax.broadcasted_iota(jnp.int32, (w_in, ow), 1)
    s_even = (rows == 2 * cols).astype(cdtype)
    s_odd = (rows == 2 * cols + 1).astype(cdtype)

    w00 = w_ref[0, 0]   # (OC, IC)   tap (kh=0, kw=0)
    w01 = w_ref[0, 1]
    w10 = w_ref[1, 0]
    w11 = w_ref[1, 1]
    bias = b_ref[...]   # (OC, 1), broadcasts over the lane (OW) axis

    # Static (fully unrolled) loop over this tile's output rows: all indexing is static.
    for j in range(t_oh):
        xrow = x_ref[:, j, :]           # (IC, 2*W)
        x_top = xrow[:, :w_in]          # input row 2*oh     (kh = 0)
        x_bot = xrow[:, w_in:]          # input row 2*oh + 1 (kh = 1)

        # De-interleave even/odd input columns -> (IC, OW) patch slabs per (kh, kw).
        p00 = jnp.dot(x_top, s_even, preferred_element_type=cdtype)
        p01 = jnp.dot(x_top, s_odd, preferred_element_type=cdtype)
        p10 = jnp.dot(x_bot, s_even, preferred_element_type=cdtype)
        p11 = jnp.dot(x_bot, s_odd, preferred_element_type=cdtype)

        # Channel mixing on the MXU, accumulated in f32.
        acc = jnp.dot(w00, p00, preferred_element_type=jnp.float32)
        acc = acc + jnp.dot(w01, p01, preferred_element_type=jnp.float32)
        acc = acc + jnp.dot(w10, p10, preferred_element_type=jnp.float32)
        acc = acc + jnp.dot(w11, p11, preferred_element_type=jnp.float32)

        o_ref[:, j, :] = (acc + bias).astype(o_ref.dtype)


def _pick_tile_rows(ic, oc, w_in, ow, oh, itemsize, vmem_budget_bytes=8 * 1024 * 1024):
    """Output rows per grid step: biggest tile that keeps the double-buffered
    input+output blocks within a conservative (v7x-safe) VMEM budget, capped to keep
    the static unroll / compile time sane."""
    per_row = 2 * (ic * 2 * w_in + oc * ow) * itemsize   # 2x for double buffering
    t = max(1, vmem_budget_bytes // max(per_row, 1))
    t = int(min(t, oh, 16))
    if t >= 8:
        t = (t // 8) * 8   # keep the sublane dim a multiple of 8 when possible
    return max(t, 1)


def down_conv(x_nchw, weight, bias, *, tile_oh=None):
    """Equivalent of nn.Conv2d(IC, OC, kernel_size=2, stride=2)(x), NCHW in / NCHW out.

    x_nchw : (N, IC, H, W)    float32 or bfloat16
    weight : (OC, IC, 2, 2)   (PyTorch layout)
    bias   : (OC,)
    returns: (N, OC, H//2, W//2) in x_nchw.dtype
    """
    n, ic, h, w_in = x_nchw.shape
    oc = weight.shape[0]
    assert weight.shape == (oc, ic, 2, 2), weight.shape
    # TODO(synk): odd H/W would need a crop to match PyTorch's floor behavior; even-only here.
    assert h % 2 == 0 and w_in % 2 == 0, "H and W must be even for a 2x2 stride-2 conv"
    oh, ow = h // 2, w_in // 2

    cdtype = x_nchw.dtype
    out_dtype = x_nchw.dtype

    if tile_oh is None:
        tile_oh = _pick_tile_rows(ic, oc, w_in, ow, oh, x_nchw.dtype.itemsize)
    tile_oh = int(min(tile_oh, oh))

    # Free view / tiny reorders — no HBM round trip of the activation.
    x_rows = x_nchw.reshape(n, ic, oh, 2 * w_in)              # row pair on the lane axis
    w4 = jnp.transpose(weight, (2, 3, 0, 1)).astype(cdtype)   # (2, 2, OC, IC), tiny
    b2 = bias.astype(jnp.float32).reshape(oc, 1)

    grid = (n, pl.cdiv(oh, tile_oh))

    cost = pl.CostEstimate(
        flops=int(2 * n * oh * ow * oc * ic * 4),
        transcendentals=0,
        bytes_accessed=int(
            x_nchw.size * x_nchw.dtype.itemsize
            + w4.size * w4.dtype.itemsize
            + b2.size * 4
            + n * oc * oh * ow * jnp.dtype(out_dtype).itemsize
        ),
    )

    out = pl.pallas_call(
        _downconv_kernel,
        out_shape=jax.ShapeDtypeStruct((n, oc, oh, ow), out_dtype),
        grid_spec=pltpu.PrefetchScalarGridSpec(
            num_scalar_prefetch=0,
            grid=grid,
            in_specs=[
                # (batch squeezed, all channels, tile_oh output rows, both input rows on lanes)
                pl.BlockSpec((None, ic, tile_oh, 2 * w_in), lambda b, t: (b, 0, t, 0)),
                pl.BlockSpec((2, 2, oc, ic), lambda b, t: (0, 0, 0, 0)),
                pl.BlockSpec((oc, 1), lambda b, t: (0, 0)),
            ],
            out_specs=pl.BlockSpec((None, oc, tile_oh, ow), lambda b, t: (b, 0, t, 0)),
        ),
        compiler_params=pltpu.CompilerParams(
            dimension_semantics=("parallel", "parallel"),
        ),
        cost_estimate=cost,
    )(x_rows, w4, b2)

    return out  # already NCHW — no post-transpose


if __name__ == "__main__":
    key = jax.random.PRNGKey(0)
    k_x, k_w, k_b = jax.random.split(key, 3)

    N, IC, H, W = 2, 4, 16, 16
    OC = 8

    x = jax.random.normal(k_x, (N, IC, H, W), dtype=jnp.float32)
    fan_in = IC * 2 * 2
    weight = jax.random.normal(k_w, (OC, IC, 2, 2), dtype=jnp.float32) / jnp.sqrt(fan_in)
    bias = jax.random.normal(k_b, (OC,), dtype=jnp.float32) * 0.1

    out = down_conv(x, weight, bias)
    out = jax.block_until_ready(out)
    assert out.shape == (N, OC, H // 2, W // 2), out.shape

    # Reference: XLA conv with the same semantics as torch Conv2d (NCHW, stride 2, no pad).
    ref = jax.lax.conv_general_dilated(
        x, weight, window_strides=(2, 2), padding="VALID",
        dimension_numbers=("NCHW", "OIHW", "NCHW"),
    ) + bias.reshape(1, OC, 1, 1)
    err = float(jnp.max(jnp.abs(out - ref)))
    assert jnp.allclose(out, ref, atol=5e-5, rtol=5e-5), err

    # bf16 activation path (halves HBM bytes in this bandwidth-bound op); f32 accumulation.
    out_bf16 = down_conv(x.astype(jnp.bfloat16), weight, bias)
    out_bf16 = jax.block_until_ready(out_bf16)
    assert out_bf16.shape == (N, OC, H // 2, W // 2)
    assert jnp.allclose(out_bf16.astype(jnp.float32), ref, atol=0.25, rtol=0.25)

    print("KERNEL_OK")
</pallas_src>

<mosaic_0001>
module attributes {stable_mosaic.version = 11 : i64} {
  func.func @_downconv_kernel(%arg0: i32, %arg1: i32, %arg2: memref<1x4x8x32xf32, #tpu.memory_space<vmem>>, %arg3: memref<2x2x8x4xf32, #tpu.memory_space<vmem>>, %arg4: memref<8x1xf32, #tpu.memory_space<vmem>>, %arg5: memref<1x8x8x8xf32, #tpu.memory_space<vmem>>) attributes {dimension_semantics = [#tpu.dimension_semantics<parallel>, #tpu.dimension_semantics<parallel>], iteration_bounds = array<i64: 2, 1>, scalar_prefetch = 0 : i64, scratch_operands = 0 : i64, tpu.core_type = #tpu.core_type<tc>, window_params = [{transform_indices = @transform_0, window_bounds = array<i64: 1, 4, 8, 32>}, {pipeline_mode = #tpu.pipeline_mode<synchronous>, transform_indices = @transform_1, window_bounds = array<i64: 2, 2, 8, 4>}, {pipeline_mode = #tpu.pipeline_mode<synchronous>, transform_indices = @transform_2, window_bounds = array<i64: 8, 1>}, {transform_indices = @transform_3, window_bounds = array<i64: 1, 8, 8, 8>}]} {
    %0 = tpu.iota {dimensions = array<i32: 0>} : vector<16x8xi32>
    %1 = tpu.iota {dimensions = array<i32: 1>} : vector<16x8xi32>
    %c2_i32 = arith.constant 2 : i32
    %2 = vector.broadcast %c2_i32 : i32 to vector<16x8xi32>
    %3 = arith.muli %2, %1 : vector<16x8xi32>
    %4 = arith.cmpi eq, %0, %3 : vector<16x8xi32>
    %5 = arith.extui %4 : vector<16x8xi1> to vector<16x8xi32>
    %6 = arith.sitofp %5 : vector<16x8xi32> to vector<16x8xf32>
    %c2_i32_0 = arith.constant 2 : i32
    %7 = vector.broadcast %c2_i32_0 : i32 to vector<16x8xi32>
    %8 = arith.muli %7, %1 : vector<16x8xi32>
    %c1_i32 = arith.constant 1 : i32
    %9 = vector.broadcast %c1_i32 : i32 to vector<16x8xi32>
    %10 = arith.addi %8, %9 : vector<16x8xi32>
    %11 = arith.cmpi eq, %0, %10 : vector<16x8xi32>
    %12 = arith.extui %11 : vector<16x8xi1> to vector<16x8xi32>
    %13 = arith.sitofp %12 : vector<16x8xi32> to vector<16x8xf32>
    %c0 = arith.constant 0 : index
    %c0_1 = arith.constant 0 : index
    %c0_2 = arith.constant 0 : index
    %c0_3 = arith.constant 0 : index
    %14 = vector.load %arg3[%c0, %c0_1, %c0_2, %c0_3] : memref<2x2x8x4xf32, #tpu.memory_space<vmem>>, vector<1x1x8x4xf32>
    %15 = vector.shape_cast %14 : vector<1x1x8x4xf32> to vector<8x4xf32>
    %c0_4 = arith.constant 0 : index
    %c1 = arith.constant 1 : index
    %c0_5 = arith.constant 0 : index
    %c0_6 = arith.constant 0 : index
    %16 = vector.load %arg3[%c0_4, %c1, %c0_5, %c0_6] : memref<2x2x8x4xf32, #tpu.memory_space<vmem>>, vector<1x1x8x4xf32>
    %17 = vector.shape_cast %16 : vector<1x1x8x4xf32> to vector<8x4xf32>
    %c1_7 = arith.constant 1 : index
    %c0_8 = arith.constant 0 : index
    %c0_9 = arith.constant 0 : index
    %c0_10 = arith.constant 0 : index
    %18 = vector.load %arg3[%c1_7, %c0_8, %c0_9, %c0_10] : memref<2x2x8x4xf32, #tpu.memory_space<vmem>>, vector<1x1x8x4xf32>
    %19 = vector.shape_cast %18 : vector<1x1x8x4xf32> to vector<8x4xf32>
    %c1_11 = arith.constant 1 : index
    %c1_12 = arith.constant 1 : index
    %c0_13 = arith.constant 0 : index
    %c0_14 = arith.constant 0 : index
    %20 = vector.load %arg3[%c1_11, %c1_12, %c0_13, %c0_14] : memref<2x2x8x4xf32, #tpu.memory_space<vmem>>, vector<1x1x8x4xf32>
    %21 = vector.shape_cast %20 : vector<1x1x8x4xf32> to vector<8x4xf32>
    %c0_15 = arith.constant 0 : index
    %c0_16 = arith.constant 0 : index
    %22 = vector.load %arg4[%c0_15, %c0_16] : memref<8x1xf32, #tpu.memory_space<vmem>>, vector<8x1xf32>
    %c0_17 = arith.constant 0 : index
    %c0_18 = arith.constant 0 : index
    %c0_19 = arith.constant 0 : index
    %c0_20 = arith.constant 0 : index
    %23 = vector.load %arg2[%c0_17, %c0_18, %c0_19, %c0_20] : memref<1x4x8x32xf32, #tpu.memory_space<vmem>>, vector<1x4x1x32xf32>
    %24 = vector.shape_cast %23 : vector<1x4x1x32xf32> to vector<4x32xf32>
    %25 = vector.extract_strided_slice %24 {offsets = [0, 0], sizes = [4, 16], strides = [1, 1]} : vector<4x32xf32> to vector<4x16xf32>
    %26 = vector.extract_strided_slice %24 {offsets = [0, 16], sizes = [4, 16], strides = [1, 1]} : vector<4x32xf32> to vector<4x16xf32>
    %cst = arith.constant dense<0.000000e+00> : vector<4x8xf32>
    %27 = tpu.matmul %25, %6, %cst {dimension_numbers = #tpu.dot_dimension_numbers<[1], [0], [0], [1], [0, 0, 1, 1], [], []>} : vector<4x16xf32>, vector<16x8xf32>, vector<4x8xf32> -> vector<4x8xf32>
    %cst_21 = arith.constant dense<0.000000e+00> : vector<4x8xf32>
    %28 = tpu.matmul %25, %13, %cst_21 {dimension_numbers = #tpu.dot_dimension_numbers<[1], [0], [0], [1], [0, 0, 1, 1], [], []>} : vector<4x16xf32>, vector<16x8xf32>, vector<4x8xf32> -> vector<4x8xf32>
    %cst_22 = arith.constant dense<0.000000e+00> : vector<4x8xf32>
    %29 = tpu.matmul %26, %6, %cst_22 {dimension_numbers = #tpu.dot_dimension_numbers<[1], [0], [0], [1], [0, 0, 1, 1], [], []>} : vector<4x16xf32>, vector<16x8xf32>, vector<4x8xf32> -> vector<4x8xf32>
    %cst_23 = arith.constant dense<0.000000e+00> : vector<4x8xf32>
    %30 = tpu.matmul %26, %13, %cst_23 {dimension_numbers = #tpu.dot_dimension_numbers<[1], [0], [0], [1], [0, 0, 1, 1], [], []>} : vector<4x16xf32>, vector<16x8xf32>, vector<4x8xf32> -> vector<4x8xf32>
    %cst_24 = arith.constant dense<0.000000e+00> : vector<8x8xf32>
    %31 = tpu.matmul %15, %27, %cst_24 {dimension_numbers = #tpu.dot_dimension_numbers<[1], [0], [0], [1], [0, 0, 1, 1], [], []>} : vector<8x4xf32>, vector<4x8xf32>, vector<8x8xf32> -> vector<8x8xf32>
    %cst_25 = arith.constant dense<0.000000e+00> : vector<8x8xf32>
    %32 = tpu.matmul %17, %28, %cst_25 {dimension_numbers = #tpu.dot_dimension_numbers<[1], [0], [0], [1], [0, 0, 1, 1], [], []>} : vector<8x4xf32>, vector<4x8xf32>, vector<8x8xf32> -> vector<8x8xf32>
    %33 = arith.addf %31, %32 : vector<8x8xf32>
    %cst_26 = arith.constant dense<0.000000e+00> : vector<8x8xf32>
    %34 = tpu.matmul %19, %29, %cst_26 {dimension_numbers = #tpu.dot_dimension_numbers<[1], [0], [0], [1], [0, 0, 1, 1], [], []>} : vector<8x4xf32>, vector<4x8xf32>, vector<8x8xf32> -> vector<8x8xf32>
    %35 = arith.addf %33, %34 : vector<8x8xf32>
    %cst_27 = arith.constant dense<0.000000e+00> : vector<8x8xf32>
    %36 = tpu.matmul %21, %30, %cst_27 {dimension_numbers = #tpu.dot_dimension_numbers<[1], [0], [0], [1], [0, 0, 1, 1], [], []>} : vector<8x4xf32>, vector<4x8xf32>, vector<8x8xf32> -> vector<8x8xf32>
    %37 = arith.addf %35, %36 : vector<8x8xf32>
    %38 = vector.broadcast %22 : vector<8x1xf32> to vector<8x8xf32>
    %39 = arith.addf %37, %38 : vector<8x8xf32>
    %c0_28 = arith.constant 0 : index
    %c0_29 = arith.constant 0 : index
    %c0_30 = arith.constant 0 : index
    %c0_31 = arith.constant 0 : index
    %40 = vector.load %arg5[%c0_28, %c0_29, %c0_30, %c0_31] : memref<1x8x8x8xf32, #tpu.memory_space<vmem>>, vector<1x8x1x8xf32>
    %41 = vector.shape_cast %40 : vector<1x8x1x8xf32> to vector<8x8xf32>
    %42 = vector.shape_cast %39 : vector<8x8xf32> to vector<1x8x1x8xf32>
    tpu.vector_store %arg5[%c0_28, %c0_29, %c0_30, %c0_31], %42 {strides = array<i32>} : memref<1x8x8x8xf32, #tpu.memory_space<vmem>>, vector<1x8x1x8xf32>,
    %c0_32 = arith.constant 0 : index
    %c0_33 = arith.constant 0 : index
    %c1_34 = arith.constant 1 : index
    %c0_35 = arith.constant 0 : index
    %43 = vector.load %arg2[%c0_32, %c0_33, %c1_34, %c0_35] : memref<1x4x8x32xf32, #tpu.memory_space<vmem>>, vector<1x4x1x32xf32>
    %44 = vector.shape_cast %43 : vector<1x4x1x32xf32> to vector<4x32xf32>
    %45 = vector.extract_strided_slice %44 {offsets = [0, 0], sizes = [4, 16], strides = [1, 1]} : vector<4x32xf32> to vector<4x16xf32>
    %46 = vector.extract_strided_slice %44 {offsets = [0, 16], sizes = [4, 16], strides = [1, 1]} : vector<4x32xf32> to vector<4x16xf32>
    %cst_36 = arith.constant dense<0.000000e+00> : vector<4x8xf32>
    %47 = tpu.matmul %45, %6, %cst_36 {dimension_numbers = #tpu.dot_dimension_numbers<[1], [0], [0], [1], [0, 0, 1, 1], [], []>} : vector<4x16xf32>, vector<16x8xf32>, vector<4x8xf32> -> vector<4x8xf32>
    %cst_37 = arith.constant dense<0.000000e+00> : vector<4x8xf32>
    %48 = tpu.matmul %45, %13, %cst_37 {dimension_numbers = #tpu.dot_dimension_numbers<[1], [0], [0], [1], [0, 0, 1, 1], [], []>} : vector<4x16xf32>, vector<16x8xf32>, vector<4x8xf32> -> vector<4x8xf32>
    %cst_38 = arith.constant dense<0.000000e+00> : vector<4x8xf32>
    %49 = tpu.matmul %46, %6, %cst_38 {dimension_numbers = #tpu.dot_dimension_numbers<[1], [0], [0], [1], [0, 0, 1, 1], [], []>} : vector<4x16xf32>, vector<16x8xf32>, vector<4x8xf32> -> vector<4x8xf32>
    %cst_39 = arith.constant dense<0.000000e+00> : vector<4x8xf32>
    %50 = tpu.matmul %46, %13, %cst_39 {dimension_numbers = #tpu.dot_dimension_numbers<[1], [0], [0], [1], [0, 0, 1, 1], [], []>} : vector<4x16xf32>, vector<16x8xf32>, vector<4x8xf32> -> vector<4x8xf32>
    %cst_40 = arith.constant dense<0.000000e+00> : vector<8x8xf32>
    %51 = tpu.matmul %15, %47, %cst_40 {dimension_numbers = #tpu.dot_dimension_numbers<[1], [0], [0], [1], [0, 0, 1, 1], [], []>} : vector<8x4xf32>, vector<4x8xf32>, vector<8x8xf32> -> vector<8x8xf32>
    %cst_41 = arith.constant dense<0.000000e+00> : vector<8x8xf32>
    %52 = tpu.matmul %17, %48, %cst_41 {dimension_numbers = #tpu.dot_dimension_numbers<[1], [0], [0], [1], [0, 0, 1, 1], [], []>} : vector<8x4xf32>, vector<4x8xf32>, vector<8x8xf32> -> vector<8x8xf32>
    %53 = arith.addf %51, %52 : vector<8x8xf32>
    %cst_42 = arith.constant dense<0.000000e+00> : vector<8x8xf32>
    %54 = tpu.matmul %19, %49, %cst_42 {dimension_numbers = #tpu.dot_dimension_numbers<[1], [0], [0], [1], [0, 0, 1, 1], [], []>} : vector<8x4xf32>, vector<4x8xf32>, vector<8x8xf32> -> vector<8x8xf32>
    %55 = arith.addf %53, %54 : vector<8x8xf32>
    %cst_43 = arith.constant dense<0.000000e+00> : vector<8x8xf32>
    %56 = tpu.matmul %21, %50, %cst_43 {dimension_numbers = #tpu.dot_dimension_numbers<[1], [0], [0], [1], [0, 0, 1, 1], [], []>} : vector<8x4xf32>, vector<4x8xf32>, vector<8x8xf32> -> vector<8x8xf32>
    %57 = arith.addf %55, %56 : vector<8x8xf32>
    %58 = vector.broadcast %22 : vector<8x1xf32> to vector<8x8xf32>
    %59 = arith.addf %57, %58 : vector<8x8xf32>
    %c0_44 = arith.constant 0 : index
    %c0_45 = arith.constant 0 : index
    %c1_46 = arith.constant 1 : index
    %c0_47 = arith.constant 0 : index
    %60 = vector.load %arg5[%c0_44, %c0_45, %c1_46, %c0_47] : memref<1x8x8x8xf32, #tpu.memory_space<vmem>>, vector<1x8x1x8xf32>
    %61 = vector.shape_cast %60 : vector<1x8x1x8xf32> to vector<8x8xf32>
    %62 = vector.shape_cast %59 : vector<8x8xf32> to vector<1x8x1x8xf32>
    tpu.vector_store %arg5[%c0_44, %c0_45, %c1_46, %c0_47], %62 {strides = array<i32>} : memref<1x8x8x8xf32, #tpu.memory_space<vmem>>, vector<1x8x1x8xf32>,
    %c0_48 = arith.constant 0 : index
    %c0_49 = arith.constant 0 : index
    %c2 = arith.constant 2 : index
    %c0_50 = arith.constant 0 : index
    %63 = vector.load %arg2[%c0_48, %c0_49, %c2, %c0_50] : memref<1x4x8x32xf32, #tpu.memory_space<vmem>>, vector<1x4x1x32xf32>
    %64 = vector.shape_cast %63 : vector<1x4x1x32xf32> to vector<4x32xf32>
    %65 = vector.extract_strided_slice %64 {offsets = [0, 0], sizes = [4, 16], strides = [1, 1]} : vector<4x32xf32> to vector<4x16xf32>
    %66 = vector.extract_strided_slice %64 {offsets = [0, 16], sizes = [4, 16], strides = [1, 1]} : vector<4x32xf32> to vector<4x16xf32>
    %cst_51 = arith.constant dense<0.000000e+00> : vector<4x8xf32>
    %67 = tpu.matmul %65, %6, %cst_51 {dimension_numbers = #tpu.dot_dimension_numbers<[1], [0], [0], [1], [0, 0, 1, 1], [], []>} : vector<4x16xf32>, vector<16x8xf32>, vector<4x8xf32> -> vector<4x8xf32>
    %cst_52 = arith.constant dense<0.000000e+00> : vector<4x8xf32>
    %68 = tpu.matmul %65, %13, %cst_52 {dimension_numbers = #tpu.dot_dimension_numbers<[1], [0], [0], [1], [0, 0, 1, 1], [], []>} : vector<4x16xf32>, vector<16x8xf32>, vector<4x8xf32> -> vector<4x8xf32>
    %cst_53 = arith.constant dense<0.000000e+00> : vector<4x8xf32>
    %69 = tpu.matmul %66, %6, %cst_53 {dimension_numbers = #tpu.dot_dimension_numbers<[1], [0], [0], [1], [0, 0, 1, 1], [], []>} : vector<4x16xf32>, vector<16x8xf32>, vector<4x8xf32> -> vector<4x8xf32>
    %cst_54 = arith.constant dense<0.000000e+00> : vector<4x8xf32>
    %70 = tpu.matmul %66, %13, %cst_54 {dimension_numbers = #tpu.dot_dimension_numbers<[1], [0], [0], [1], [0, 0, 1, 1], [], []>} : vector<4x16xf32>, vector<16x8xf32>, vector<4x8xf32> -> vector<4x8xf32>
    %cst_55 = arith.constant dense<0.000000e+00> : vector<8x8xf32>
    %71 = tpu.matmul %15, %67, %cst_55 {dimension_numbers = #tpu.dot_dimension_numbers<[1], [0], [0], [1], [0, 0, 1, 1], [], []>} : vector<8x4xf32>, vector<4x8xf32>, vector<8x8xf32> -> vector<8x8xf32>
    %cst_56 = arith.constant dense<0.000000e+00> : vector<8x8xf32>
    %72 = tpu.matmul %17, %68, %cst_56 {dimension_numbers = #tpu.dot_dimension_numbers<[1], [0], [0], [1], [0, 0, 1, 1], [], []>} : vector<8x4xf32>, vector<4x8xf32>, vector<8x8xf32> -> vector<8x8xf32>
    %73 = arith.addf %71, %72 : vector<8x8xf32>
    %cst_57 = arith.constant dense<0.000000e+00> : vector<8x8xf32>
    %74 = tpu.matmul %19, %69, %cst_57 {dimension_numbers = #tpu.dot_dimension_numbers<[1], [0], [0], [1], [0, 0, 1, 1], [], []>} : vector<8x4xf32>, vector<4x8xf32>, vector<8x8xf32> -> vector<8x8xf32>
    %75 = arith.addf %73, %74 : vector<8x8xf32>
    %cst_58 = arith.constant dense<0.000000e+00> : vector<8x8xf32>
    %76 = tpu.matmul %21, %70, %cst_58 {dimension_numbers = #tpu.dot_dimension_numbers<[1], [0], [0], [1], [0, 0, 1, 1], [], []>} : vector<8x4xf32>, vector<4x8xf32>, vector<8x8xf32> -> vector<8x8xf32>
    %77 = arith.addf %75, %76 : vector<8x8xf32>
    %78 = vector.broadcast %22 : vector<8x1xf32> to vector<8x8xf32>
    %79 = arith.addf %77, %78 : vector<8x8xf32>
    %c0_59 = arith.constant 0 : index
    %c0_60 = arith.constant 0 : index
    %c2_61 = arith.constant 2 : index
    %c0_62 = arith.constant 0 : index
    %80 = vector.load %arg5[%c0_59, %c0_60, %c2_61, %c0_62] : memref<1x8x8x8xf32, #tpu.memory_space<vmem>>, vector<1x8x1x8xf32>
    %81 = vector.shape_cast %80 : vector<1x8x1x8xf32> to vector<8x8xf32>
    %82 = vector.shape_cast %79 : vector<8x8xf32> to vector<1x8x1x8xf32>
    tpu.vector_store %arg5[%c0_59, %c0_60, %c2_61, %c0_62], %82 {strides = array<i32>} : memref<1x8x8x8xf32, #tpu.memory_space<vmem>>, vector<1x8x1x8xf32>,
    %c0_63 = arith.constant 0 : index
    %c0_64 = arith.constant 0 : index
    %c3 = arith.constant 3 : index
    %c0_65 = arith.constant 0 : index
    %83 = vector.load %arg2[%c0_63, %c0_64, %c3, %c0_65] : memref<1x4x8x32xf32, #tpu.memory_space<vmem>>, vector<1x4x1x32xf32>
    %84 = vector.shape_cast %83 : vector<1x4x1x32xf32> to vector<4x32xf32>
    %85 = vector.extract_strided_slice %84 {offsets = [0, 0], sizes = [4, 16], strides = [1, 1]} : vector<4x32xf32> to vector<4x16xf32>
    %86 = vector.extract_strided_slice %84 {offsets = [0, 16], sizes = [4, 16], strides = [1, 1]} : vector<4x32xf32> to vector<4x16xf32>
    %cst_66 = arith.constant dense<0.000000e+00> : vector<4x8xf32>
    %87 = tpu.matmul %85, %6, %cst_66 {dimension_numbers = #tpu.dot_dimension_numbers<[1], [0], [0], [1], [0, 0, 1, 1], [], []>} : vector<4x16xf32>, vector<16x8xf32>, vector<4x8xf32> -> vector<4x8xf32>
    %cst_67 = arith.constant dense<0.000000e+00> : vector<4x8xf32>
    %88 = tpu.matmul %85, %13, %cst_67 {dimension_numbers = #tpu.dot_dimension_numbers<[1], [0], [0], [1], [0, 0, 1, 1], [], []>} : vector<4x16xf32>, vector<16x8xf32>, vector<4x8xf32> -> vector<4x8xf32>
    %cst_68 = arith.constant dense<0.000000e+00> : vector<4x8xf32>
    %89 = tpu.matmul %86, %6, %cst_68 {dimension_numbers = #tpu.dot_dimension_numbers<[1], [0], [0], [1], [0, 0, 1, 1], [], []>} : vector<4x16xf32>, vector<16x8xf32>, vector<4x8xf32> -> vector<4x8xf32>
    %cst_69 = arith.constant dense<0.000000e+00> : vector<4x8xf32>
    %90 = tpu.matmul %86, %13, %cst_69 {dimension_numbers = #tpu.dot_dimension_numbers<[1], [0], [0], [1], [0, 0, 1, 1], [], []>} : vector<4x16xf32>, vector<16x8xf32>, vector<4x8xf32> -> vector<4x8xf32>
    %cst_70 = arith.constant dense<0.000000e+00> : vector<8x8xf32>
    %91 = tpu.matmul %15, %87, %cst_70 {dimension_numbers = #tpu.dot_dimension_numbers<[1], [0], [0], [1], [0, 0, 1, 1], [], []>} : vector<8x4xf32>, vector<4x8xf32>, vector<8x8xf32> -> vector<8x8xf32>
    %cst_71 = arith.constant dense<0.000000e+00> : vector<8x8xf32>
    %92 = tpu.matmul %17, %88, %cst_71 {dimension_numbers = #tpu.dot_dimension_numbers<[1], [0], [0], [1], [0, 0, 1, 1], [], []>} : vector<8x4xf32>, vector<4x8xf32>, vector<8x8xf32> -> vector<8x8xf32>
    %93 = arith.addf %91, %92 : vector<8x8xf32>
    %cst_72 = arith.constant dense<0.000000e+00> : vector<8x8xf32>
    %94 = tpu.matmul %19, %89, %cst_72 {dimension_numbers = #tpu.dot_dimension_numbers<[1], [0], [0], [1], [0, 0, 1, 1], [], []>} : vector<8x4xf32>, vector<4x8xf32>, vector<8x8xf32> -> vector<8x8xf32>
    %95 = arith.addf %93, %94 : vector<8x8xf32>
    %cst_73 = arith.constant dense<0.000000e+00> : vector<8x8xf32>
    %96 = tpu.matmul %21, %90, %cst_73 {dimension_numbers = #tpu.dot_dimension_numbers<[1], [0], [0], [1], [0, 0, 1, 1], [], []>} : vector<8x4xf32>, vector<4x8xf32>, vector<8x8xf32> -> vector<8x8xf32>
    %97 = arith.addf %95, %96 : vector<8x8xf32>
    %98 = vector.broadcast %22 : vector<8x1xf32> to vector<8x8xf32>
    %99 = arith.addf %97, %98 : vector<8x8xf32>
    %c0_74 = arith.constant 0 : index
    %c0_75 = arith.constant 0 : index
    %c3_76 = arith.constant 3 : index
    %c0_77 = arith.constant 0 : index
    %100 = vector.load %arg5[%c0_74, %c0_75, %c3_76, %c0_77] : memref<1x8x8x8xf32, #tpu.memory_space<vmem>>, vector<1x8x1x8xf32>
    %101 = vector.shape_cast %100 : vector<1x8x1x8xf32> to vector<8x8xf32>
    %102 = vector.shape_cast %99 : vector<8x8xf32> to vector<1x8x1x8xf32>
    tpu.vector_store %arg5[%c0_74, %c0_75, %c3_76, %c0_77], %102 {strides = array<i32>} : memref<1x8x8x8xf32, #tpu.memory_space<vmem>>, vector<1x8x1x8xf32>,
    %c0_78 = arith.constant 0 : index
    %c0_79 = arith.constant 0 : index
    %c4 = arith.constant 4 : index
    %c0_80 = arith.constant 0 : index
    %103 = vector.load %arg2[%c0_78, %c0_79, %c4, %c0_80] : memref<1x4x8x32xf32, #tpu.memory_space<vmem>>, vector<1x4x1x32xf32>
    %104 = vector.shape_cast %103 : vector<1x4x1x32xf32> to vector<4x32xf32>
    %105 = vector.extract_strided_slice %104 {offsets = [0, 0], sizes = [4, 16], strides = [1, 1]} : vector<4x32xf32> to vector<4x16xf32>
    %106 = vector.extract_strided_slice %104 {offsets = [0, 16], sizes = [4, 16], strides = [1, 1]} : vector<4x32xf32> to vector<4x16xf32>
    %cst_81 = arith.constant dense<0.000000e+00> : vector<4x8xf32>
    %107 = tpu.matmul %105, %6, %cst_81 {dimension_numbers = #tpu.dot_dimension_numbers<[1], [0], [0], [1], [0, 0, 1, 1], [], []>} : vector<4x16xf32>, vector<16x8xf32>, vector<4x8xf32> -> vector<4x8xf32>
    %cst_82 = arith.constant dense<0.000000e+00> : vector<4x8xf32>
    %108 = tpu.matmul %105, %13, %cst_82 {dimension_numbers = #tpu.dot_dimension_numbers<[1], [0], [0], [1], [0, 0, 1, 1], [], []>} : vector<4x16xf32>, vector<16x8xf32>, vector<4x8xf32> -> vector<4x8xf32>
    %cst_83 = arith.constant dense<0.000000e+00> : vector<4x8xf32>
    %109 = tpu.matmul %106, %6, %cst_83 {dimension_numbers = #tpu.dot_dimension_numbers<[1], [0], [0], [1], [0, 0, 1, 1], [], []>} : vector<4x16xf32>, vector<16x8xf32>, vector<4x8xf32> -> vector<4x8xf32>
    %cst_84 = arith.constant dense<0.000000e+00> : vector<4x8xf32>
    %110 = tpu.matmul %106, %13, %cst_84 {dimension_numbers = #tpu.dot_dimension_numbers<[1], [0], [0], [1], [0, 0, 1, 1], [], []>} : vector<4x16xf32>, vector<16x8xf32>, vector<4x8xf32> -> vector<4x8xf32>
    %cst_85 = arith.constant dense<0.000000e+00> : vector<8x8xf32>
    %111 = tpu.matmul %15, %107, %cst_85 {dimension_numbers = #tpu.dot_dimension_numbers<[1], [0], [0], [1], [0, 0, 1, 1], [], []>} : vector<8x4xf32>, vector<4x8xf32>, vector<8x8xf32> -> vector<8x8xf32>
    %cst_86 = arith.constant dense<0.000000e+00> : vector<8x8xf32>
    %112 = tpu.matmul %17, %108, %cst_86 {dimension_numbers = #tpu.dot_dimension_numbers<[1], [0], [0], [1], [0, 0, 1, 1], [], []>} : vector<8x4xf32>, vector<4x8xf32>, vector<8x8xf32> -> vector<8x8xf32>
    %113 = arith.addf %111, %112 : vector<8x8xf32>
    %cst_87 = arith.constant dense<0.000000e+00> : vector<8x8xf32>
    %114 = tpu.matmul %19, %109, %cst_87 {dimension_numbers = #tpu.dot_dimension_numbers<[1], [0], [0], [1], [0, 0, 1, 1], [], []>} : vector<8x4xf32>, vector<4x8xf32>, vector<8x8xf32> -> vector<8x8xf32>
    %115 = arith.addf %113, %114 : vector<8x8xf32>
    %cst_88 = arith.constant dense<0.000000e+00> : vector<8x8xf32>
    %116 = tpu.matmul %21, %110, %cst_88 {dimension_numbers = #tpu.dot_dimension_numbers<[1], [0], [0], [1], [0, 0, 1, 1], [], []>} : vector<8x4xf32>, vector<4x8xf32>, vector<8x8xf32> -> vector<8x8xf32>
    %117 = arith.addf %115, %116 : vector<8x8xf32>
    %118 = vector.broadcast %22 : vector<8x1xf32> to vector<8x8xf32>
    %119 = arith.addf %117, %118 : vector<8x8xf32>
    %c0_89 = arith.constant 0 : index
    %c0_90 = arith.constant 0 : index
    %c4_91 = arith.constant 4 : index
    %c0_92 = arith.constant 0 : index
    %120 = vector.load %arg5[%c0_89, %c0_90, %c4_91, %c0_92] : memref<1x8x8x8xf32, #tpu.memory_space<vmem>>, vector<1x8x1x8xf32>
    %121 = vector.shape_cast %120 : vector<1x8x1x8xf32> to vector<8x8xf32>
    %122 = vector.shape_cast %119 : vector<8x8xf32> to vector<1x8x1x8xf32>
    tpu.vector_store %arg5[%c0_89, %c0_90, %c4_91, %c0_92], %122 {strides = array<i32>} : memref<1x8x8x8xf32, #tpu.memory_space<vmem>>, vector<1x8x1x8xf32>,
    %c0_93 = arith.constant 0 : index
    %c0_94 = arith.constant 0 : index
    %c5 = arith.constant 5 : index
    %c0_95 = arith.constant 0 : index
    %123 = vector.load %arg2[%c0_93, %c0_94, %c5, %c0_95] : memref<1x4x8x32xf32, #tpu.memory_space<vmem>>, vector<1x4x1x32xf32>
    %124 = vector.shape_cast %123 : vector<1x4x1x32xf32> to vector<4x32xf32>
    %125 = vector.extract_strided_slice %124 {offsets = [0, 0], sizes = [4, 16], strides = [1, 1]} : vector<4x32xf32> to vector<4x16xf32>
    %126 = vector.extract_strided_slice %124 {offsets = [0, 16], sizes = [4, 16], strides = [1, 1]} : vector<4x32xf32> to vector<4x16xf32>
    %cst_96 = arith.constant dense<0.000000e+00> : vector<4x8xf32>
    %127 = tpu.matmul %125, %6, %cst_96 {dimension_numbers = #tpu.dot_dimension_numbers<[1], [0], [0], [1], [0, 0, 1, 1], [], []>} : vector<4x16xf32>, vector<16x8xf32>, vector<4x8xf32> -> vector<4x8xf32>
    %cst_97 = arith.constant dense<0.000000e+00> : vector<4x8xf32>
    %128 = tpu.matmul %125, %13, %cst_97 {dimension_numbers = #tpu.dot_dimension_numbers<[1], [0], [0], [1], [0, 0, 1, 1], [], []>} : vector<4x16xf32>, vector<16x8xf32>, vector<4x8xf32> -> vector<4x8xf32>
    %cst_98 = arith.constant dense<0.000000e+00> : vector<4x8xf32>
    %129 = tpu.matmul %126, %6, %cst_98 {dimension_numbers = #tpu.dot_dimension_numbers<[1], [0], [0], [1], [0, 0, 1, 1], [], []>} : vector<4x16xf32>, vector<16x8xf32>, vector<4x8xf32> -> vector<4x8xf32>
    %cst_99 = arith.constant dense<0.000000e+00> : vector<4x8xf32>
    %130 = tpu.matmul %126, %13, %cst_99 {dimension_numbers = #tpu.dot_dimension_numbers<[1], [0], [0], [1], [0, 0, 1, 1], [], []>} : vector<4x16xf32>, vector<16x8xf32>, vector<4x8xf32> -> vector<4x8xf32>
    %cst_100 = arith.constant dense<0.000000e+00> : vector<8x8xf32>
    %131 = tpu.matmul %15, %127, %cst_100 {dimension_numbers = #tpu.dot_dimension_numbers<[1], [0], [0], [1], [0, 0, 1, 1], [], []>} : vector<8x4xf32>, vector<4x8xf32>, vector<8x8xf32> -> vector<8x8xf32>
    %cst_101 = arith.constant dense<0.000000e+00> : vector<8x8xf32>
    %132 = tpu.matmul %17, %128, %cst_101 {dimension_numbers = #tpu.dot_dimension_numbers<[1], [0], [0], [1], [0, 0, 1, 1], [], []>} : vector<8x4xf32>, vector<4x8xf32>, vector<8x8xf32> -> vector<8x8xf32>
    %133 = arith.addf %131, %132 : vector<8x8xf32>
    %cst_102 = arith.constant dense<0.000000e+00> : vector<8x8xf32>
    %134 = tpu.matmul %19, %129, %cst_102 {dimension_numbers = #tpu.dot_dimension_numbers<[1], [0], [0], [1], [0, 0, 1, 1], [], []>} : vector<8x4xf32>, vector<4x8xf32>, vector<8x8xf32> -> vector<8x8xf32>
    %135 = arith.addf %133, %134 : vector<8x8xf32>
    %cst_103 = arith.constant dense<0.000000e+00> : vector<8x8xf32>
    %136 = tpu.matmul %21, %130, %cst_103 {dimension_numbers = #tpu.dot_dimension_numbers<[1], [0], [0], [1], [0, 0, 1, 1], [], []>} : vector<8x4xf32>, vector<4x8xf32>, vector<8x8xf32> -> vector<8x8xf32>
    %137 = arith.addf %135, %136 : vector<8x8xf32>
    %138 = vector.broadcast %22 : vector<8x1xf32> to vector<8x8xf32>
    %139 = arith.addf %137, %138 : vector<8x8xf32>
    %c0_104 = arith.constant 0 : index
    %c0_105 = arith.constant 0 : index
    %c5_106 = arith.constant 5 : index
    %c0_107 = arith.constant 0 : index
    %140 = vector.load %arg5[%c0_104, %c0_105, %c5_106, %c0_107] : memref<1x8x8x8xf32, #tpu.memory_space<vmem>>, vector<1x8x1x8xf32>
    %141 = vector.shape_cast %140 : vector<1x8x1x8xf32> to vector<8x8xf32>
    %142 = vector.shape_cast %139 : vector<8x8xf32> to vector<1x8x1x8xf32>
    tpu.vector_store %arg5[%c0_104, %c0_105, %c5_106, %c0_107], %142 {strides = array<i32>} : memref<1x8x8x8xf32, #tpu.memory_space<vmem>>, vector<1x8x1x8xf32>,
    %c0_108 = arith.constant 0 : index
    %c0_109 = arith.constant 0 : index
    %c6 = arith.constant 6 : index
    %c0_110 = arith.constant 0 : index
    %143 = vector.load %arg2[%c0_108, %c0_109, %c6, %c0_110] : memref<1x4x8x32xf32, #tpu.memory_space<vmem>>, vector<1x4x1x32xf32>
    %144 = vector.shape_cast %143 : vector<1x4x1x32xf32> to vector<4x32xf32>
    %145 = vector.extract_strided_slice %144 {offsets = [0, 0], sizes = [4, 16], strides = [1, 1]} : vector<4x32xf32> to vector<4x16xf32>
    %146 = vector.extract_strided_slice %144 {offsets = [0, 16], sizes = [4, 16], strides = [1, 1]} : vector<4x32xf32> to vector<4x16xf32>
    %cst_111 = arith.constant dense<0.000000e+00> : vector<4x8xf32>
    %147 = tpu.matmul %145, %6, %cst_111 {dimension_numbers = #tpu.dot_dimension_numbers<[1], [0], [0], [1], [0, 0, 1, 1], [], []>} : vector<4x16xf32>, vector<16x8xf32>, vector<4x8xf32> -> vector<4x8xf32>
    %cst_112 = arith.constant dense<0.000000e+00> : vector<4x8xf32>
    %148 = tpu.matmul %145, %13, %cst_112 {dimension_numbers = #tpu.dot_dimension_numbers<[1], [0], [0], [1], [0, 0, 1, 1], [], []>} : vector<4x16xf32>, vector<16x8xf32>, vector<4x8xf32> -> vector<4x8xf32>
    %cst_113 = arith.constant dense<0.000000e+00> : vector<4x8xf32>
    %149 = tpu.matmul %146, %6, %cst_113 {dimension_numbers = #tpu.dot_dimension_numbers<[1], [0], [0], [1], [0, 0, 1, 1], [], []>} : vector<4x16xf32>, vector<16x8xf32>, vector<4x8xf32> -> vector<4x8xf32>
    %cst_114 = arith.constant dense<0.000000e+00> : vector<4x8xf32>
    %150 = tpu.matmul %146, %13, %cst_114 {dimension_numbers = #tpu.dot_dimension_numbers<[1], [0], [0], [1], [0, 0, 1, 1], [], []>} : vector<4x16xf32>, vector<16x8xf32>, vector<4x8xf32> -> vector<4x8xf32>
    %cst_115 = arith.constant dense<0.000000e+00> : vector<8x8xf32>
    %151 = tpu.matmul %15, %147, %cst_115 {dimension_numbers = #tpu.dot_dimension_numbers<[1], [0], [0], [1], [0, 0, 1, 1], [], []>} : vector<8x4xf32>, vector<4x8xf32>, vector<8x8xf32> -> vector<8x8xf32>
    %cst_116 = arith.constant dense<0.000000e+00> : vector<8x8xf32>
    %152 = tpu.matmul %17, %148, %cst_116 {dimension_numbers = #tpu.dot_dimension_numbers<[1], [0], [0], [1], [0, 0, 1, 1], [], []>} : vector<8x4xf32>, vector<4x8xf32>, vector<8x8xf32> -> vector<8x8xf32>
    %153 = arith.addf %151, %152 : vector<8x8xf32>
    %cst_117 = arith.constant dense<0.000000e+00> : vector<8x8xf32>
    %154 = tpu.matmul %19, %149, %cst_117 {dimension_numbers = #tpu.dot_dimension_numbers<[1], [0], [0], [1], [0, 0, 1, 1], [], []>} : vector<8x4xf32>, vector<4x8xf32>, vector<8x8xf32> -> vector<8x8xf32>
    %155 = arith.addf %153, %154 : vector<8x8xf32>
    %cst_118 = arith.constant dense<0.000000e+00> : vector<8x8xf32>
    %156 = tpu.matmul %21, %150, %cst_118 {dimension_numbers = #tpu.dot_dimension_numbers<[1], [0], [0], [1], [0, 0, 1, 1], [], []>} : vector<8x4xf32>, vector<4x8xf32>, vector<8x8xf32> -> vector<8x8xf32>
    %157 = arith.addf %155, %156 : vector<8x8xf32>
    %158 = vector.broadcast %22 : vector<8x1xf32> to vector<8x8xf32>
    %159 = arith.addf %157, %158 : vector<8x8xf32>
    %c0_119 = arith.constant 0 : index
    %c0_120 = arith.constant 0 : index
    %c6_121 = arith.constant 6 : index
    %c0_122 = arith.constant 0 : index
    %160 = vector.load %arg5[%c0_119, %c0_120, %c6_121, %c0_122] : memref<1x8x8x8xf32, #tpu.memory_space<vmem>>, vector<1x8x1x8xf32>
    %161 = vector.shape_cast %160 : vector<1x8x1x8xf32> to vector<8x8xf32>
    %162 = vector.shape_cast %159 : vector<8x8xf32> to vector<1x8x1x8xf32>
    tpu.vector_store %arg5[%c0_119, %c0_120, %c6_121, %c0_122], %162 {strides = array<i32>} : memref<1x8x8x8xf32, #tpu.memory_space<vmem>>, vector<1x8x1x8xf32>,
    %c0_123 = arith.constant 0 : index
    %c0_124 = arith.constant 0 : index
    %c7 = arith.constant 7 : index
    %c0_125 = arith.constant 0 : index
    %163 = vector.load %arg2[%c0_123, %c0_124, %c7, %c0_125] : memref<1x4x8x32xf32, #tpu.memory_space<vmem>>, vector<1x4x1x32xf32>
    %164 = vector.shape_cast %163 : vector<1x4x1x32xf32> to vector<4x32xf32>
    %165 = vector.extract_strided_slice %164 {offsets = [0, 0], sizes = [4, 16], strides = [1, 1]} : vector<4x32xf32> to vector<4x16xf32>
    %166 = vector.extract_strided_slice %164 {offsets = [0, 16], sizes = [4, 16], strides = [1, 1]} : vector<4x32xf32> to vector<4x16xf32>
    %cst_126 = arith.constant dense<0.000000e+00> : vector<4x8xf32>
    %167 = tpu.matmul %165, %6, %cst_126 {dimension_numbers = #tpu.dot_dimension_numbers<[1], [0], [0], [1], [0, 0, 1, 1], [], []>} : vector<4x16xf32>, vector<16x8xf32>, vector<4x8xf32> -> vector<4x8xf32>
    %cst_127 = arith.constant dense<0.000000e+00> : vector<4x8xf32>
    %168 = tpu.matmul %165, %13, %cst_127 {dimension_numbers = #tpu.dot_dimension_numbers<[1], [0], [0], [1], [0, 0, 1, 1], [], []>} : vector<4x16xf32>, vector<16x8xf32>, vector<4x8xf32> -> vector<4x8xf32>
    %cst_128 = arith.constant dense<0.000000e+00> : vector<4x8xf32>
    %169 = tpu.matmul %166, %6, %cst_128 {dimension_numbers = #tpu.dot_dimension_numbers<[1], [0], [0], [1], [0, 0, 1, 1], [], []>} : vector<4x16xf32>, vector<16x8xf32>, vector<4x8xf32> -> vector<4x8xf32>
    %cst_129 = arith.constant dense<0.000000e+00> : vector<4x8xf32>
    %170 = tpu.matmul %166, %13, %cst_129 {dimension_numbers = #tpu.dot_dimension_numbers<[1], [0], [0], [1], [0, 0, 1, 1], [], []>} : vector<4x16xf32>, vector<16x8xf32>, vector<4x8xf32> -> vector<4x8xf32>
    %cst_130 = arith.constant dense<0.000000e+00> : vector<8x8xf32>
    %171 = tpu.matmul %15, %167, %cst_130 {dimension_numbers = #tpu.dot_dimension_numbers<[1], [0], [0], [1], [0, 0, 1, 1], [], []>} : vector<8x4xf32>, vector<4x8xf32>, vector<8x8xf32> -> vector<8x8xf32>
    %cst_131 = arith.constant dense<0.000000e+00> : vector<8x8xf32>
    %172 = tpu.matmul %17, %168, %cst_131 {dimension_numbers = #tpu.dot_dimension_numbers<[1], [0], [0], [1], [0, 0, 1, 1], [], []>} : vector<8x4xf32>, vector<4x8xf32>, vector<8x8xf32> -> vector<8x8xf32>
    %173 = arith.addf %171, %172 : vector<8x8xf32>
    %cst_132 = arith.constant dense<0.000000e+00> : vector<8x8xf32>
    %174 = tpu.matmul %19, %169, %cst_132 {dimension_numbers = #tpu.dot_dimension_numbers<[1], [0], [0], [1], [0, 0, 1, 1], [], []>} : vector<8x4xf32>, vector<4x8xf32>, vector<8x8xf32> -> vector<8x8xf32>
    %175 = arith.addf %173, %174 : vector<8x8xf32>
    %cst_133 = arith.constant dense<0.000000e+00> : vector<8x8xf32>
    %176 = tpu.matmul %21, %170, %cst_133 {dimension_numbers = #tpu.dot_dimension_numbers<[1], [0], [0], [1], [0, 0, 1, 1], [], []>} : vector<8x4xf32>, vector<4x8xf32>, vector<8x8xf32> -> vector<8x8xf32>
    %177 = arith.addf %175, %176 : vector<8x8xf32>
    %178 = vector.broadcast %22 : vector<8x1xf32> to vector<8x8xf32>
    %179 = arith.addf %177, %178 : vector<8x8xf32>
    %c0_134 = arith.constant 0 : index
    %c0_135 = arith.constant 0 : index
    %c7_136 = arith.constant 7 : index
    %c0_137 = arith.constant 0 : index
    %180 = vector.load %arg5[%c0_134, %c0_135, %c7_136, %c0_137] : memref<1x8x8x8xf32, #tpu.memory_space<vmem>>, vector<1x8x1x8xf32>
    %181 = vector.shape_cast %180 : vector<1x8x1x8xf32> to vector<8x8xf32>
    %182 = vector.shape_cast %179 : vector<8x8xf32> to vector<1x8x1x8xf32>
    tpu.vector_store %arg5[%c0_134, %c0_135, %c7_136, %c0_137], %182 {strides = array<i32>} : memref<1x8x8x8xf32, #tpu.memory_space<vmem>>, vector<1x8x1x8xf32>,
    return
  }
  func.func @transform_0(%arg0: i32, %arg1: i32) -> (i32, i32, i32, i32) {
    %c0_i32 = arith.constant 0 : i32
    %c0_i32_0 = arith.constant 0 : i32
    %c0_i32_1 = arith.constant 0 : i32
    return %arg0, %c0_i32, %arg1, %c0_i32_0 : i32, i32, i32, i32
  }
  func.func @transform_1(%arg0: i32, %arg1: i32) -> (i32, i32, i32, i32) {
    %c0_i32 = arith.constant 0 : i32
    %c0_i32_0 = arith.constant 0 : i32
    %c0_i32_1 = arith.constant 0 : i32
    %c0_i32_2 = arith.constant 0 : i32
    %c0_i32_3 = arith.constant 0 : i32
    return %c0_i32, %c0_i32_0, %c0_i32_1, %c0_i32_2 : i32, i32, i32, i32
  }
  func.func @transform_2(%arg0: i32, %arg1: i32) -> (i32, i32) {
    %c0_i32 = arith.constant 0 : i32
    %c0_i32_0 = arith.constant 0 : i32
    %c0_i32_1 = arith.constant 0 : i32
    return %c0_i32, %c0_i32_0 : i32, i32
  }
  func.func @transform_3(%arg0: i32, %arg1: i32) -> (i32, i32, i32, i32) {
    %c0_i32 = arith.constant 0 : i32
    %c0_i32_0 = arith.constant 0 : i32
    %c0_i32_1 = arith.constant 0 : i32
    return %arg0, %c0_i32, %arg1, %c0_i32_0 : i32, i32, i32, i32
  }
}

</mosaic_0001>

<llo_original>
// kernel: tpu_custom_call.1
$region0: #{tpu_custom_call.1}
  #allocation0 [shape = 'u32[]', space=smem, size = 0x4, offset = 0x4, fixed_abs, tag = 'smem constant byte address 0x4 - core index']
  #allocation1 [shape = 'u32[144,128]{1,0:T(1,128)}', space=vmem, size = 0x12000, scoped, tag = 'internal scratch']
  %s0 = inlined_call_operand.hbm [shape: f32[2,4,8,32], index: 0, kind: input, shape index: {}]
  %s1 = inlined_call_operand.vmem [shape: f32[2,2,8,4], index: 1, kind: input, shape index: {}]
  %s2 = inlined_call_operand.vmem [shape: f32[8,1], index: 2, kind: input, shape index: {}]
  %s3 = inlined_call_operand.hbm [shape: f32[2,8,8,8], index: 3, kind: output, shape index: {}]
  %s4 = sld [smem:[#allocation0]]
  $region49: #{tpu_custom_call.1} parent=0
    _
  %s6 = ssub.s32 1, %s4
  %s7 = scalar_select 0, %s6, %s4
  $region1: #{tpu_custom_call.1} parent=0
    #allocation2 [shape = 'u8[32768]{0}', space=vmem, size = 0x8000, scoped, tag = 'input window, operand 0']
    #allocation3 [shape = 's32[2]{0}', space=sflag, size = 0x8, scoped, tag = 'scoped memory for tpu_custom_call.1']
    #allocation4 [shape = 's32[2]{0}', space=sflag, size = 0x8, scoped, tag = 'scoped memory for tpu_custom_call.1']
    #allocation5 [shape = 'u8[65536]{0}', space=vmem, size = 0x10000, scoped, tag = 'output window, operand 0']
    %8 = vsyncpa [#allocation3], 0
    %s9 = scalar_lea.sflag [#allocation3], 1
    %10 = vsyncpa %s9, 0
    %11 = vsyncpa [#allocation4], 0
    %s12 = scalar_lea.sflag [#allocation4], 1
    %13 = vsyncpa %s12, 0
    loop: start=0, step=1, limit=4
    $region2: #{tpu_custom_call.1} parent=1 // loop_pre_header
      _
    $region3: #{tpu_custom_call.1} parent=1 // loop_header
      %s15 = sphi 0, %s19
      %p16 = scmp.ge.s32.totalorder %s15, 4
      %s22 = sphi 0, %s34
      %s23 = sphi 0, %s30
      %s24 = sphi 0, %s22
      %s25 = sphi 0, %s23
      %s26 = sphi 0, %s24
      %s27 = sphi 0, %s25
      %s39 = sphi 0, %s41
      %s42 = sphi 0, %s39
      %s43 = sphi 0, %s42
      %s59 = sphi 0, %s43
      %s63 = sphi 0, %s63
      %s65 = sphi 0, %s63
      %s66 = sphi 0, %s65
      %s80 = sphi 0, %s66
      %s84 = sphi 0, %s84
      %s86 = sphi 0, %s84
      %s87 = sphi 0, %s86
      %s101 = sphi 0, %s87
      %s109 = sphi 0, %s111
      %s112 = sphi 0, %s109
      %s113 = sphi 0, %s112
      %s129 = sphi 0, %s113
    $region4: #{tpu_custom_call.1} parent=1 // loop_header_branch
      %18 = sbr.rel (%p16) target = $region8
    $region5: #{tpu_custom_call.1} parent=1 // loop_body
      %s20 = ssub.s32 %s15, 1
      %s21 = ssub.s32 %s15, 2
      %s28 = sadd.s32 1, %s23
      %p29 = scmp.ge.s32.totalorder %s28, 1
      %s30 = scalar_select %p29, 0, %s28
      %s31 = sadd.s32 1, %s22
      %s32 = scalar_select %p29, %s31, %s22
      %p33 = scmp.ge.s32.totalorder %s32, 2
      %s34 = scalar_select %p33, 0, %s32
      %s35 = ssub.s32 %s22, %s34
      %s36 = ssub.s32 %s23, %s30
      %s37 = sor.u32 %s35, %s36
      %p38 = scmp.eq.s32.totalorder %s37, 0
      %s40 = sadd.s32 %s39, 1
      %s41 = scalar_select %p38, %s39, %s40
      %p44 = pneg %p38
      %p45 = scmp.eq.s32.totalorder %s15, 1
      %p46 = por %p44, %p45
      %p47 = scmp.ne.s32.totalorder %s39, %s42
      %p48 = scmp.eq.s32.totalorder %s15, 0
      %p49 = por %p47, %p48
      %p50 = scmp.ne.s32.totalorder %s39, %s42
      %p51 = scmp.eq.s32.totalorder %s20, 1
      %p52 = por %p50, %p51
      %p53 = scmp.ne.s32.totalorder %s42, %s43
      %p54 = scmp.eq.s32.totalorder %s20, 0
      %p55 = por %p53, %p54
      %p56 = scmp.ne.s32.totalorder %s42, %s43
      %p57 = scmp.eq.s32.totalorder %s21, 1
      %p58 = por %p56, %p57
      %p60 = scmp.ne.s32.totalorder %s43, %s59
      %p61 = scmp.eq.s32.totalorder %s21, 0
      %p62 = por %p60, %p61
      %s64 = sadd.s32 %s63, 1
      %p67 = scmp.eq.s32.totalorder %s15, 1
      %p68 = scmp.ne.s32.totalorder %s63, %s65
      %p69 = scmp.eq.s32.totalorder %s15, 0
      %p70 = por %p68, %p69
      %p71 = scmp.ne.s32.totalorder %s63, %s65
      %p72 = scmp.eq.s32.totalorder %s20, 1
      %p73 = por %p71, %p72
      %p74 = scmp.ne.s32.totalorder %s65, %s66
      %p75 = scmp.eq.s32.totalorder %s20, 0
      %p76 = por %p74, %p75
      %p77 = scmp.ne.s32.totalorder %s65, %s66
      %p78 = scmp.eq.s32.totalorder %s21, 1
      %p79 = por %p77, %p78
      %p81 = scmp.ne.s32.totalorder %s66, %s80
      %p82 = scmp.eq.s32.totalorder %s21, 0
      %p83 = por %p81, %p82
      %s85 = sadd.s32 %s84, 1
      %p88 = scmp.eq.s32.totalorder %s15, 1
      %p89 = scmp.ne.s32.totalorder %s84, %s86
      %p90 = scmp.eq.s32.totalorder %s15, 0
      %p91 = por %p89, %p90
      %p92 = scmp.ne.s32.totalorder %s84, %s86
      %p93 = scmp.eq.s32.totalorder %s20, 1
      %p94 = por %p92, %p93
      %p95 = scmp.ne.s32.totalorder %s86, %s87
      %p96 = scmp.eq.s32.totalorder %s20, 0
      %p97 = por %p95, %p96
      %p98 = scmp.ne.s32.totalorder %s86, %s87
      %p99 = scmp.eq.s32.totalorder %s21, 1
      %p100 = por %p98, %p99
      %p102 = scmp.ne.s32.totalorder %s87, %s101
      %p103 = scmp.eq.s32.totalorder %s21, 0
      %p104 = por %p102, %p103
      %s105 = ssub.s32 %s22, %s34
      %s106 = ssub.s32 %s23, %s30
      %s107 = sor.u32 %s105, %s106
      %p108 = scmp.eq.s32.totalorder %s107, 0
      %s110 = sadd.s32 %s109, 1
      %s111 = scalar_select %p108, %s109, %s110
      %p114 = pneg %p108
      %p115 = scmp.eq.s32.totalorder %s15, 1
      %p116 = por %p114, %p115
      %p117 = scmp.ne.s32.totalorder %s109, %s112
      %p118 = scmp.eq.s32.totalorder %s15, 0
      %p119 = por %p117, %p118
      %p120 = scmp.ne.s32.totalorder %s109, %s112
      %p121 = scmp.eq.s32.totalorder %s20, 1
      %p122 = por %p120, %p121
      %p123 = scmp.ne.s32.totalorder %s112, %s113
      %p124 = scmp.eq.s32.totalorder %s20, 0
      %p125 = por %p123, %p124
      %p126 = scmp.ne.s32.totalorder %s112, %s113
      %p127 = scmp.eq.s32.totalorder %s21, 1
      %p128 = por %p126, %p127
      %p130 = scmp.ne.s32.totalorder %s113, %s129
      %p131 = scmp.eq.s32.totalorder %s21, 0
      %p132 = por %p130, %p131
      %p133 = scmp.le.s32.totalorder 1, %s15
      %p134 = scmp.lt.s32.totalorder %s15, 3
      %p135 = pnand %p133, %p134
      %p136 = pneg %p135
      // Predicated region
      $region9: #{tpu_custom_call.1} parent=5 // pred_check
        _
      $region10: #{tpu_custom_call.1} parent=5 // pred_check_branch
        %138 = sbr.rel (%p135) target = $region12
      $region11: #{tpu_custom_call.1} parent=5 // pred_region
        %s139 = ssub.s32 %s15, 1
        // Predicated region
        $region13: #{tpu_custom_call.1} parent=11 // pred_check
          %p140 = pneg %p76
        $region14: #{tpu_custom_call.1} parent=11 // pred_check_branch
          %142 = sbr.rel (%p140) target = $region16
        $region15: #{tpu_custom_call.1} parent=11 // pred_region
          _
        $region16: #{tpu_custom_call.1} parent=11 // pred_fallthru
          _
        // Predicated region
        $region17: #{tpu_custom_call.1} parent=11 // pred_check
          %p143 = pneg %p97
        $region18: #{tpu_custom_call.1} parent=11 // pred_check_branch
          %145 = sbr.rel (%p143) target = $region20
        $region19: #{tpu_custom_call.1} parent=11 // pred_region
          _
        $region20: #{tpu_custom_call.1} parent=11 // pred_fallthru
          _
      $region12: #{tpu_custom_call.1} parent=5 // pred_fallthru
        _
      %p146 = scmp.lt.s32.totalorder %s15, 2
      // Predicated region
      $region21: #{tpu_custom_call.1} parent=5 // pred_check
        %p147 = pneg %p146
      $region22: #{tpu_custom_call.1} parent=5 // pred_check_branch
        %149 = sbr.rel (%p147) target = $region24
      $region23: #{tpu_custom_call.1} parent=5 // pred_region
        // Predicated region
        $region25: #{tpu_custom_call.1} parent=23 // pred_check
          %p150 = pneg %p49
        $region26: #{tpu_custom_call.1} parent=23 // pred_check_branch
          %152 = sbr.rel (%p150) target = $region28
        $region27: #{tpu_custom_call.1} parent=23 // pred_region
          %s153 = sand.u32 %s39, 1
          %s154 = scalar_lea.sflag [#allocation3], %s153
          %s155 = sand.u32 %s39, 1
          %s156 = smul.addr %s155, 32
          %s157 = scalar_lea.vmem [#allocation2], %s156
          %s159 = ssub.s32 512, 512
          %160 = vsyncadd %s154, %s159
          %s161 = smul.addr %s22, 4
          %s162 = sadd.s32 %s23, %s161
          %s163 = smul.addr %s162, 128
          %s164 = scalar_lea.hbm %s0, %s163
          %s165 = sshll.u32 %s157, 4
          %s166 = int_to_ptr.vmem [resolvable:$true] %s165
          %171 = dma.hbm_to_vmem [thread:$0]  %s164, 512, %s166, %s154, 128, 128, 8
        $region28: #{tpu_custom_call.1} parent=23 // pred_fallthru
          _
      $region24: #{tpu_custom_call.1} parent=5 // pred_fallthru
        _
      %p172 = scmp.le.s32.totalorder 1, %s15
      %p173 = scmp.lt.s32.totalorder %s15, 3
      %p174 = pnand %p172, %p173
      %p175 = pneg %p174
      // Predicated region
      $region29: #{tpu_custom_call.1} parent=5 // pred_check
        _
      $region30: #{tpu_custom_call.1} parent=5 // pred_check_branch
        %177 = sbr.rel (%p174) target = $region32
      $region31: #{tpu_custom_call.1} parent=5 // pred_region
        %s178 = ssub.s32 %s15, 1
        %s179 = sand.u32 %s42, 1
        %s180 = scalar_lea.sflag [#allocation3], %s179
        %s181 = sand.u32 %s42, 1
        %s182 = smul.addr %s181, 32
        %s183 = scalar_lea.vmem [#allocation2], %s182
        // Predicated region
        $region33: #{tpu_custom_call.1} parent=31 // pred_check
          %p184 = pneg %p55
        $region34: #{tpu_custom_call.1} parent=31 // pred_check_branch
          %186 = sbr.rel (%p184) target = $region36
        $region35: #{tpu_custom_call.1} parent=31 // pred_region
          %187 = dma.done %s180, 512
        $region36: #{tpu_custom_call.1} parent=31 // pred_fallthru
          _
        %s188 = sand.u32 %s42, 1
        %s189 = scalar_lea.sflag [#allocation3], %s188
        %s190 = sand.u32 %s42, 1
        %s191 = smul.addr %s190, 32
        %s192 = scalar_lea.vmem [#allocation2], %s191
        %p193 = pneg %p55
        %p194 = pneg %p52
        %p195 = pneg %p76
        %p196 = pneg %p73
        %p197 = pneg %p97
        %p198 = pneg %p94
        %p199 = pneg %p125
        %p200 = pneg %p122
        %s201 = sand.u32 %s112, 1
        %s202 = scalar_lea.sflag [#allocation4], %s201
        %s203 = sand.u32 %s112, 1
        %s204 = smul.addr %s203, 64
        %s205 = scalar_lea.vmem [#allocation5], %s204
        %v206 = vlaneseq
        %v207 = vshrl.u32 %v206, 7
        %v208 = vadd.s32 %v207, 8
        %v209 = vlaneseq
        %v210 = vand.u32 %v209, 127
        %v211 = vmul.u32 %v210, 2
        %vm212 = vcmp.eq.s32.totalorder %v207, %v211
        %vm213 = vcmp.eq.s32.totalorder %v208, %v211
        %v214 = vsel %vm212, 1, 0
        %v215 = vsel %vm213, 1, 0
        %v216 = vcvt.s32.f32 %v214
        %v217 = vcvt.s32.f32 %v215
        %v218 = vadd.s32 %v211, 1
        %vm219 = vcmp.eq.s32.totalorder %v207, %v218
        %vm220 = vcmp.eq.s32.totalorder %v208, %v218
        %v221 = vsel %vm219, 1, 0
        %v222 = vsel %vm220, 1, 0
        %v223 = vcvt.s32.f32 %v221
        %v224 = vcvt.s32.f32 %v222
        %v225 = vld [vmem:[%s1] sm:$0xff]
        %s226 = scalar_lea.vmem %s1, 8
        %v227 = vld [vmem:[%s226] sm:$0xff]
        %s228 = scalar_lea.vmem %s1, 16
        %v229 = vld [vmem:[%s228] sm:$0xff]
        %s230 = scalar_lea.vmem %s1, 24
        %v231 = vld [vmem:[%s230] sm:$0xff]
        %v232 = vld [vmem:[%s2] sm:$0xff]
        %v233 = vld [vmem:[%s183] sm:$0x1]
        %v234 = vld [vmem:[%s183 + $0x8] sm:$0x1]
        %v235 = vld [vmem:[%s183 + $0x10] sm:$0x1]
        %v236 = vld [vmem:[%s183 + $0x18] sm:$0x1]
        %v241 = vrot.slane %v234, 7
        %vm242 = vcmask 1041409
        %v243 = vsel %vm242, %v241, %v233
        %v244 = vrot.slane %v235, 6
        %vm245 = vcmask 1042434
        %v246 = vsel %vm245, %v244, %v243
        %v247 = vrot.slane %v236, 5
        %vm248 = vcmask 1043459
        %v249 = vsel %vm248, %v247, %v246
        %vm250 = vcmask 130048
        %v251 = vsel %vm250, %v249, 0
        %253 = vmatprep.subr.mxu0 0.0
        %254 = vmatpush1.msra.mxu0 %v216
        %255 = vmatprep.subr.mxu0 0.0
        %256 = vmatpush1.msra.mxu0 %v217
        %257 = vmatprep.subr.mxu0 0.0
        %258 = vmatpush1.msra.mxu0 0.0
        %259 = vmatprep.subr.mxu0 0.0
        %260 = vmatpush1.msra.mxu0 0.0
        %261 = vmatprep.subr.mxu0 0.0
        %262 = vmatpush1.msra.mxu0 0.0
        %263 = vmatprep.subr.mxu0 0.0
        %264 = vmatpush1.msra.mxu0 0.0
        %265 = vmatprep.subr.mxu0 0.0
        %266 = vmatpush1.msra.mxu0 0.0
        %267 = vmatprep.subr.mxu0 0.0
        %268 = vmatpush1.msra.mxu0 0.0
        %269 = vmatprep.subr.mxu0 0.0
        %270 = vmatpush1.msra.mxu0 0.0
        %271 = vmatprep.subr.mxu0 0.0
        %272 = vmatpush1.msra.mxu0 0.0
        %273 = vmatprep.subr.mxu0 0.0
        %274 = vmatpush1.msra.mxu0 0.0
        %275 = vmatprep.subr.mxu0 0.0
        %276 = vmatpush1.msra.mxu0 0.0
        %277 = vmatprep.subr.mxu0 0.0
        %278 = vmatpush1.msra.mxu0 0.0
        %279 = vmatprep.subr.mxu0 0.0
        %280 = vmatpush1.msra.mxu0 0.0
        %281 = vmatprep.subr.mxu0 0.0
        %282 = vmatpush1.msra.mxu0 0.0
        %283 = vmatprep.subr.mxu0 0.0
        %284 = vmatpush1.msra.mxu0 0.0
        %285 = vmatprep.subr.mxu0 0.0
        %286 = vmatpush1.msra.mxu0 0.0
        %287 = vmatprep.subr.mxu0 0.0
        %288 = vmatpush1.msra.mxu0 0.0
        %289 = vmatprep.subr.mxu0 0.0
        %290 = vmatpush1.msra.mxu0 0.0
        %291 = vmatprep.subr.mxu0 0.0
        %292 = vmatpush1.msra.mxu0 0.0
        %293 = vmatprep.subr.mxu0 0.0
        %294 = vmatpush1.msra.mxu0 0.0
        %295 = vmatprep.subr.mxu0 0.0
        %296 = vmatpush1.msra.mxu0 0.0
        %297 = vmatprep.subr.mxu0 0.0
        %298 = vmatpush1.msra.mxu0 0.0
        %299 = vmatprep.subr.mxu0 0.0
        %300 = vmatpush1.msra.mxu0 0.0
        %301 = vmatprep.subr.mxu0 0.0
        %302 = vmatpush1.msra.mxu0 0.0
        %303 = vmatprep.subr.mxu0 0.0
        %304 = vmatpush1.msra.mxu0 0.0
        %305 = vmatprep.subr.mxu0 0.0
        %306 = vmatpush1.msra.mxu0 0.0
        %307 = vmatprep.subr.mxu0 0.0
        %308 = vmatpush1.msra.mxu0 0.0
        %309 = vmatprep.subr.mxu0 0.0
        %310 = vmatpush1.msra.mxu0 0.0
        %311 = vmatprep.subr.mxu0 0.0
        %312 = vmatpush1.msra.mxu0 0.0
        %313 = vmatprep.subr.mxu0 0.0
        %314 = vmatpush1.msra.mxu0 0.0
        %315 = vmatprep.subr.mxu0 0.0
        %316 = vmatpush1.msra.mxu0 0.0
        %317 = vmatprep.mubr.f32.mxu0 0.0
        %318 = vmatmul.mubr.f32.gmra.mrb[0].mxu0 %v251
        %v319 = vpop.f32.mrb[0].mxu0
        %v320 = vadd.f32 0.0, %v319
        %v321 = vpop.f32.mrb[0].mxu0
        %322 = vdwg.mxu0
        %323 = vmatprep.subr.mxu0 0.0
        %324 = vmatpush1.msra.mxu0 %v223
        %325 = vmatprep.subr.mxu0 0.0
        %326 = vmatpush1.msra.mxu0 %v224
        %327 = vmatprep.subr.mxu0 0.0
        %328 = vmatpush1.msra.mxu0 0.0
        %329 = vmatprep.subr.mxu0 0.0
        %330 = vmatpush1.msra.mxu0 0.0
        %331 = vmatprep.subr.mxu0 0.0
        %332 = vmatpush1.msra.mxu0 0.0
        %333 = vmatprep.subr.mxu0 0.0
        %334 = vmatpush1.msra.mxu0 0.0
        %335 = vmatprep.subr.mxu0 0.0
        %336 = vmatpush1.msra.mxu0 0.0
        %337 = vmatprep.subr.mxu0 0.0
        %338 = vmatpush1.msra.mxu0 0.0
        %339 = vmatprep.subr.mxu0 0.0
        %340 = vmatpush1.msra.mxu0 0.0
        %341 = vmatprep.subr.mxu0 0.0
        %342 = vmatpush1.msra.mxu0 0.0
        %343 = vmatprep.subr.mxu0 0.0
        %344 = vmatpush1.msra.mxu0 0.0
        %345 = vmatprep.subr.mxu0 0.0
        %346 = vmatpush1.msra.mxu0 0.0
        %347 = vmatprep.subr.mxu0 0.0
        %348 = vmatpush1.msra.mxu0 0.0
        %349 = vmatprep.subr.mxu0 0.0
        %350 = vmatpush1.msra.mxu0 0.0
        %351 = vmatprep.subr.mxu0 0.0
        %352 = vmatpush1.msra.mxu0 0.0
        %353 = vmatprep.subr.mxu0 0.0
        %354 = vmatpush1.msra.mxu0 0.0
        %355 = vmatprep.subr.mxu0 0.0
        %356 = vmatpush1.msra.mxu0 0.0
        %357 = vmatprep.subr.mxu0 0.0
        %358 = vmatpush1.msra.mxu0 0.0
        %359 = vmatprep.subr.mxu0 0.0
        %360 = vmatpush1.msra.mxu0 0.0
        %361 = vmatprep.subr.mxu0 0.0
        %362 = vmatpush1.msra.mxu0 0.0
        %363 = vmatprep.subr.mxu0 0.0
        %364 = vmatpush1.msra.mxu0 0.0
        %365 = vmatprep.subr.mxu0 0.0
        %366 = vmatpush1.msra.mxu0 0.0
        %367 = vmatprep.subr.mxu0 0.0
        %368 = vmatpush1.msra.mxu0 0.0
        %369 = vmatprep.subr.mxu0 0.0
        %370 = vmatpush1.msra.mxu0 0.0
        %371 = vmatprep.subr.mxu0 0.0
        %372 = vmatpush1.msra.mxu0 0.0
        %373 = vmatprep.subr.mxu0 0.0
        %374 = vmatpush1.msra.mxu0 0.0
        %375 = vmatprep.subr.mxu0 0.0
        %376 = vmatpush1.msra.mxu0 0.0
        %377 = vmatprep.subr.mxu0 0.0
        %378 = vmatpush1.msra.mxu0 0.0
        %379 = vmatprep.subr.mxu0 0.0
        %380 = vmatpush1.msra.mxu0 0.0
        %381 = vmatprep.subr.mxu0 0.0
        %382 = vmatpush1.msra.mxu0 0.0
        %383 = vmatprep.subr.mxu0 0.0
        %384 = vmatpush1.msra.mxu0 0.0
        %385 = vmatprep.subr.mxu0 0.0
        %386 = vmatpush1.msra.mxu0 0.0
        %387 = vmatprep.mubr.f32.mxu0 0.0
        %388 = vmatmul.mubr.f32.gmra.mrb[0].mxu0 %v251
        %v389 = vpop.f32.mrb[0].mxu0
        %v390 = vadd.f32 0.0, %v389
        %v391 = vpop.f32.mrb[0].mxu0
        %392 = vdwg.mxu0
        %393 = vrot.lane.b32.xlu0 %v249, 112
        %v394 = vpop.permute.xlu0 %393
        %v395 = vsel %vm250, %v394, 0
        %397 = vmatprep.subr.mxu0 0.0
        %398 = vmatpush1.msra.mxu0 %v216
        %399 = vmatprep.subr.mxu0 0.0
        %400 = vmatpush1.msra.mxu0 %v217
        %401 = vmatprep.subr.mxu0 0.0
        %402 = vmatpush1.msra.mxu0 0.0
        %403 = vmatprep.subr.mxu0 0.0
        %404 = vmatpush1.msra.mxu0 0.0
        %405 = vmatprep.subr.mxu0 0.0
        %406 = vmatpush1.msra.mxu0 0.0
        %407 = vmatprep.subr.mxu0 0.0
        %408 = vmatpush1.msra.mxu0 0.0
        %409 = vmatprep.subr.mxu0 0.0
        %410 = vmatpush1.msra.mxu0 0.0
        %411 = vmatprep.subr.mxu0 0.0
        %412 = vmatpush1.msra.mxu0 0.0
        %413 = vmatprep.subr.mxu0 0.0
        %414 = vmatpush1.msra.mxu0 0.0
        %415 = vmatprep.subr.mxu0 0.0
        %416 = vmatpush1.msra.mxu0 0.0
        %417 = vmatprep.subr.mxu0 0.0
        %418 = vmatpush1.msra.mxu0 0.0
        %419 = vmatprep.subr.mxu0 0.0
        %420 = vmatpush1.msra.mxu0 0.0
        %421 = vmatprep.subr.mxu0 0.0
        %422 = vmatpush1.msra.mxu0 0.0
        %423 = vmatprep.subr.mxu0 0.0
        %424 = vmatpush1.msra.mxu0 0.0
        %425 = vmatprep.subr.mxu0 0.0
        %426 = vmatpush1.msra.mxu0 0.0
        %427 = vmatprep.subr.mxu0 0.0
        %428 = vmatpush1.msra.mxu0 0.0
        %429 = vmatprep.subr.mxu0 0.0
        %430 = vmatpush1.msra.mxu0 0.0
        %431 = vmatprep.subr.mxu0 0.0
        %432 = vmatpush1.msra.mxu0 0.0
        %433 = vmatprep.subr.mxu0 0.0
        %434 = vmatpush1.msra.mxu0 0.0
        %435 = vmatprep.subr.mxu0 0.0
        %436 = vmatpush1.msra.mxu0 0.0
        %437 = vmatprep.subr.mxu0 0.0
        %438 = vmatpush1.msra.mxu0 0.0
        %439 = vmatprep.subr.mxu0 0.0
        %440 = vmatpush1.msra.mxu0 0.0
        %441 = vmatprep.subr.mxu0 0.0
        %442 = vmatpush1.msra.mxu0 0.0
        %443 = vmatprep.subr.mxu0 0.0
        %444 = vmatpush1.msra.mxu0 0.0
        %445 = vmatprep.subr.mxu0 0.0
        %446 = vmatpush1.msra.mxu0 0.0
        %447 = vmatprep.subr.mxu0 0.0
        %448 = vmatpush1.msra.mxu0 0.0
        %449 = vmatprep.subr.mxu0 0.0
        %450 = vmatpush1.msra.mxu0 0.0
        %451 = vmatprep.subr.mxu0 0.0
        %452 = vmatpush1.msra.mxu0 0.0
        %453 = vmatprep.subr.mxu0 0.0
        %454 = vmatpush1.msra.mxu0 0.0
        %455 = vmatprep.subr.mxu0 0.0
        %456 = vmatpush1.msra.mxu0 0.0
        %457 = vmatprep.subr.mxu0 0.0
        %458 = vmatpush1.msra.mxu0 0.0
        %459 = vmatprep.subr.mxu0 0.0
        %460 = vmatpush1.msra.mxu0 0.0
        %461 = vmatprep.mubr.f32.mxu0 0.0
        %462 = vmatmul.mubr.f32.gmra.mrb[0].mxu0 %v395
        %v463 = vpop.f32.mrb[0].mxu0
        %v464 = vadd.f32 0.0, %v463
        %v465 = vpop.f32.mrb[0].mxu0
        %466 = vdwg.mxu0
        %467 = vmatprep.subr.mxu0 0.0
        %468 = vmatpush1.msra.mxu0 %v223
        %469 = vmatprep.subr.mxu0 0.0
        %470 = vmatpush1.msra.mxu0 %v224
        %471 = vmatprep.subr.mxu0 0.0
        %472 = vmatpush1.msra.mxu0 0.0
        %473 = vmatprep.subr.mxu0 0.0
        %474 = vmatpush1.msra.mxu0 0.0
        %475 = vmatprep.subr.mxu0 0.0
        %476 = vmatpush1.msra.mxu0 0.0
        %477 = vmatprep.subr.mxu0 0.0
        %478 = vmatpush1.msra.mxu0 0.0
        %479 = vmatprep.subr.mxu0 0.0
        %480 = vmatpush1.msra.mxu0 0.0
        %481 = vmatprep.subr.mxu0 0.0
        %482 = vmatpush1.msra.mxu0 0.0
        %483 = vmatprep.subr.mxu0 0.0
        %484 = vmatpush1.msra.mxu0 0.0
        %485 = vmatprep.subr.mxu0 0.0
        %486 = vmatpush1.msra.mxu0 0.0
        %487 = vmatprep.subr.mxu0 0.0
        %488 = vmatpush1.msra.mxu0 0.0
        %489 = vmatprep.subr.mxu0 0.0
        %490 = vmatpush1.msra.mxu0 0.0
        %491 = vmatprep.subr.mxu0 0.0
        %492 = vmatpush1.msra.mxu0 0.0
        %493 = vmatprep.subr.mxu0 0.0
        %494 = vmatpush1.msra.mxu0 0.0
        %495 = vmatprep.subr.mxu0 0.0
        %496 = vmatpush1.msra.mxu0 0.0
        %497 = vmatprep.subr.mxu0 0.0
        %498 = vmatpush1.msra.mxu0 0.0
        %499 = vmatprep.subr.mxu0 0.0
        %500 = vmatpush1.msra.mxu0 0.0
        %501 = vmatprep.subr.mxu0 0.0
        %502 = vmatpush1.msra.mxu0 0.0
        %503 = vmatprep.subr.mxu0 0.0
        %504 = vmatpush1.msra.mxu0 0.0
        %505 = vmatprep.subr.mxu0 0.0
        %506 = vmatpush1.msra.mxu0 0.0
        %507 = vmatprep.subr.mxu0 0.0
        %508 = vmatpush1.msra.mxu0 0.0
        %509 = vmatprep.subr.mxu0 0.0
        %510 = vmatpush1.msra.mxu0 0.0
        %511 = vmatprep.subr.mxu0 0.0
        %512 = vmatpush1.msra.mxu0 0.0
        %513 = vmatprep.subr.mxu0 0.0
        %514 = vmatpush1.msra.mxu0 0.0
        %515 = vmatprep.subr.mxu0 0.0
        %516 = vmatpush1.msra.mxu0 0.0
        %517 = vmatprep.subr.mxu0 0.0
        %518 = vmatpush1.msra.mxu0 0.0
        %519 = vmatprep.subr.mxu0 0.0
        %520 = vmatpush1.msra.mxu0 0.0
        %521 = vmatprep.subr.mxu0 0.0
        %522 = vmatpush1.msra.mxu0 0.0
        %523 = vmatprep.subr.mxu0 0.0
        %524 = vmatpush1.msra.mxu0 0.0
        %525 = vmatprep.subr.mxu0 0.0
        %526 = vmatpush1.msra.mxu0 0.0
        %527 = vmatprep.subr.mxu0 0.0
        %528 = vmatpush1.msra.mxu0 0.0
        %529 = vmatprep.subr.mxu0 0.0
        %530 = vmatpush1.msra.mxu0 0.0
        %531 = vmatprep.mubr.f32.mxu0 0.0
        %532 = vmatmul.mubr.f32.gmra.mrb[0].mxu0 %v395
        %v533 = vpop.f32.mrb[0].mxu0
        %v534 = vadd.f32 0.0, %v533
        %v535 = vpop.f32.mrb[0].mxu0
        %536 = vdwg.mxu0
        %vm537 = vcmask 31744
        %v539 = vsel %vm537, %v227, 0
        %vm541 = vcmask 1043456
        %v543 = vsel %vm541, %v390, 0
        %545 = vmatprep.subr.mxu0 0.0
        %546 = vmatpush1.msra.mxu0 %v543
        %547 = vmatprep.subr.mxu0 0.0
        %548 = vmatpush1.msra.mxu0 0.0
        %549 = vmatprep.subr.mxu0 0.0
        %550 = vmatpush1.msra.mxu0 0.0
        %551 = vmatprep.subr.mxu0 0.0
        %552 = vmatpush1.msra.mxu0 0.0
        %553 = vmatprep.subr.mxu0 0.0
        %554 = vmatpush1.msra.mxu0 0.0
        %555 = vmatprep.subr.mxu0 0.0
        %556 = vmatpush1.msra.mxu0 0.0
        %557 = vmatprep.subr.mxu0 0.0
        %558 = vmatpush1.msra.mxu0 0.0
        %559 = vmatprep.subr.mxu0 0.0
        %560 = vmatpush1.msra.mxu0 0.0
        %561 = vmatprep.subr.mxu0 0.0
        %562 = vmatpush1.msra.mxu0 0.0
        %563 = vmatprep.subr.mxu0 0.0
        %564 = vmatpush1.msra.mxu0 0.0
        %565 = vmatprep.subr.mxu0 0.0
        %566 = vmatpush1.msra.mxu0 0.0
        %567 = vmatprep.subr.mxu0 0.0
        %568 = vmatpush1.msra.mxu0 0.0
        %569 = vmatprep.subr.mxu0 0.0
        %570 = vmatpush1.msra.mxu0 0.0
        %571 = vmatprep.subr.mxu0 0.0
        %572 = vmatpush1.msra.mxu0 0.0
        %573 = vmatprep.subr.mxu0 0.0
        %574 = vmatpush1.msra.mxu0 0.0
        %575 = vmatprep.subr.mxu0 0.0
        %576 = vmatpush1.msra.mxu0 0.0
        %577 = vmatprep.subr.mxu0 0.0
        %578 = vmatpush1.msra.mxu0 0.0
        %579 = vmatprep.subr.mxu0 0.0
        %580 = vmatpush1.msra.mxu0 0.0
        %581 = vmatprep.subr.mxu0 0.0
        %582 = vmatpush1.msra.mxu0 0.0
        %583 = vmatprep.subr.mxu0 0.0
        %584 = vmatpush1.msra.mxu0 0.0
        %585 = vmatprep.subr.mxu0 0.0
        %586 = vmatpush1.msra.mxu0 0.0
        %587 = vmatprep.subr.mxu0 0.0
        %588 = vmatpush1.msra.mxu0 0.0
        %589 = vmatprep.subr.mxu0 0.0
        %590 = vmatpush1.msra.mxu0 0.0
        %591 = vmatprep.subr.mxu0 0.0
        %592 = vmatpush1.msra.mxu0 0.0
        %593 = vmatprep.subr.mxu0 0.0
        %594 = vmatpush1.msra.mxu0 0.0
        %595 = vmatprep.subr.mxu0 0.0
        %596 = vmatpush1.msra.mxu0 0.0
        %597 = vmatprep.subr.mxu0 0.0
        %598 = vmatpush1.msra.mxu0 0.0
        %599 = vmatprep.subr.mxu0 0.0
        %600 = vmatpush1.msra.mxu0 0.0
        %601 = vmatprep.subr.mxu0 0.0
        %602 = vmatpush1.msra.mxu0 0.0
        %603 = vmatprep.subr.mxu0 0.0
        %604 = vmatpush1.msra.mxu0 0.0
        %605 = vmatprep.subr.mxu0 0.0
        %606 = vmatpush1.msra.mxu0 0.0
        %607 = vmatprep.subr.mxu0 0.0
        %608 = vmatpush1.msra.mxu0 0.0
        %609 = vmatprep.mubr.f32.mxu0 0.0
        %610 = vmatmul.mubr.f32.gmra.mrb[0].mxu0 %v539
        %v611 = vpop.f32.mrb[0].mxu0
        %v612 = vadd.f32 0.0, %v611
        %v613 = vpop.f32.mrb[0].mxu0
        %614 = vdwg.mxu0
        %v616 = vsel %vm537, %v225, 0
        %v619 = vsel %vm541, %v320, 0
        %621 = vmatprep.subr.mxu0 0.0
        %622 = vmatpush1.msra.mxu0 %v619
        %623 = vmatprep.subr.mxu0 0.0
        %624 = vmatpush1.msra.mxu0 0.0
        %625 = vmatprep.subr.mxu0 0.0
        %626 = vmatpush1.msra.mxu0 0.0
        %627 = vmatprep.subr.mxu0 0.0
        %628 = vmatpush1.msra.mxu0 0.0
        %629 = vmatprep.subr.mxu0 0.0
        %630 = vmatpush1.msra.mxu0 0.0
        %631 = vmatprep.subr.mxu0 0.0
        %632 = vmatpush1.msra.mxu0 0.0
        %633 = vmatprep.subr.mxu0 0.0
        %634 = vmatpush1.msra.mxu0 0.0
        %635 = vmatprep.subr.mxu0 0.0
        %636 = vmatpush1.msra.mxu0 0.0
        %637 = vmatprep.subr.mxu0 0.0
        %638 = vmatpush1.msra.mxu0 0.0
        %639 = vmatprep.subr.mxu0 0.0
        %640 = vmatpush1.msra.mxu0 0.0
        %641 = vmatprep.subr.mxu0 0.0
        %642 = vmatpush1.msra.mxu0 0.0
        %643 = vmatprep.subr.mxu0 0.0
        %644 = vmatpush1.msra.mxu0 0.0
        %645 = vmatprep.subr.mxu0 0.0
        %646 = vmatpush1.msra.mxu0 0.0
        %647 = vmatprep.subr.mxu0 0.0
        %648 = vmatpush1.msra.mxu0 0.0
        %649 = vmatprep.subr.mxu0 0.0
        %650 = vmatpush1.msra.mxu0 0.0
        %651 = vmatprep.subr.mxu0 0.0
        %652 = vmatpush1.msra.mxu0 0.0
        %653 = vmatprep.subr.mxu0 0.0
        %654 = vmatpush1.msra.mxu0 0.0
        %655 = vmatprep.subr.mxu0 0.0
        %656 = vmatpush1.msra.mxu0 0.0
        %657 = vmatprep.subr.mxu0 0.0
        %658 = vmatpush1.msra.mxu0 0.0
        %659 = vmatprep.subr.mxu0 0.0
        %660 = vmatpush1.msra.mxu0 0.0
        %661 = vmatprep.subr.mxu0 0.0
        %662 = vmatpush1.msra.mxu0 0.0
        %663 = vmatprep.subr.mxu0 0.0
        %664 = vmatpush1.msra.mxu0 0.0
        %665 = vmatprep.subr.mxu0 0.0
        %666 = vmatpush1.msra.mxu0 0.0
        %667 = vmatprep.subr.mxu0 0.0
        %668 = vmatpush1.msra.mxu0 0.0
        %669 = vmatprep.subr.mxu0 0.0
        %670 = vmatpush1.msra.mxu0 0.0
        %671 = vmatprep.subr.mxu0 0.0
        %672 = vmatpush1.msra.mxu0 0.0
        %673 = vmatprep.subr.mxu0 0.0
        %674 = vmatpush1.msra.mxu0 0.0
        %675 = vmatprep.subr.mxu0 0.0
        %676 = vmatpush1.msra.mxu0 0.0
        %677 = vmatprep.subr.mxu0 0.0
        %678 = vmatpush1.msra.mxu0 0.0
        %679 = vmatprep.subr.mxu0 0.0
        %680 = vmatpush1.msra.mxu0 0.0
        %681 = vmatprep.subr.mxu0 0.0
        %682 = vmatpush1.msra.mxu0 0.0
        %683 = vmatprep.subr.mxu0 0.0
        %684 = vmatpush1.msra.mxu0 0.0
        %685 = vmatprep.mubr.f32.mxu0 0.0
        %686 = vmatmul.mubr.f32.gmra.mrb[0].mxu0 %v616
        %v687 = vpop.f32.mrb[0].mxu0
        %v688 = vadd.f32 %v612, %v687
        %v689 = vpop.f32.mrb[0].mxu0
        %690 = vdwg.mxu0
        %v692 = vsel %vm537, %v229, 0
        %v695 = vsel %vm541, %v464, 0
        %697 = vmatprep.subr.mxu0 0.0
        %698 = vmatpush1.msra.mxu0 %v695
        %699 = vmatprep.subr.mxu0 0.0
        %700 = vmatpush1.msra.mxu0 0.0
        %701 = vmatprep.subr.mxu0 0.0
        %702 = vmatpush1.msra.mxu0 0.0
        %703 = vmatprep.subr.mxu0 0.0
        %704 = vmatpush1.msra.mxu0 0.0
        %705 = vmatprep.subr.mxu0 0.0
        %706 = vmatpush1.msra.mxu0 0.0
        %707 = vmatprep.subr.mxu0 0.0
        %708 = vmatpush1.msra.mxu0 0.0
        %709 = vmatprep.subr.mxu0 0.0
        %710 = vmatpush1.msra.mxu0 0.0
        %711 = vmatprep.subr.mxu0 0.0
        %712 = vmatpush1.msra.mxu0 0.0
        %713 = vmatprep.subr.mxu0 0.0
        %714 = vmatpush1.msra.mxu0 0.0
        %715 = vmatprep.subr.mxu0 0.0
        %716 = vmatpush1.msra.mxu0 0.0
        %717 = vmatprep.subr.mxu0 0.0
        %718 = vmatpush1.msra.mxu0 0.0
        %719 = vmatprep.subr.mxu0 0.0
        %720 = vmatpush1.msra.mxu0 0.0
        %721 = vmatprep.subr.mxu0 0.0
        %722 = vmatpush1.msra.mxu0 0.0
        %723 = vmatprep.subr.mxu0 0.0
        %724 = vmatpush1.msra.mxu0 0.0
        %725 = vmatprep.subr.mxu0 0.0
        %726 = vmatpush1.msra.mxu0 0.0
        %727 = vmatprep.subr.mxu0 0.0
        %728 = vmatpush1.msra.mxu0 0.0
        %729 = vmatprep.subr.mxu0 0.0
        %730 = vmatpush1.msra.mxu0 0.0
        %731 = vmatprep.subr.mxu0 0.0
        %732 = vmatpush1.msra.mxu0 0.0
        %733 = vmatprep.subr.mxu0 0.0
        %734 = vmatpush1.msra.mxu0 0.0
        %735 = vmatprep.subr.mxu0 0.0
        %736 = vmatpush1.msra.mxu0 0.0
        %737 = vmatprep.subr.mxu0 0.0
        %738 = vmatpush1.msra.mxu0 0.0
        %739 = vmatprep.subr.mxu0 0.0
        %740 = vmatpush1.msra.mxu0 0.0
        %741 = vmatprep.subr.mxu0 0.0
        %742 = vmatpush1.msra.mxu0 0.0
        %743 = vmatprep.subr.mxu0 0.0
        %744 = vmatpush1.msra.mxu0 0.0
        %745 = vmatprep.subr.mxu0 0.0
        %746 = vmatpush1.msra.mxu0 0.0
        %747 = vmatprep.subr.mxu0 0.0
        %748 = vmatpush1.msra.mxu0 0.0
        %749 = vmatprep.subr.mxu0 0.0
        %750 = vmatpush1.msra.mxu0 0.0
        %751 = vmatprep.subr.mxu0 0.0
        %752 = vmatpush1.msra.mxu0 0.0
        %753 = vmatprep.subr.mxu0 0.0
        %754 = vmatpush1.msra.mxu0 0.0
        %755 = vmatprep.subr.mxu0 0.0
        %756 = vmatpush1.msra.mxu0 0.0
        %757 = vmatprep.subr.mxu0 0.0
        %758 = vmatpush1.msra.mxu0 0.0
        %759 = vmatprep.subr.mxu0 0.0
        %760 = vmatpush1.msra.mxu0 0.0
        %761 = vmatprep.mubr.f32.mxu0 0.0
        %762 = vmatmul.mubr.f32.gmra.mrb[0].mxu0 %v692
        %v763 = vpop.f32.mrb[0].mxu0
        %v764 = vadd.f32 0.0, %v763
        %v765 = vpop.f32.mrb[0].mxu0
        %766 = vdwg.mxu0
        %v767 = vadd.f32 %v688, %v764
        %v769 = vsel %vm537, %v231, 0
        %v772 = vsel %vm541, %v534, 0
        %774 = vmatprep.subr.mxu0 0.0
        %775 = vmatpush1.msra.mxu0 %v772
        %776 = vmatprep.subr.mxu0 0.0
        %777 = vmatpush1.msra.mxu0 0.0
        %778 = vmatprep.subr.mxu0 0.0
        %779 = vmatpush1.msra.mxu0 0.0
        %780 = vmatprep.subr.mxu0 0.0
        %781 = vmatpush1.msra.mxu0 0.0
        %782 = vmatprep.subr.mxu0 0.0
        %783 = vmatpush1.msra.mxu0 0.0
        %784 = vmatprep.subr.mxu0 0.0
        %785 = vmatpush1.msra.mxu0 0.0
        %786 = vmatprep.subr.mxu0 0.0
        %787 = vmatpush1.msra.mxu0 0.0
        %788 = vmatprep.subr.mxu0 0.0
        %789 = vmatpush1.msra.mxu0 0.0
        %790 = vmatprep.subr.mxu0 0.0
        %791 = vmatpush1.msra.mxu0 0.0
        %792 = vmatprep.subr.mxu0 0.0
        %793 = vmatpush1.msra.mxu0 0.0
        %794 = vmatprep.subr.mxu0 0.0
        %795 = vmatpush1.msra.mxu0 0.0
        %796 = vmatprep.subr.mxu0 0.0
        %797 = vmatpush1.msra.mxu0 0.0
        %798 = vmatprep.subr.mxu0 0.0
        %799 = vmatpush1.msra.mxu0 0.0
        %800 = vmatprep.subr.mxu0 0.0
        %801 = vmatpush1.msra.mxu0 0.0
        %802 = vmatprep.subr.mxu0 0.0
        %803 = vmatpush1.msra.mxu0 0.0
        %804 = vmatprep.subr.mxu0 0.0
        %805 = vmatpush1.msra.mxu0 0.0
        %806 = vmatprep.subr.mxu0 0.0
        %807 = vmatpush1.msra.mxu0 0.0
        %808 = vmatprep.subr.mxu0 0.0
        %809 = vmatpush1.msra.mxu0 0.0
        %810 = vmatprep.subr.mxu0 0.0
        %811 = vmatpush1.msra.mxu0 0.0
        %812 = vmatprep.subr.mxu0 0.0
        %813 = vmatpush1.msra.mxu0 0.0
        %814 = vmatprep.subr.mxu0 0.0
        %815 = vmatpush1.msra.mxu0 0.0
        %816 = vmatprep.subr.mxu0 0.0
        %817 = vmatpush1.msra.mxu0 0.0
        %818 = vmatprep.subr.mxu0 0.0
        %819 = vmatpush1.msra.mxu0 0.0
        %820 = vmatprep.subr.mxu0 0.0
        %821 = vmatpush1.msra.mxu0 0.0
        %822 = vmatprep.subr.mxu0 0.0
        %823 = vmatpush1.msra.mxu0 0.0
        %824 = vmatprep.subr.mxu0 0.0
        %825 = vmatpush1.msra.mxu0 0.0
        %826 = vmatprep.subr.mxu0 0.0
        %827 = vmatpush1.msra.mxu0 0.0
        %828 = vmatprep.subr.mxu0 0.0
        %829 = vmatpush1.msra.mxu0 0.0
        %830 = vmatprep.subr.mxu0 0.0
        %831 = vmatpush1.msra.mxu0 0.0
        %832 = vmatprep.subr.mxu0 0.0
        %833 = vmatpush1.msra.mxu0 0.0
        %834 = vmatprep.subr.mxu0 0.0
        %835 = vmatpush1.msra.mxu0 0.0
        %836 = vmatprep.subr.mxu0 0.0
        %837 = vmatpush1.msra.mxu0 0.0
        %838 = vmatprep.mubr.f32.mxu0 0.0
        %839 = vmatmul.mubr.f32.gmra.mrb[0].mxu0 %v769
        %v840 = vpop.f32.mrb[0].mxu0
        %v841 = vadd.f32 0.0, %v840
        %v842 = vpop.f32.mrb[0].mxu0
        %843 = vdwg.mxu0
        %v844 = vadd.f32 %v767, %v841
        %846 = vset.pattern.permute.xlu0 0
        %847 = vperm.xlu0 %846, %v232
        %v848 = vpop.permute.xlu0 %847
        %v850 = vadd.f32 %v844, %v848
        %v852 = vcombine.high %v850, %v850
        %v854 = vunpack.c.l.s4 1966171168
        %v855 = vunpack.c.0.s8 %v854
        %v856 = vlaneseq
        %v857 = vshrl.u32 %v856, 7
        %v858 = vsub.s32 %v855, %v857
        %v859 = vrot.slane %v850, %v858
        %v861 = vunpack.c.l.s4 1966171168
        %v862 = vunpack.c.0.s8 %v861
        %v863 = vlaneseq
        %v864 = vshrl.u32 %v863, 7
        %v865 = vsub.s32 %v862, %v864
        %v866 = vrot.slane %v852, %v865
        %v867 = vcombine.high %v859, %v859
        %v868 = vcombine.high %v866, %v866
        %v870 = vunpack.c.l.s4 1966171168
        %v871 = vunpack.c.0.s8 %v870
        %v872 = vlaneseq
        %v873 = vshrl.u32 %v872, 7
        %v874 = vsub.s32 %v871, %v873
        %v875 = vrot.slane %v859, %v874
        %v877 = vunpack.c.l.s4 1966171168
        %v878 = vunpack.c.0.s8 %v877
        %v879 = vlaneseq
        %v880 = vshrl.u32 %v879, 7
        %v881 = vsub.s32 %v878, %v880
        %v882 = vrot.slane %v866, %v881
        %v884 = vunpack.c.l.s4 1966171168
        %v885 = vunpack.c.0.s8 %v884
        %v886 = vlaneseq
        %v887 = vshrl.u32 %v886, 7
        %v888 = vsub.s32 %v885, %v887
        %v889 = vrot.slane %v867, %v888
        %v891 = vunpack.c.l.s4 1966171168
        %v892 = vunpack.c.0.s8 %v891
        %v893 = vlaneseq
        %v894 = vshrl.u32 %v893, 7
        %v895 = vsub.s32 %v892, %v894
        %v896 = vrot.slane %v868, %v895
        %v897 = vcombine.high %v875, %v875
        %v898 = vcombine.high %v882, %v882
        %v899 = vcombine.high %v889, %v889
        %v900 = vcombine.high %v896, %v896
        %vm909 = vcmask 57344
        %910 = vst.msk [vmem:[%s205] sm:$0x1] %vm909, %v875
        %911 = vst.msk [vmem:[%s205 + $0x8] sm:$0x1] %vm909, %v889
        %912 = vst.msk [vmem:[%s205 + $0x10] sm:$0x1] %vm909, %v897
        %913 = vst.msk [vmem:[%s205 + $0x18] sm:$0x1] %vm909, %v899
        %914 = vst.msk [vmem:[%s205 + $0x20] sm:$0x1] %vm909, %v882
        %915 = vst.msk [vmem:[%s205 + $0x28] sm:$0x1] %vm909, %v896
        %916 = vst.msk [vmem:[%s205 + $0x30] sm:$0x1] %vm909, %v898
        %917 = vst.msk [vmem:[%s205 + $0x38] sm:$0x1] %vm909, %v900
        %v918 = vld [vmem:[%s183 + $0x1] sm:$0x1]
        %v919 = vld [vmem:[%s183 + $0x9] sm:$0x1]
        %v920 = vld [vmem:[%s183 + $0x11] sm:$0x1]
        %v921 = vld [vmem:[%s183 + $0x19] sm:$0x1]
        %v926 = vrot.slane %v919, 7
        %v927 = vsel %vm242, %v926, %v918
        %v928 = vrot.slane %v920, 6
        %v929 = vsel %vm245, %v928, %v927
        %v930 = vrot.slane %v921, 5
        %v931 = vsel %vm248, %v930, %v929
        %v932 = vsel %vm250, %v931, 0
        %934 = vmatprep.subr.mxu0 0.0
        %935 = vmatpush1.msra.mxu0 %v216
        %936 = vmatprep.subr.mxu0 0.0
        %937 = vmatpush1.msra.mxu0 %v217
        %938 = vmatprep.subr.mxu0 0.0
        %939 = vmatpush1.msra.mxu0 0.0
        %940 = vmatprep.subr.mxu0 0.0
        %941 = vmatpush1.msra.mxu0 0.0
        %942 = vmatprep.subr.mxu0 0.0
        %943 = vmatpush1.msra.mxu0 0.0
        %944 = vmatprep.subr.mxu0 0.0
        %945 = vmatpush1.msra.mxu0 0.0
        %946 = vmatprep.subr.mxu0 0.0
        %947 = vmatpush1.msra.mxu0 0.0
        %948 = vmatprep.subr.mxu0 0.0
        %949 = vmatpush1.msra.mxu0 0.0
        %950 = vmatprep.subr.mxu0 0.0
        %951 = vmatpush1.msra.mxu0 0.0
        %952 = vmatprep.subr.mxu0 0.0
        %953 = vmatpush1.msra.mxu0 0.0
        %954 = vmatprep.subr.mxu0 0.0
        %955 = vmatpush1.msra.mxu0 0.0
        %956 = vmatprep.subr.mxu0 0.0
        %957 = vmatpush1.msra.mxu0 0.0
        %958 = vmatprep.subr.mxu0 0.0
        %959 = vmatpush1.msra.mxu0 0.0
        %960 = vmatprep.subr.mxu0 0.0
        %961 = vmatpush1.msra.mxu0 0.0
        %962 = vmatprep.subr.mxu0 0.0
        %963 = vmatpush1.msra.mxu0 0.0
        %964 = vmatprep.subr.mxu0 0.0
        %965 = vmatpush1.msra.mxu0 0.0
        %966 = vmatprep.subr.mxu0 0.0
        %967 = vmatpush1.msra.mxu0 0.0
        %968 = vmatprep.subr.mxu0 0.0
        %969 = vmatpush1.msra.mxu0 0.0
        %970 = vmatprep.subr.mxu0 0.0
        %971 = vmatpush1.msra.mxu0 0.0
        %972 = vmatprep.subr.mxu0 0.0
        %973 = vmatpush1.msra.mxu0 0.0
        %974 = vmatprep.subr.mxu0 0.0
        %975 = vmatpush1.msra.mxu0 0.0
        %976 = vmatprep.subr.mxu0 0.0
        %977 = vmatpush1.msra.mxu0 0.0
        %978 = vmatprep.subr.mxu0 0.0
        %979 = vmatpush1.msra.mxu0 0.0
        %980 = vmatprep.subr.mxu0 0.0
        %981 = vmatpush1.msra.mxu0 0.0
        %982 = vmatprep.subr.mxu0 0.0
        %983 = vmatpush1.msra.mxu0 0.0
        %984 = vmatprep.subr.mxu0 0.0
        %985 = vmatpush1.msra.mxu0 0.0
        %986 = vmatprep.subr.mxu0 0.0
        %987 = vmatpush1.msra.mxu0 0.0
        %988 = vmatprep.subr.mxu0 0.0
        %989 = vmatpush1.msra.mxu0 0.0
        %990 = vmatprep.subr.mxu0 0.0
        %991 = vmatpush1.msra.mxu0 0.0
        %992 = vmatprep.subr.mxu0 0.0
        %993 = vmatpush1.msra.mxu0 0.0
        %994 = vmatprep.subr.mxu0 0.0
        %995 = vmatpush1.msra.mxu0 0.0
        %996 = vmatprep.subr.mxu0 0.0
        %997 = vmatpush1.msra.mxu0 0.0
        %998 = vmatprep.mubr.f32.mxu0 0.0
        %999 = vmatmul.mubr.f32.gmra.mrb[0].mxu0 %v932
        %v1000 = vpop.f32.mrb[0].mxu0
        %v1001 = vadd.f32 0.0, %v1000
        %v1002 = vpop.f32.mrb[0].mxu0
        %1003 = vdwg.mxu0
        %1004 = vmatprep.subr.mxu0 0.0
        %1005 = vmatpush1.msra.mxu0 %v223
        %1006 = vmatprep.subr.mxu0 0.0
        %1007 = vmatpush1.msra.mxu0 %v224
        %1008 = vmatprep.subr.mxu0 0.0
        %1009 = vmatpush1.msra.mxu0 0.0
        %1010 = vmatprep.subr.mxu0 0.0
        %1011 = vmatpush1.msra.mxu0 0.0
        %1012 = vmatprep.subr.mxu0 0.0
        %1013 = vmatpush1.msra.mxu0 0.0
        %1014 = vmatprep.subr.mxu0 0.0
        %1015 = vmatpush1.msra.mxu0 0.0
        %1016 = vmatprep.subr.mxu0 0.0
        %1017 = vmatpush1.msra.mxu0 0.0
        %1018 = vmatprep.subr.mxu0 0.0
        %1019 = vmatpush1.msra.mxu0 0.0
        %1020 = vmatprep.subr.mxu0 0.0
        %1021 = vmatpush1.msra.mxu0 0.0
        %1022 = vmatprep.subr.mxu0 0.0
        %1023 = vmatpush1.msra.mxu0 0.0
        %1024 = vmatprep.subr.mxu0 0.0
        %1025 = vmatpush1.msra.mxu0 0.0
        %1026 = vmatprep.subr.mxu0 0.0
        %1027 = vmatpush1.msra.mxu0 0.0
        %1028 = vmatprep.subr.mxu0 0.0
        %1029 = vmatpush1.msra.mxu0 0.0
        %1030 = vmatprep.subr.mxu0 0.0
        %1031 = vmatpush1.msra.mxu0 0.0
        %1032 = vmatprep.subr.mxu0 0.0
        %1033 = vmatpush1.msra.mxu0 0.0
        %1034 = vmatprep.subr.mxu0 0.0
        %1035 = vmatpush1.msra.mxu0 0.0
        %1036 = vmatprep.subr.mxu0 0.0
        %1037 = vmatpush1.msra.mxu0 0.0
        %1038 = vmatprep.subr.mxu0 0.0
        %1039 = vmatpush1.msra.mxu0 0.0
        %1040 = vmatprep.subr.mxu0 0.0
        %1041 = vmatpush1.msra.mxu0 0.0
        %1042 = vmatprep.subr.mxu0 0.0
        %1043 = vmatpush1.msra.mxu0 0.0
        %1044 = vmatprep.subr.mxu0 0.0
        %1045 = vmatpush1.msra.mxu0 0.0
        %1046 = vmatprep.subr.mxu0 0.0
        %1047 = vmatpush1.msra.mxu0 0.0
        %1048 = vmatprep.subr.mxu0 0.0
        %1049 = vmatpush1.msra.mxu0 0.0
        %1050 = vmatprep.subr.mxu0 0.0
        %1051 = vmatpush1.msra.mxu0 0.0
        %1052 = vmatprep.subr.mxu0 0.0
        %1053 = vmatpush1.msra.mxu0 0.0
        %1054 = vmatprep.subr.mxu0 0.0
        %1055 = vmatpush1.msra.mxu0 0.0
        %1056 = vmatprep.subr.mxu0 0.0
        %1057 = vmatpush1.msra.mxu0 0.0
        %1058 = vmatprep.subr.mxu0 0.0
        %1059 = vmatpush1.msra.mxu0 0.0
        %1060 = vmatprep.subr.mxu0 0.0
        %1061 = vmatpush1.msra.mxu0 0.0
        %1062 = vmatprep.subr.mxu0 0.0
        %1063 = vmatpush1.msra.mxu0 0.0
        %1064 = vmatprep.subr.mxu0 0.0
        %1065 = vmatpush1.msra.mxu0 0.0
        %1066 = vmatprep.subr.mxu0 0.0
        %1067 = vmatpush1.msra.mxu0 0.0
        %1068 = vmatprep.mubr.f32.mxu0 0.0
        %1069 = vmatmul.mubr.f32.gmra.mrb[0].mxu0 %v932
        %v1070 = vpop.f32.mrb[0].mxu0
        %v1071 = vadd.f32 0.0, %v1070
        %v1072 = vpop.f32.mrb[0].mxu0
        %1073 = vdwg.mxu0
        %1074 = vrot.lane.b32.xlu0 %v931, 112
        %v1075 = vpop.permute.xlu0 %1074
        %v1076 = vsel %vm250, %v1075, 0
        %1078 = vmatprep.subr.mxu0 0.0
        %1079 = vmatpush1.msra.mxu0 %v216
        %1080 = vmatprep.subr.mxu0 0.0
        %1081 = vmatpush1.msra.mxu0 %v217
        %1082 = vmatprep.subr.mxu0 0.0
        %1083 = vmatpush1.msra.mxu0 0.0
        %1084 = vmatprep.subr.mxu0 0.0
        %1085 = vmatpush1.msra.mxu0 0.0
        %1086 = vmatprep.subr.mxu0 0.0
        %1087 = vmatpush1.msra.mxu0 0.0
        %1088 = vmatprep.subr.mxu0 0.0
        %1089 = vmatpush1.msra.mxu0 0.0
        %1090 = vmatprep.subr.mxu0 0.0
        %1091 = vmatpush1.msra.mxu0 0.0
        %1092 = vmatprep.subr.mxu0 0.0
        %1093 = vmatpush1.msra.mxu0 0.0
        %1094 = vmatprep.subr.mxu0 0.0
        %1095 = vmatpush1.msra.mxu0 0.0
        %1096 = vmatprep.subr.mxu0 0.0
        %1097 = vmatpush1.msra.mxu0 0.0
        %1098 = vmatprep.subr.mxu0 0.0
        %1099 = vmatpush1.msra.mxu0 0.0
        %1100 = vmatprep.subr.mxu0 0.0
        %1101 = vmatpush1.msra.mxu0 0.0
        %1102 = vmatprep.subr.mxu0 0.0
        %1103 = vmatpush1.msra.mxu0 0.0
        %1104 = vmatprep.subr.mxu0 0.0
        %1105 = vmatpush1.msra.mxu0 0.0
        %1106 = vmatprep.subr.mxu0 0.0
        %1107 = vmatpush1.msra.mxu0 0.0
        %1108 = vmatprep.subr.mxu0 0.0
        %1109 = vmatpush1.msra.mxu0 0.0
        %1110 = vmatprep.subr.mxu0 0.0
        %1111 = vmatpush1.msra.mxu0 0.0
        %1112 = vmatprep.subr.mxu0 0.0
        %1113 = vmatpush1.msra.mxu0 0.0
        %1114 = vmatprep.subr.mxu0 0.0
        %1115 = vmatpush1.msra.mxu0 0.0
        %1116 = vmatprep.subr.mxu0 0.0
        %1117 = vmatpush1.msra.mxu0 0.0
        %1118 = vmatprep.subr.mxu0 0.0
        %1119 = vmatpush1.msra.mxu0 0.0
        %1120 = vmatprep.subr.mxu0 0.0
        %1121 = vmatpush1.msra.mxu0 0.0
        %1122 = vmatprep.subr.mxu0 0.0
        %1123 = vmatpush1.msra.mxu0 0.0
        %1124 = vmatprep.subr.mxu0 0.0
        %1125 = vmatpush1.msra.mxu0 0.0
        %1126 = vmatprep.subr.mxu0 0.0
        %1127 = vmatpush1.msra.mxu0 0.0
        %1128 = vmatprep.subr.mxu0 0.0
        %1129 = vmatpush1.msra.mxu0 0.0
        %1130 = vmatprep.subr.mxu0 0.0
        %1131 = vmatpush1.msra.mxu0 0.0
        %1132 = vmatprep.subr.mxu0 0.0
        %1133 = vmatpush1.msra.mxu0 0.0
        %1134 = vmatprep.subr.mxu0 0.0
        %1135 = vmatpush1.msra.mxu0 0.0
        %1136 = vmatprep.subr.mxu0 0.0
        %1137 = vmatpush1.msra.mxu0 0.0
        %1138 = vmatprep.subr.mxu0 0.0
        %1139 = vmatpush1.msra.mxu0 0.0
        %1140 = vmatprep.subr.mxu0 0.0
        %1141 = vmatpush1.msra.mxu0 0.0
        %1142 = vmatprep.mubr.f32.mxu0 0.0
        %1143 = vmatmul.mubr.f32.gmra.mrb[0].mxu0 %v1076
        %v1144 = vpop.f32.mrb[0].mxu0
        %v1145 = vadd.f32 0.0, %v1144
        %v1146 = vpop.f32.mrb[0].mxu0
        %1147 = vdwg.mxu0
        %1148 = vmatprep.subr.mxu0 0.0
        %1149 = vmatpush1.msra.mxu0 %v223
        %1150 = vmatprep.subr.mxu0 0.0
        %1151 = vmatpush1.msra.mxu0 %v224
        %1152 = vmatprep.subr.mxu0 0.0
        %1153 = vmatpush1.msra.mxu0 0.0
        %1154 = vmatprep.subr.mxu0 0.0
        %1155 = vmatpush1.msra.mxu0 0.0
        %1156 = vmatprep.subr.mxu0 0.0
        %1157 = vmatpush1.msra.mxu0 0.0
        %1158 = vmatprep.subr.mxu0 0.0
        %1159 = vmatpush1.msra.mxu0 0.0
        %1160 = vmatprep.subr.mxu0 0.0
        %1161 = vmatpush1.msra.mxu0 0.0
        %1162 = vmatprep.subr.mxu0 0.0
        %1163 = vmatpush1.msra.mxu0 0.0
        %1164 = vmatprep.subr.mxu0 0.0
        %1165 = vmatpush1.msra.mxu0 0.0
        %1166 = vmatprep.subr.mxu0 0.0
        %1167 = vmatpush1.msra.mxu0 0.0
        %1168 = vmatprep.subr.mxu0 0.0
        %1169 = vmatpush1.msra.mxu0 0.0
        %1170 = vmatprep.subr.mxu0 0.0
        %1171 = vmatpush1.msra.mxu0 0.0
        %1172 = vmatprep.subr.mxu0 0.0
        %1173 = vmatpush1.msra.mxu0 0.0
        %1174 = vmatprep.subr.mxu0 0.0
        %1175 = vmatpush1.msra.mxu0 0.0
        %1176 = vmatprep.subr.mxu0 0.0
        %1177 = vmatpush1.msra.mxu0 0.0
        %1178 = vmatprep.subr.mxu0 0.0
        %1179 = vmatpush1.msra.mxu0 0.0
        %1180 = vmatprep.subr.mxu0 0.0
        %1181 = vmatpush1.msra.mxu0 0.0
        %1182 = vmatprep.subr.mxu0 0.0
        %1183 = vmatpush1.msra.mxu0 0.0
        %1184 = vmatprep.subr.mxu0 0.0
        %1185 = vmatpush1.msra.mxu0 0.0
        %1186 = vmatprep.subr.mxu0 0.0
        %1187 = vmatpush1.msra.mxu0 0.0
        %1188 = vmatprep.subr.mxu0 0.0
        %1189 = vmatpush1.msra.mxu0 0.0
        %1190 = vmatprep.subr.mxu0 0.0
        %1191 = vmatpush1.msra.mxu0 0.0
        %1192 = vmatprep.subr.mxu0 0.0
        %1193 = vmatpush1.msra.mxu0 0.0
        %1194 = vmatprep.subr.mxu0 0.0
        %1195 = vmatpush1.msra.mxu0 0.0
        %1196 = vmatprep.subr.mxu0 0.0
        %1197 = vmatpush1.msra.mxu0 0.0
        %1198 = vmatprep.subr.mxu0 0.0
        %1199 = vmatpush1.msra.mxu0 0.0
        %1200 = vmatprep.subr.mxu0 0.0
        %1201 = vmatpush1.msra.mxu0 0.0
        %1202 = vmatprep.subr.mxu0 0.0
        %1203 = vmatpush1.msra.mxu0 0.0
        %1204 = vmatprep.subr.mxu0 0.0
        %1205 = vmatpush1.msra.mxu0 0.0
        %1206 = vmatprep.subr.mxu0 0.0
        %1207 = vmatpush1.msra.mxu0 0.0
        %1208 = vmatprep.subr.mxu0 0.0
        %1209 = vmatpush1.msra.mxu0 0.0
        %1210 = vmatprep.subr.mxu0 0.0
        %1211 = vmatpush1.msra.mxu0 0.0
        %1212 = vmatprep.mubr.f32.mxu0 0.0
        %1213 = vmatmul.mubr.f32.gmra.mrb[0].mxu0 %v1076
        %v1214 = vpop.f32.mrb[0].mxu0
        %v1215 = vadd.f32 0.0, %v1214
        %v1216 = vpop.f32.mrb[0].mxu0
        %1217 = vdwg.mxu0
        %v1219 = vsel %vm541, %v1071, 0
        %1221 = vmatprep.subr.mxu0 0.0
        %1222 = vmatpush1.msra.mxu0 %v1219
        %1223 = vmatprep.subr.mxu0 0.0
        %1224 = vmatpush1.msra.mxu0 0.0
        %1225 = vmatprep.subr.mxu0 0.0
        %1226 = vmatpush1.msra.mxu0 0.0
        %1227 = vmatprep.subr.mxu0 0.0
        %1228 = vmatpush1.msra.mxu0 0.0
        %1229 = vmatprep.subr.mxu0 0.0
        %1230 = vmatpush1.msra.mxu0 0.0
        %1231 = vmatprep.subr.mxu0 0.0
        %1232 = vmatpush1.msra.mxu0 0.0
        %1233 = vmatprep.subr.mxu0 0.0
        %1234 = vmatpush1.msra.mxu0 0.0
        %1235 = vmatprep.subr.mxu0 0.0
        %1236 = vmatpush1.msra.mxu0 0.0
        %1237 = vmatprep.subr.mxu0 0.0
        %1238 = vmatpush1.msra.mxu0 0.0
        %1239 = vmatprep.subr.mxu0 0.0
        %1240 = vmatpush1.msra.mxu0 0.0
        %1241 = vmatprep.subr.mxu0 0.0
        %1242 = vmatpush1.msra.mxu0 0.0
        %1243 = vmatprep.subr.mxu0 0.0
        %1244 = vmatpush1.msra.mxu0 0.0
        %1245 = vmatprep.subr.mxu0 0.0
        %1246 = vmatpush1.msra.mxu0 0.0
        %1247 = vmatprep.subr.mxu0 0.0
        %1248 = vmatpush1.msra.mxu0 0.0
        %1249 = vmatprep.subr.mxu0 0.0
        %1250 = vmatpush1.msra.mxu0 0.0
        %1251 = vmatprep.subr.mxu0 0.0
        %1252 = vmatpush1.msra.mxu0 0.0
        %1253 = vmatprep.subr.mxu0 0.0
        %1254 = vmatpush1.msra.mxu0 0.0
        %1255 = vmatprep.subr.mxu0 0.0
        %1256 = vmatpush1.msra.mxu0 0.0
        %1257 = vmatprep.subr.mxu0 0.0
        %1258 = vmatpush1.msra.mxu0 0.0
        %1259 = vmatprep.subr.mxu0 0.0
        %1260 = vmatpush1.msra.mxu0 0.0
        %1261 = vmatprep.subr.mxu0 0.0
        %1262 = vmatpush1.msra.mxu0 0.0
        %1263 = vmatprep.subr.mxu0 0.0
        %1264 = vmatpush1.msra.mxu0 0.0
        %1265 = vmatprep.subr.mxu0 0.0
        %1266 = vmatpush1.msra.mxu0 0.0
        %1267 = vmatprep.subr.mxu0 0.0
        %1268 = vmatpush1.msra.mxu0 0.0
        %1269 = vmatprep.subr.mxu0 0.0
        %1270 = vmatpush1.msra.mxu0 0.0
        %1271 = vmatprep.subr.mxu0 0.0
        %1272 = vmatpush1.msra.mxu0 0.0
        %1273 = vmatprep.subr.mxu0 0.0
        %1274 = vmatpush1.msra.mxu0 0.0
        %1275 = vmatprep.subr.mxu0 0.0
        %1276 = vmatpush1.msra.mxu0 0.0
        %1277 = vmatprep.subr.mxu0 0.0
        %1278 = vmatpush1.msra.mxu0 0.0
        %1279 = vmatprep.subr.mxu0 0.0
        %1280 = vmatpush1.msra.mxu0 0.0
        %1281 = vmatprep.subr.mxu0 0.0
        %1282 = vmatpush1.msra.mxu0 0.0
        %1283 = vmatprep.subr.mxu0 0.0
        %1284 = vmatpush1.msra.mxu0 0.0
        %1285 = vmatprep.mubr.f32.mxu0 0.0
        %1286 = vmatmul.mubr.f32.gmra.mrb[0].mxu0 %v539
        %v1287 = vpop.f32.mrb[0].mxu0
        %v1288 = vadd.f32 0.0, %v1287
        %v1289 = vpop.f32.mrb[0].mxu0
        %1290 = vdwg.mxu0
        %v1292 = vsel %vm541, %v1001, 0
        %1294 = vmatprep.subr.mxu0 0.0
        %1295 = vmatpush1.msra.mxu0 %v1292
        %1296 = vmatprep.subr.mxu0 0.0
        %1297 = vmatpush1.msra.mxu0 0.0
        %1298 = vmatprep.subr.mxu0 0.0
        %1299 = vmatpush1.msra.mxu0 0.0
        %1300 = vmatprep.subr.mxu0 0.0
        %1301 = vmatpush1.msra.mxu0 0.0
        %1302 = vmatprep.subr.mxu0 0.0
        %1303 = vmatpush1.msra.mxu0 0.0
        %1304 = vmatprep.subr.mxu0 0.0
        %1305 = vmatpush1.msra.mxu0 0.0
        %1306 = vmatprep.subr.mxu0 0.0
        %1307 = vmatpush1.msra.mxu0 0.0
        %1308 = vmatprep.subr.mxu0 0.0
        %1309 = vmatpush1.msra.mxu0 0.0
        %1310 = vmatprep.subr.mxu0 0.0
        %1311 = vmatpush1.msra.mxu0 0.0
        %1312 = vmatprep.subr.mxu0 0.0
        %1313 = vmatpush1.msra.mxu0 0.0
        %1314 = vmatprep.subr.mxu0 0.0
        %1315 = vmatpush1.msra.mxu0 0.0
        %1316 = vmatprep.subr.mxu0 0.0
        %1317 = vmatpush1.msra.mxu0 0.0
        %1318 = vmatprep.subr.mxu0 0.0
        %1319 = vmatpush1.msra.mxu0 0.0
        %1320 = vmatprep.subr.mxu0 0.0
        %1321 = vmatpush1.msra.mxu0 0.0
        %1322 = vmatprep.subr.mxu0 0.0
        %1323 = vmatpush1.msra.mxu0 0.0
        %1324 = vmatprep.subr.mxu0 0.0
        %1325 = vmatpush1.msra.mxu0 0.0
        %1326 = vmatprep.subr.mxu0 0.0
        %1327 = vmatpush1.msra.mxu0 0.0
        %1328 = vmatprep.subr.mxu0 0.0
        %1329 = vmatpush1.msra.mxu0 0.0
        %1330 = vmatprep.subr.mxu0 0.0
        %1331 = vmatpush1.msra.mxu0 0.0
        %1332 = vmatprep.subr.mxu0 0.0
        %1333 = vmatpush1.msra.mxu0 0.0
        %1334 = vmatprep.subr.mxu0 0.0
        %1335 = vmatpush1.msra.mxu0 0.0
        %1336 = vmatprep.subr.mxu0 0.0
        %1337 = vmatpush1.msra.mxu0 0.0
        %1338 = vmatprep.subr.mxu0 0.0
        %1339 = vmatpush1.msra.mxu0 0.0
        %1340 = vmatprep.subr.mxu0 0.0
        %1341 = vmatpush1.msra.mxu0 0.0
        %1342 = vmatprep.subr.mxu0 0.0
        %1343 = vmatpush1.msra.mxu0 0.0
        %1344 = vmatprep.subr.mxu0 0.0
        %1345 = vmatpush1.msra.mxu0 0.0
        %1346 = vmatprep.subr.mxu0 0.0
        %1347 = vmatpush1.msra.mxu0 0.0
        %1348 = vmatprep.subr.mxu0 0.0
        %1349 = vmatpush1.msra.mxu0 0.0
        %1350 = vmatprep.subr.mxu0 0.0
        %1351 = vmatpush1.msra.mxu0 0.0
        %1352 = vmatprep.subr.mxu0 0.0
        %1353 = vmatpush1.msra.mxu0 0.0
        %1354 = vmatprep.subr.mxu0 0.0
        %1355 = vmatpush1.msra.mxu0 0.0
        %1356 = vmatprep.subr.mxu0 0.0
        %1357 = vmatpush1.msra.mxu0 0.0
        %1358 = vmatprep.mubr.f32.mxu0 0.0
        %1359 = vmatmul.mubr.f32.gmra.mrb[0].mxu0 %v616
        %v1360 = vpop.f32.mrb[0].mxu0
        %v1361 = vadd.f32 %v1288, %v1360
        %v1362 = vpop.f32.mrb[0].mxu0
        %1363 = vdwg.mxu0
        %v1365 = vsel %vm541, %v1145, 0
        %1367 = vmatprep.subr.mxu0 0.0
        %1368 = vmatpush1.msra.mxu0 %v1365
        %1369 = vmatprep.subr.mxu0 0.0
        %1370 = vmatpush1.msra.mxu0 0.0
        %1371 = vmatprep.subr.mxu0 0.0
        %1372 = vmatpush1.msra.mxu0 0.0
        %1373 = vmatprep.subr.mxu0 0.0
        %1374 = vmatpush1.msra.mxu0 0.0
        %1375 = vmatprep.subr.mxu0 0.0
        %1376 = vmatpush1.msra.mxu0 0.0
        %1377 = vmatprep.subr.mxu0 0.0
        %1378 = vmatpush1.msra.mxu0 0.0
        %1379 = vmatprep.subr.mxu0 0.0
        %1380 = vmatpush1.msra.mxu0 0.0
        %1381 = vmatprep.subr.mxu0 0.0
        %1382 = vmatpush1.msra.mxu0 0.0
        %1383 = vmatprep.subr.mxu0 0.0
        %1384 = vmatpush1.msra.mxu0 0.0
        %1385 = vmatprep.subr.mxu0 0.0
        %1386 = vmatpush1.msra.mxu0 0.0
        %1387 = vmatprep.subr.mxu0 0.0
        %1388 = vmatpush1.msra.mxu0 0.0
        %1389 = vmatprep.subr.mxu0 0.0
        %1390 = vmatpush1.msra.mxu0 0.0
        %1391 = vmatprep.subr.mxu0 0.0
        %1392 = vmatpush1.msra.mxu0 0.0
        %1393 = vmatprep.subr.mxu0 0.0
        %1394 = vmatpush1.msra.mxu0 0.0
        %1395 = vmatprep.subr.mxu0 0.0
        %1396 = vmatpush1.msra.mxu0 0.0
        %1397 = vmatprep.subr.mxu0 0.0
        %1398 = vmatpush1.msra.mxu0 0.0
        %1399 = vmatprep.subr.mxu0 0.0
        %1400 = vmatpush1.msra.mxu0 0.0
        %1401 = vmatprep.subr.mxu0 0.0
        %1402 = vmatpush1.msra.mxu0 0.0
        %1403 = vmatprep.subr.mxu0 0.0
        %1404 = vmatpush1.msra.mxu0 0.0
        %1405 = vmatprep.subr.mxu0 0.0
        %1406 = vmatpush1.msra.mxu0 0.0
        %1407 = vmatprep.subr.mxu0 0.0
        %1408 = vmatpush1.msra.mxu0 0.0
        %1409 = vmatprep.subr.mxu0 0.0
        %1410 = vmatpush1.msra.mxu0 0.0
        %1411 = vmatprep.subr.mxu0 0.0
        %1412 = vmatpush1.msra.mxu0 0.0
        %1413 = vmatprep.subr.mxu0 0.0
        %1414 = vmatpush1.msra.mxu0 0.0
        %1415 = vmatprep.subr.mxu0 0.0
        %1416 = vmatpush1.msra.mxu0 0.0
        %1417 = vmatprep.subr.mxu0 0.0
        %1418 = vmatpush1.msra.mxu0 0.0
        %1419 = vmatprep.subr.mxu0 0.0
        %1420 = vmatpush1.msra.mxu0 0.0
        %1421 = vmatprep.subr.mxu0 0.0
        %1422 = vmatpush1.msra.mxu0 0.0
        %1423 = vmatprep.subr.mxu0 0.0
        %1424 = vmatpush1.msra.mxu0 0.0
        %1425 = vmatprep.subr.mxu0 0.0
        %1426 = vmatpush1.msra.mxu0 0.0
        %1427 = vmatprep.subr.mxu0 0.0
        %1428 = vmatpush1.msra.mxu0 0.0
        %1429 = vmatprep.subr.mxu0 0.0
        %1430 = vmatpush1.msra.mxu0 0.0
        %1431 = vmatprep.mubr.f32.mxu0 0.0
        %1432 = vmatmul.mubr.f32.gmra.mrb[0].mxu0 %v692
        %v1433 = vpop.f32.mrb[0].mxu0
        %v1434 = vadd.f32 0.0, %v1433
        %v1435 = vpop.f32.mrb[0].mxu0
        %1436 = vdwg.mxu0
        %v1437 = vadd.f32 %v1361, %v1434
        %v1439 = vsel %vm541, %v1215, 0
        %1441 = vmatprep.subr.mxu0 0.0
        %1442 = vmatpush1.msra.mxu0 %v1439
        %1443 = vmatprep.subr.mxu0 0.0
        %1444 = vmatpush1.msra.mxu0 0.0
        %1445 = vmatprep.subr.mxu0 0.0
        %1446 = vmatpush1.msra.mxu0 0.0
        %1447 = vmatprep.subr.mxu0 0.0
        %1448 = vmatpush1.msra.mxu0 0.0
        %1449 = vmatprep.subr.mxu0 0.0
        %1450 = vmatpush1.msra.mxu0 0.0
        %1451 = vmatprep.subr.mxu0 0.0
        %1452 = vmatpush1.msra.mxu0 0.0
        %1453 = vmatprep.subr.mxu0 0.0
        %1454 = vmatpush1.msra.mxu0 0.0
        %1455 = vmatprep.subr.mxu0 0.0
        %1456 = vmatpush1.msra.mxu0 0.0
        %1457 = vmatprep.subr.mxu0 0.0
        %1458 = vmatpush1.msra.mxu0 0.0
        %1459 = vmatprep.subr.mxu0 0.0
        %1460 = vmatpush1.msra.mxu0 0.0
        %1461 = vmatprep.subr.mxu0 0.0
        %1462 = vmatpush1.msra.mxu0 0.0
        %1463 = vmatprep.subr.mxu0 0.0
        %1464 = vmatpush1.msra.mxu0 0.0
        %1465 = vmatprep.subr.mxu0 0.0
        %1466 = vmatpush1.msra.mxu0 0.0
        %1467 = vmatprep.subr.mxu0 0.0
        %1468 = vmatpush1.msra.mxu0 0.0
        %1469 = vmatprep.subr.mxu0 0.0
        %1470 = vmatpush1.msra.mxu0 0.0
        %1471 = vmatprep.subr.mxu0 0.0
        %1472 = vmatpush1.msra.mxu0 0.0
        %1473 = vmatprep.subr.mxu0 0.0
        %1474 = vmatpush1.msra.mxu0 0.0
        %1475 = vmatprep.subr.mxu0 0.0
        %1476 = vmatpush1.msra.mxu0 0.0
        %1477 = vmatprep.subr.mxu0 0.0
        %1478 = vmatpush1.msra.mxu0 0.0
        %1479 = vmatprep.subr.mxu0 0.0
        %1480 = vmatpush1.msra.mxu0 0.0
        %1481 = vmatprep.subr.mxu0 0.0
        %1482 = vmatpush1.msra.mxu0 0.0
        %1483 = vmatprep.subr.mxu0 0.0
        %1484 = vmatpush1.msra.mxu0 0.0
        %1485 = vmatprep.subr.mxu0 0.0
        %1486 = vmatpush1.msra.mxu0 0.0
        %1487 = vmatprep.subr.mxu0 0.0
        %1488 = vmatpush1.msra.mxu0 0.0
        %1489 = vmatprep.subr.mxu0 0.0
        %1490 = vmatpush1.msra.mxu0 0.0
        %1491 = vmatprep.subr.mxu0 0.0
        %1492 = vmatpush1.msra.mxu0 0.0
        %1493 = vmatprep.subr.mxu0 0.0
        %1494 = vmatpush1.msra.mxu0 0.0
        %1495 = vmatprep.subr.mxu0 0.0
        %1496 = vmatpush1.msra.mxu0 0.0
        %1497 = vmatprep.subr.mxu0 0.0
        %1498 = vmatpush1.msra.mxu0 0.0
        %1499 = vmatprep.subr.mxu0 0.0
        %1500 = vmatpush1.msra.mxu0 0.0
        %1501 = vmatprep.subr.mxu0 0.0
        %1502 = vmatpush1.msra.mxu0 0.0
        %1503 = vmatprep.subr.mxu0 0.0
        %1504 = vmatpush1.msra.mxu0 0.0
        %1505 = vmatprep.mubr.f32.mxu0 0.0
        %1506 = vmatmul.mubr.f32.gmra.mrb[0].mxu0 %v769
        %v1507 = vpop.f32.mrb[0].mxu0
        %v1508 = vadd.f32 0.0, %v1507
        %v1509 = vpop.f32.mrb[0].mxu0
        %1510 = vdwg.mxu0
        %v1511 = vadd.f32 %v1437, %v1508
        %v1512 = vadd.f32 %v1511, %v848
        %v1514 = vcombine.high %v1512, %v1512
        %v1516 = vunpack.c.l.s4 1966171168
        %v1517 = vunpack.c.0.s8 %v1516
        %v1518 = vlaneseq
        %v1519 = vshrl.u32 %v1518, 7
        %v1520 = vsub.s32 %v1517, %v1519
        %v1521 = vrot.slane %v1512, %v1520
        %v1523 = vunpack.c.l.s4 1966171168
        %v1524 = vunpack.c.0.s8 %v1523
        %v1525 = vlaneseq
        %v1526 = vshrl.u32 %v1525, 7
        %v1527 = vsub.s32 %v1524, %v1526
        %v1528 = vrot.slane %v1514, %v1527
        %v1529 = vcombine.high %v1521, %v1521
        %v1530 = vcombine.high %v1528, %v1528
        %v1532 = vunpack.c.l.s4 1966171168
        %v1533 = vunpack.c.0.s8 %v1532
        %v1534 = vlaneseq
        %v1535 = vshrl.u32 %v1534, 7
        %v1536 = vsub.s32 %v1533, %v1535
        %v1537 = vrot.slane %v1521, %v1536
        %v1539 = vunpack.c.l.s4 1966171168
        %v1540 = vunpack.c.0.s8 %v1539
        %v1541 = vlaneseq
        %v1542 = vshrl.u32 %v1541, 7
        %v1543 = vsub.s32 %v1540, %v1542
        %v1544 = vrot.slane %v1528, %v1543
        %v1546 = vunpack.c.l.s4 1966171168
        %v1547 = vunpack.c.0.s8 %v1546
        %v1548 = vlaneseq
        %v1549 = vshrl.u32 %v1548, 7
        %v1550 = vsub.s32 %v1547, %v1549
        %v1551 = vrot.slane %v1529, %v1550
        %v1553 = vunpack.c.l.s4 1966171168
        %v1554 = vunpack.c.0.s8 %v1553
        %v1555 = vlaneseq
        %v1556 = vshrl.u32 %v1555, 7
        %v1557 = vsub.s32 %v1554, %v1556
        %v1558 = vrot.slane %v1530, %v1557
        %v1559 = vcombine.high %v1537, %v1537
        %v1560 = vcombine.high %v1544, %v1544
        %v1561 = vcombine.high %v1551, %v1551
        %v1562 = vcombine.high %v1558, %v1558
        %1571 = vst.msk [vmem:[%s205 + $0x1] sm:$0x1] %vm909, %v1537
        %1572 = vst.msk [vmem:[%s205 + $0x9] sm:$0x1] %vm909, %v1551
        %1573 = vst.msk [vmem:[%s205 + $0x11] sm:$0x1] %vm909, %v1559
        %1574 = vst.msk [vmem:[%s205 + $0x19] sm:$0x1] %vm909, %v1561
        %1575 = vst.msk [vmem:[%s205 + $0x21] sm:$0x1] %vm909, %v1544
        %1576 = vst.msk [vmem:[%s205 + $0x29] sm:$0x1] %vm909, %v1558
        %1577 = vst.msk [vmem:[%s205 + $0x31] sm:$0x1] %vm909, %v1560
        %1578 = vst.msk [vmem:[%s205 + $0x39] sm:$0x1] %vm909, %v1562
        %v1579 = vld [vmem:[%s183 + $0x2] sm:$0x1]
        %v1580 = vld [vmem:[%s183 + $0xa] sm:$0x1]
        %v1581 = vld [vmem:[%s183 + $0x12] sm:$0x1]
        %v1582 = vld [vmem:[%s183 + $0x1a] sm:$0x1]
        %v1587 = vrot.slane %v1580, 7
        %v1588 = vsel %vm242, %v1587, %v1579
        %v1589 = vrot.slane %v1581, 6
        %v1590 = vsel %vm245, %v1589, %v1588
        %v1591 = vrot.slane %v1582, 5
        %v1592 = vsel %vm248, %v1591, %v1590
        %v1593 = vsel %vm250, %v1592, 0
        %1595 = vmatprep.subr.mxu0 0.0
        %1596 = vmatpush1.msra.mxu0 %v216
        %1597 = vmatprep.subr.mxu0 0.0
        %1598 = vmatpush1.msra.mxu0 %v217
        %1599 = vmatprep.subr.mxu0 0.0
        %1600 = vmatpush1.msra.mxu0 0.0
        %1601 = vmatprep.subr.mxu0 0.0
        %1602 = vmatpush1.msra.mxu0 0.0
        %1603 = vmatprep.subr.mxu0 0.0
        %1604 = vmatpush1.msra.mxu0 0.0
        %1605 = vmatprep.subr.mxu0 0.0
        %1606 = vmatpush1.msra.mxu0 0.0
        %1607 = vmatprep.subr.mxu0 0.0
        %1608 = vmatpush1.msra.mxu0 0.0
        %1609 = vmatprep.subr.mxu0 0.0
        %1610 = vmatpush1.msra.mxu0 0.0
        %1611 = vmatprep.subr.mxu0 0.0
        %1612 = vmatpush1.msra.mxu0 0.0
        %1613 = vmatprep.subr.mxu0 0.0
        %1614 = vmatpush1.msra.mxu0 0.0
        %1615 = vmatprep.subr.mxu0 0.0
        %1616 = vmatpush1.msra.mxu0 0.0
        %1617 = vmatprep.subr.mxu0 0.0
        %1618 = vmatpush1.msra.mxu0 0.0
        %1619 = vmatprep.subr.mxu0 0.0
        %1620 = vmatpush1.msra.mxu0 0.0
        %1621 = vmatprep.subr.mxu0 0.0
        %1622 = vmatpush1.msra.mxu0 0.0
        %1623 = vmatprep.subr.mxu0 0.0
        %1624 = vmatpush1.msra.mxu0 0.0
        %1625 = vmatprep.subr.mxu0 0.0
        %1626 = vmatpush1.msra.mxu0 0.0
        %1627 = vmatprep.subr.mxu0 0.0
        %1628 = vmatpush1.msra.mxu0 0.0
        %1629 = vmatprep.subr.mxu0 0.0
        %1630 = vmatpush1.msra.mxu0 0.0
        %1631 = vmatprep.subr.mxu0 0.0
        %1632 = vmatpush1.msra.mxu0 0.0
        %1633 = vmatprep.subr.mxu0 0.0
        %1634 = vmatpush1.msra.mxu0 0.0
        %1635 = vmatprep.subr.mxu0 0.0
        %1636 = vmatpush1.msra.mxu0 0.0
        %1637 = vmatprep.subr.mxu0 0.0
        %1638 = vmatpush1.msra.mxu0 0.0
        %1639 = vmatprep.subr.mxu0 0.0
        %1640 = vmatpush1.msra.mxu0 0.0
        %1641 = vmatprep.subr.mxu0 0.0
        %1642 = vmatpush1.msra.mxu0 0.0
        %1643 = vmatprep.subr.mxu0 0.0
        %1644 = vmatpush1.msra.mxu0 0.0
        %1645 = vmatprep.subr.mxu0 0.0
        %1646 = vmatpush1.msra.mxu0 0.0
        %1647 = vmatprep.subr.mxu0 0.0
        %1648 = vmatpush1.msra.mxu0 0.0
        %1649 = vmatprep.subr.mxu0 0.0
        %1650 = vmatpush1.msra.mxu0 0.0
        %1651 = vmatprep.subr.mxu0 0.0
        %1652 = vmatpush1.msra.mxu0 0.0
        %1653 = vmatprep.subr.mxu0 0.0
        %1654 = vmatpush1.msra.mxu0 0.0
        %1655 = vmatprep.subr.mxu0 0.0
        %1656 = vmatpush1.msra.mxu0 0.0
        %1657 = vmatprep.subr.mxu0 0.0
        %1658 = vmatpush1.msra.mxu0 0.0
        %1659 = vmatprep.mubr.f32.mxu0 0.0
        %1660 = vmatmul.mubr.f32.gmra.mrb[0].mxu0 %v1593
        %v1661 = vpop.f32.mrb[0].mxu0
        %v1662 = vadd.f32 0.0, %v1661
        %v1663 = vpop.f32.mrb[0].mxu0
        %1664 = vdwg.mxu0
        %1665 = vmatprep.subr.mxu0 0.0
        %1666 = vmatpush1.msra.mxu0 %v223
        %1667 = vmatprep.subr.mxu0 0.0
        %1668 = vmatpush1.msra.mxu0 %v224
        %1669 = vmatprep.subr.mxu0 0.0
        %1670 = vmatpush1.msra.mxu0 0.0
        %1671 = vmatprep.subr.mxu0 0.0
        %1672 = vmatpush1.msra.mxu0 0.0
        %1673 = vmatprep.subr.mxu0 0.0
        %1674 = vmatpush1.msra.mxu0 0.0
        %1675 = vmatprep.subr.mxu0 0.0
        %1676 = vmatpush1.msra.mxu0 0.0
        %1677 = vmatprep.subr.mxu0 0.0
        %1678 = vmatpush1.msra.mxu0 0.0
        %1679 = vmatprep.subr.mxu0 0.0
        %1680 = vmatpush1.msra.mxu0 0.0
        %1681 = vmatprep.subr.mxu0 0.0
        %1682 = vmatpush1.msra.mxu0 0.0
        %1683 = vmatprep.subr.mxu0 0.0
        %1684 = vmatpush1.msra.mxu0 0.0
        %1685 = vmatprep.subr.mxu0 0.0
        %1686 = vmatpush1.msra.mxu0 0.0
        %1687 = vmatprep.subr.mxu0 0.0
        %1688 = vmatpush1.msra.mxu0 0.0
        %1689 = vmatprep.subr.mxu0 0.0
        %1690 = vmatpush1.msra.mxu0 0.0
        %1691 = vmatprep.subr.mxu0 0.0
        %1692 = vmatpush1.msra.mxu0 0.0
        %1693 = vmatprep.subr.mxu0 0.0
        %1694 = vmatpush1.msra.mxu0 0.0
        %1695 = vmatprep.subr.mxu0 0.0
        %1696 = vmatpush1.msra.mxu0 0.0
        %1697 = vmatprep.subr.mxu0 0.0
        %1698 = vmatpush1.msra.mxu0 0.0
        %1699 = vmatprep.subr.mxu0 0.0
        %1700 = vmatpush1.msra.mxu0 0.0
        %1701 = vmatprep.subr.mxu0 0.0
        %1702 = vmatpush1.msra.mxu0 0.0
        %1703 = vmatprep.subr.mxu0 0.0
        %1704 = vmatpush1.msra.mxu0 0.0
        %1705 = vmatprep.subr.mxu0 0.0
        %1706 = vmatpush1.msra.mxu0 0.0
        %1707 = vmatprep.subr.mxu0 0.0
        %1708 = vmatpush1.msra.mxu0 0.0
        %1709 = vmatprep.subr.mxu0 0.0
        %1710 = vmatpush1.msra.mxu0 0.0
        %1711 = vmatprep.subr.mxu0 0.0
        %1712 = vmatpush1.msra.mxu0 0.0
        %1713 = vmatprep.subr.mxu0 0.0
        %1714 = vmatpush1.msra.mxu0 0.0
        %1715 = vmatprep.subr.mxu0 0.0
        %1716 = vmatpush1.msra.mxu0 0.0
        %1717 = vmatprep.subr.mxu0 0.0
        %1718 = vmatpush1.msra.mxu0 0.0
        %1719 = vmatprep.subr.mxu0 0.0
        %1720 = vmatpush1.msra.mxu0 0.0
        %1721 = vmatprep.subr.mxu0 0.0
        %1722 = vmatpush1.msra.mxu0 0.0
        %1723 = vmatprep.subr.mxu0 0.0
        %1724 = vmatpush1.msra.mxu0 0.0
        %1725 = vmatprep.subr.mxu0 0.0
        %1726 = vmatpush1.msra.mxu0 0.0
        %1727 = vmatprep.subr.mxu0 0.0
        %1728 = vmatpush1.msra.mxu0 0.0
        %1729 = vmatprep.mubr.f32.mxu0 0.0
        %1730 = vmatmul.mubr.f32.gmra.mrb[0].mxu0 %v1593
        %v1731 = vpop.f32.mrb[0].mxu0
        %v1732 = vadd.f32 0.0, %v1731
        %v1733 = vpop.f32.mrb[0].mxu0
        %1734 = vdwg.mxu0
        %1735 = vrot.lane.b32.xlu0 %v1592, 112
        %v1736 = vpop.permute.xlu0 %1735
        %v1737 = vsel %vm250, %v1736, 0
        %1739 = vmatprep.subr.mxu0 0.0
        %1740 = vmatpush1.msra.mxu0 %v216
        %1741 = vmatprep.subr.mxu0 0.0
        %1742 = vmatpush1.msra.mxu0 %v217
        %1743 = vmatprep.subr.mxu0 0.0
        %1744 = vmatpush1.msra.mxu0 0.0
        %1745 = vmatprep.subr.mxu0 0.0
        %1746 = vmatpush1.msra.mxu0 0.0
        %1747 = vmatprep.subr.mxu0 0.0
        %1748 = vmatpush1.msra.mxu0 0.0
        %1749 = vmatprep.subr.mxu0 0.0
        %1750 = vmatpush1.msra.mxu0 0.0
        %1751 = vmatprep.subr.mxu0 0.0
        %1752 = vmatpush1.msra.mxu0 0.0
        %1753 = vmatprep.subr.mxu0 0.0
        %1754 = vmatpush1.msra.mxu0 0.0
        %1755 = vmatprep.subr.mxu0 0.0
        %1756 = vmatpush1.msra.mxu0 0.0
        %1757 = vmatprep.subr.mxu0 0.0
        %1758 = vmatpush1.msra.mxu0 0.0
        %1759 = vmatprep.subr.mxu0 0.0
        %1760 = vmatpush1.msra.mxu0 0.0
        %1761 = vmatprep.subr.mxu0 0.0
        %1762 = vmatpush1.msra.mxu0 0.0
        %1763 = vmatprep.subr.mxu0 0.0
        %1764 = vmatpush1.msra.mxu0 0.0
        %1765 = vmatprep.subr.mxu0 0.0
        %1766 = vmatpush1.msra.mxu0 0.0
        %1767 = vmatprep.subr.mxu0 0.0
        %1768 = vmatpush1.msra.mxu0 0.0
        %1769 = vmatprep.subr.mxu0 0.0
        %1770 = vmatpush1.msra.mxu0 0.0
        %1771 = vmatprep.subr.mxu0 0.0
        %1772 = vmatpush1.msra.mxu0 0.0
        %1773 = vmatprep.subr.mxu0 0.0
        %1774 = vmatpush1.msra.mxu0 0.0
        %1775 = vmatprep.subr.mxu0 0.0
        %1776 = vmatpush1.msra.mxu0 0.0
        %1777 = vmatprep.subr.mxu0 0.0
        %1778 = vmatpush1.msra.mxu0 0.0
        %1779 = vmatprep.subr.mxu0 0.0
        %1780 = vmatpush1.msra.mxu0 0.0
        %1781 = vmatprep.subr.mxu0 0.0
        %1782 = vmatpush1.msra.mxu0 0.0
        %1783 = vmatprep.subr.mxu0 0.0
        %1784 = vmatpush1.msra.mxu0 0.0
        %1785 = vmatprep.subr.mxu0 0.0
        %1786 = vmatpush1.msra.mxu0 0.0
        %1787 = vmatprep.subr.mxu0 0.0
        %1788 = vmatpush1.msra.mxu0 0.0
        %1789 = vmatprep.subr.mxu0 0.0
        %1790 = vmatpush1.msra.mxu0 0.0
        %1791 = vmatprep.subr.mxu0 0.0
        %1792 = vmatpush1.msra.mxu0 0.0
        %1793 = vmatprep.subr.mxu0 0.0
        %1794 = vmatpush1.msra.mxu0 0.0
        %1795 = vmatprep.subr.mxu0 0.0
        %1796 = vmatpush1.msra.mxu0 0.0
        %1797 = vmatprep.subr.mxu0 0.0
        %1798 = vmatpush1.msra.mxu0 0.0
        %1799 = vmatprep.subr.mxu0 0.0
        %1800 = vmatpush1.msra.mxu0 0.0
        %1801 = vmatprep.subr.mxu0 0.0
        %1802 = vmatpush1.msra.mxu0 0.0
        %1803 = vmatprep.mubr.f32.mxu0 0.0
        %1804 = vmatmul.mubr.f32.gmra.mrb[0].mxu0 %v1737
        %v1805 = vpop.f32.mrb[0].mxu0
        %v1806 = vadd.f32 0.0, %v1805
        %v1807 = vpop.f32.mrb[0].mxu0
        %1808 = vdwg.mxu0
        %1809 = vmatprep.subr.mxu0 0.0
        %1810 = vmatpush1.msra.mxu0 %v223
        %1811 = vmatprep.subr.mxu0 0.0
        %1812 = vmatpush1.msra.mxu0 %v224
        %1813 = vmatprep.subr.mxu0 0.0
        %1814 = vmatpush1.msra.mxu0 0.0
        %1815 = vmatprep.subr.mxu0 0.0
        %1816 = vmatpush1.msra.mxu0 0.0
        %1817 = vmatprep.subr.mxu0 0.0
        %1818 = vmatpush1.msra.mxu0 0.0
        %1819 = vmatprep.subr.mxu0 0.0
        %1820 = vmatpush1.msra.mxu0 0.0
        %1821 = vmatprep.subr.mxu0 0.0
        %1822 = vmatpush1.msra.mxu0 0.0
        %1823 = vmatprep.subr.mxu0 0.0
        %1824 = vmatpush1.msra.mxu0 0.0
        %1825 = vmatprep.subr.mxu0 0.0
        %1826 = vmatpush1.msra.mxu0 0.0
        %1827 = vmatprep.subr.mxu0 0.0
        %1828 = vmatpush1.msra.mxu0 0.0
        %1829 = vmatprep.subr.mxu0 0.0
        %1830 = vmatpush1.msra.mxu0 0.0
        %1831 = vmatprep.subr.mxu0 0.0
        %1832 = vmatpush1.msra.mxu0 0.0
        %1833 = vmatprep.subr.mxu0 0.0
        %1834 = vmatpush1.msra.mxu0 0.0
        %1835 = vmatprep.subr.mxu0 0.0
        %1836 = vmatpush1.msra.mxu0 0.0
        %1837 = vmatprep.subr.mxu0 0.0
        %1838 = vmatpush1.msra.mxu0 0.0
        %1839 = vmatprep.subr.mxu0 0.0
        %1840 = vmatpush1.msra.mxu0 0.0
        %1841 = vmatprep.subr.mxu0 0.0
        %1842 = vmatpush1.msra.mxu0 0.0
        %1843 = vmatprep.subr.mxu0 0.0
        %1844 = vmatpush1.msra.mxu0 0.0
        %1845 = vmatprep.subr.mxu0 0.0
        %1846 = vmatpush1.msra.mxu0 0.0
        %1847 = vmatprep.subr.mxu0 0.0
        %1848 = vmatpush1.msra.mxu0 0.0
        %1849 = vmatprep.subr.mxu0 0.0
        %1850 = vmatpush1.msra.mxu0 0.0
        %1851 = vmatprep.subr.mxu0 0.0
        %1852 = vmatpush1.msra.mxu0 0.0
        %1853 = vmatprep.subr.mxu0 0.0
        %1854 = vmatpush1.msra.mxu0 0.0
        %1855 = vmatprep.subr.mxu0 0.0
        %1856 = vmatpush1.msra.mxu0 0.0
        %1857 = vmatprep.subr.mxu0 0.0
        %1858 = vmatpush1.msra.mxu0 0.0
        %1859 = vmatprep.subr.mxu0 0.0
        %1860 = vmatpush1.msra.mxu0 0.0
        %1861 = vmatprep.subr.mxu0 0.0
        %1862 = vmatpush1.msra.mxu0 0.0
        %1863 = vmatprep.subr.mxu0 0.0
        %1864 = vmatpush1.msra.mxu0 0.0
        %1865 = vmatprep.subr.mxu0 0.0
        %1866 = vmatpush1.msra.mxu0 0.0
        %1867 = vmatprep.subr.mxu0 0.0
        %1868 = vmatpush1.msra.mxu0 0.0
        %1869 = vmatprep.subr.mxu0 0.0
        %1870 = vmatpush1.msra.mxu0 0.0
        %1871 = vmatprep.subr.mxu0 0.0
        %1872 = vmatpush1.msra.mxu0 0.0
        %1873 = vmatprep.mubr.f32.mxu0 0.0
        %1874 = vmatmul.mubr.f32.gmra.mrb[0].mxu0 %v1737
        %v1875 = vpop.f32.mrb[0].mxu0
        %v1876 = vadd.f32 0.0, %v1875
        %v1877 = vpop.f32.mrb[0].mxu0
        %1878 = vdwg.mxu0
        %v1880 = vsel %vm541, %v1732, 0
        %1882 = vmatprep.subr.mxu0 0.0
        %1883 = vmatpush1.msra.mxu0 %v1880
        %1884 = vmatprep.subr.mxu0 0.0
        %1885 = vmatpush1.msra.mxu0 0.0
        %1886 = vmatprep.subr.mxu0 0.0
        %1887 = vmatpush1.msra.mxu0 0.0
        %1888 = vmatprep.subr.mxu0 0.0
        %1889 = vmatpush1.msra.mxu0 0.0
        %1890 = vmatprep.subr.mxu0 0.0
        %1891 = vmatpush1.msra.mxu0 0.0
        %1892 = vmatprep.subr.mxu0 0.0
        %1893 = vmatpush1.msra.mxu0 0.0
        %1894 = vmatprep.subr.mxu0 0.0
        %1895 = vmatpush1.msra.mxu0 0.0
        %1896 = vmatprep.subr.mxu0 0.0
        %1897 = vmatpush1.msra.mxu0 0.0
        %1898 = vmatprep.subr.mxu0 0.0
        %1899 = vmatpush1.msra.mxu0 0.0
        %1900 = vmatprep.subr.mxu0 0.0
        %1901 = vmatpush1.msra.mxu0 0.0
        %1902 = vmatprep.subr.mxu0 0.0
        %1903 = vmatpush1.msra.mxu0 0.0
        %1904 = vmatprep.subr.mxu0 0.0
        %1905 = vmatpush1.msra.mxu0 0.0
        %1906 = vmatprep.subr.mxu0 0.0
        %1907 = vmatpush1.msra.mxu0 0.0
        %1908 = vmatprep.subr.mxu0 0.0
        %1909 = vmatpush1.msra.mxu0 0.0
        %1910 = vmatprep.subr.mxu0 0.0
        %1911 = vmatpush1.msra.mxu0 0.0
        %1912 = vmatprep.subr.mxu0 0.0
        %1913 = vmatpush1.msra.mxu0 0.0
        %1914 = vmatprep.subr.mxu0 0.0
        %1915 = vmatpush1.msra.mxu0 0.0
        %1916 = vmatprep.subr.mxu0 0.0
        %1917 = vmatpush1.msra.mxu0 0.0
        %1918 = vmatprep.subr.mxu0 0.0
        %1919 = vmatpush1.msra.mxu0 0.0
        %1920 = vmatprep.subr.mxu0 0.0
        %1921 = vmatpush1.msra.mxu0 0.0
        %1922 = vmatprep.subr.mxu0 0.0
        %1923 = vmatpush1.msra.mxu0 0.0
        %1924 = vmatprep.subr.mxu0 0.0
        %1925 = vmatpush1.msra.mxu0 0.0
        %1926 = vmatprep.subr.mxu0 0.0
        %1927 = vmatpush1.msra.mxu0 0.0
        %1928 = vmatprep.subr.mxu0 0.0
        %1929 = vmatpush1.msra.mxu0 0.0
        %1930 = vmatprep.subr.mxu0 0.0
        %1931 = vmatpush1.msra.mxu0 0.0
        %1932 = vmatprep.subr.mxu0 0.0
        %1933 = vmatpush1.msra.mxu0 0.0
        %1934 = vmatprep.subr.mxu0 0.0
        %1935 = vmatpush1.msra.mxu0 0.0
        %1936 = vmatprep.subr.mxu0 0.0
        %1937 = vmatpush1.msra.mxu0 0.0
        %1938 = vmatprep.subr.mxu0 0.0
        %1939 = vmatpush1.msra.mxu0 0.0
        %1940 = vmatprep.subr.mxu0 0.0
        %1941 = vmatpush1.msra.mxu0 0.0
        %1942 = vmatprep.subr.mxu0 0.0
        %1943 = vmatpush1.msra.mxu0 0.0
        %1944 = vmatprep.subr.mxu0 0.0
        %1945 = vmatpush1.msra.mxu0 0.0
        %1946 = vmatprep.mubr.f32.mxu0 0.0
        %1947 = vmatmul.mubr.f32.gmra.mrb[0].mxu0 %v539
        %v1948 = vpop.f32.mrb[0].mxu0
        %v1949 = vadd.f32 0.0, %v1948
        %v1950 = vpop.f32.mrb[0].mxu0
        %1951 = vdwg.mxu0
        %v1953 = vsel %vm541, %v1662, 0
        %1955 = vmatprep.subr.mxu0 0.0
        %1956 = vmatpush1.msra.mxu0 %v1953
        %1957 = vmatprep.subr.mxu0 0.0
        %1958 = vmatpush1.msra.mxu0 0.0
        %1959 = vmatprep.subr.mxu0 0.0
        %1960 = vmatpush1.msra.mxu0 0.0
        %1961 = vmatprep.subr.mxu0 0.0
        %1962 = vmatpush1.msra.mxu0 0.0
        %1963 = vmatprep.subr.mxu0 0.0
        %1964 = vmatpush1.msra.mxu0 0.0
        %1965 = vmatprep.subr.mxu0 0.0
        %1966 = vmatpush1.msra.mxu0 0.0
        %1967 = vmatprep.subr.mxu0 0.0
        %1968 = vmatpush1.msra.mxu0 0.0
        %1969 = vmatprep.subr.mxu0 0.0
        %1970 = vmatpush1.msra.mxu0 0.0
        %1971 = vmatprep.subr.mxu0 0.0
        %1972 = vmatpush1.msra.mxu0 0.0
        %1973 = vmatprep.subr.mxu0 0.0
        %1974 = vmatpush1.msra.mxu0 0.0
        %1975 = vmatprep.subr.mxu0 0.0
        %1976 = vmatpush1.msra.mxu0 0.0
        %1977 = vmatprep.subr.mxu0 0.0
        %1978 = vmatpush1.msra.mxu0 0.0
        %1979 = vmatprep.subr.mxu0 0.0
        %1980 = vmatpush1.msra.mxu0 0.0
        %1981 = vmatprep.subr.mxu0 0.0
        %1982 = vmatpush1.msra.mxu0 0.0
        %1983 = vmatprep.subr.mxu0 0.0
        %1984 = vmatpush1.msra.mxu0 0.0
        %1985 = vmatprep.subr.mxu0 0.0
        %1986 = vmatpush1.msra.mxu0 0.0
        %1987 = vmatprep.subr.mxu0 0.0
        %1988 = vmatpush1.msra.mxu0 0.0
        %1989 = vmatprep.subr.mxu0 0.0
        %1990 = vmatpush1.msra.mxu0 0.0
        %1991 = vmatprep.subr.mxu0 0.0
        %1992 = vmatpush1.msra.mxu0 0.0
        %1993 = vmatprep.subr.mxu0 0.0
        %1994 = vmatpush1.msra.mxu0 0.0
        %1995 = vmatprep.subr.mxu0 0.0
        %1996 = vmatpush1.msra.mxu0 0.0
        %1997 = vmatprep.subr.mxu0 0.0
        %1998 = vmatpush1.msra.mxu0 0.0
        %1999 = vmatprep.subr.mxu0 0.0
        %2000 = vmatpush1.msra.mxu0 0.0
        %2001 = vmatprep.subr.mxu0 0.0
        %2002 = vmatpush1.msra.mxu0 0.0
        %2003 = vmatprep.subr.mxu0 0.0
        %2004 = vmatpush1.msra.mxu0 0.0
        %2005 = vmatprep.subr.mxu0 0.0
        %2006 = vmatpush1.msra.mxu0 0.0
        %2007 = vmatprep.subr.mxu0 0.0
        %2008 = vmatpush1.msra.mxu0 0.0
        %2009 = vmatprep.subr.mxu0 0.0
        %2010 = vmatpush1.msra.mxu0 0.0
        %2011 = vmatprep.subr.mxu0 0.0
        %2012 = vmatpush1.msra.mxu0 0.0
        %2013 = vmatprep.subr.mxu0 0.0
        %2014 = vmatpush1.msra.mxu0 0.0
        %2015 = vmatprep.subr.mxu0 0.0
        %2016 = vmatpush1.msra.mxu0 0.0
        %2017 = vmatprep.subr.mxu0 0.0
        %2018 = vmatpush1.msra.mxu0 0.0
        %2019 = vmatprep.mubr.f32.mxu0 0.0
        %2020 = vmatmul.mubr.f32.gmra.mrb[0].mxu0 %v616
        %v2021 = vpop.f32.mrb[0].mxu0
        %v2022 = vadd.f32 %v1949, %v2021
        %v2023 = vpop.f32.mrb[0].mxu0
        %2024 = vdwg.mxu0
        %v2026 = vsel %vm541, %v1806, 0
        %2028 = vmatprep.subr.mxu0 0.0
        %2029 = vmatpush1.msra.mxu0 %v2026
        %2030 = vmatprep.subr.mxu0 0.0
        %2031 = vmatpush1.msra.mxu0 0.0
        %2032 = vmatprep.subr.mxu0 0.0
        %2033 = vmatpush1.msra.mxu0 0.0
        %2034 = vmatprep.subr.mxu0 0.0
        %2035 = vmatpush1.msra.mxu0 0.0
        %2036 = vmatprep.subr.mxu0 0.0
        %2037 = vmatpush1.msra.mxu0 0.0
        %2038 = vmatprep.subr.mxu0 0.0
        %2039 = vmatpush1.msra.mxu0 0.0
        %2040 = vmatprep.subr.mxu0 0.0
        %2041 = vmatpush1.msra.mxu0 0.0
        %2042 = vmatprep.subr.mxu0 0.0
        %2043 = vmatpush1.msra.mxu0 0.0
        %2044 = vmatprep.subr.mxu0 0.0
        %2045 = vmatpush1.msra.mxu0 0.0
        %2046 = vmatprep.subr.mxu0 0.0
        %2047 = vmatpush1.msra.mxu0 0.0
        %2048 = vmatprep.subr.mxu0 0.0
        %2049 = vmatpush1.msra.mxu0 0.0
        %2050 = vmatprep.subr.mxu0 0.0
        %2051 = vmatpush1.msra.mxu0 0.0
        %2052 = vmatprep.subr.mxu0 0.0
        %2053 = vmatpush1.msra.mxu0 0.0
        %2054 = vmatprep.subr.mxu0 0.0
        %2055 = vmatpush1.msra.mxu0 0.0
        %2056 = vmatprep.subr.mxu0 0.0
        %2057 = vmatpush1.msra.mxu0 0.0
        %2058 = vmatprep.subr.mxu0 0.0
        %2059 = vmatpush1.msra.mxu0 0.0
        %2060 = vmatprep.subr.mxu0 0.0
        %2061 = vmatpush1.msra.mxu0 0.0
        %2062 = vmatprep.subr.mxu0 0.0
        %2063 = vmatpush1.msra.mxu0 0.0
        %2064 = vmatprep.subr.mxu0 0.0
        %2065 = vmatpush1.msra.mxu0 0.0
        %2066 = vmatprep.subr.mxu0 0.0
        %2067 = vmatpush1.msra.mxu0 0.0
        %2068 = vmatprep.subr.mxu0 0.0
        %2069 = vmatpush1.msra.mxu0 0.0
        %2070 = vmatprep.subr.mxu0 0.0
        %2071 = vmatpush1.msra.mxu0 0.0
        %2072 = vmatprep.subr.mxu0 0.0
        %2073 = vmatpush1.msra.mxu0 0.0
        %2074 = vmatprep.subr.mxu0 0.0
        %2075 = vmatpush1.msra.mxu0 0.0
        %2076 = vmatprep.subr.mxu0 0.0
        %2077 = vmatpush1.msra.mxu0 0.0
        %2078 = vmatprep.subr.mxu0 0.0
        %2079 = vmatpush1.msra.mxu0 0.0
        %2080 = vmatprep.subr.mxu0 0.0
        %2081 = vmatpush1.msra.mxu0 0.0
        %2082 = vmatprep.subr.mxu0 0.0
        %2083 = vmatpush1.msra.mxu0 0.0
        %2084 = vmatprep.subr.mxu0 0.0
        %2085 = vmatpush1.msra.mxu0 0.0
        %2086 = vmatprep.subr.mxu0 0.0
        %2087 = vmatpush1.msra.mxu0 0.0
        %2088 = vmatprep.subr.mxu0 0.0
        %2089 = vmatpush1.msra.mxu0 0.0
        %2090 = vmatprep.subr.mxu0 0.0
        %2091 = vmatpush1.msra.mxu0 0.0
        %2092 = vmatprep.mubr.f32.mxu0 0.0
        %2093 = vmatmul.mubr.f32.gmra.mrb[0].mxu0 %v692
        %v2094 = vpop.f32.mrb[0].mxu0
        %v2095 = vadd.f32 0.0, %v2094
        %v2096 = vpop.f32.mrb[0].mxu0
        %2097 = vdwg.mxu0
        %v2098 = vadd.f32 %v2022, %v2095
        %v2100 = vsel %vm541, %v1876, 0
        %2102 = vmatprep.subr.mxu0 0.0
        %2103 = vmatpush1.msra.mxu0 %v2100
        %2104 = vmatprep.subr.mxu0 0.0
        %2105 = vmatpush1.msra.mxu0 0.0
        %2106 = vmatprep.subr.mxu0 0.0
        %2107 = vmatpush1.msra.mxu0 0.0
        %2108 = vmatprep.subr.mxu0 0.0
        %2109 = vmatpush1.msra.mxu0 0.0
        %2110 = vmatprep.subr.mxu0 0.0
        %2111 = vmatpush1.msra.mxu0 0.0
        %2112 = vmatprep.subr.mxu0 0.0
        %2113 = vmatpush1.msra.mxu0 0.0
        %2114 = vmatprep.subr.mxu0 0.0
        %2115 = vmatpush1.msra.mxu0 0.0
        %2116 = vmatprep.subr.mxu0 0.0
        %2117 = vmatpush1.msra.mxu0 0.0
        %2118 = vmatprep.subr.mxu0 0.0
        %2119 = vmatpush1.msra.mxu0 0.0
        %2120 = vmatprep.subr.mxu0 0.0
        %2121 = vmatpush1.msra.mxu0 0.0
        %2122 = vmatprep.subr.mxu0 0.0
        %2123 = vmatpush1.msra.mxu0 0.0
        %2124 = vmatprep.subr.mxu0 0.0
        %2125 = vmatpush1.msra.mxu0 0.0
        %2126 = vmatprep.subr.mxu0 0.0
        %2127 = vmatpush1.msra.mxu0 0.0
        %2128 = vmatprep.subr.mxu0 0.0
        %2129 = vmatpush1.msra.mxu0 0.0
        %2130 = vmatprep.subr.mxu0 0.0
        %2131 = vmatpush1.msra.mxu0 0.0
        %2132 = vmatprep.subr.mxu0 0.0
        %2133 = vmatpush1.msra.mxu0 0.0
        %2134 = vmatprep.subr.mxu0 0.0
        %2135 = vmatpush1.msra.mxu0 0.0
        %2136 = vmatprep.subr.mxu0 0.0
        %2137 = vmatpush1.msra.mxu0 0.0
        %2138 = vmatprep.subr.mxu0 0.0
        %2139 = vmatpush1.msra.mxu0 0.0
        %2140 = vmatprep.subr.mxu0 0.0
        %2141 = vmatpush1.msra.mxu0 0.0
        %2142 = vmatprep.subr.mxu0 0.0
        %2143 = vmatpush1.msra.mxu0 0.0
        %2144 = vmatprep.subr.mxu0 0.0
        %2145 = vmatpush1.msra.mxu0 0.0
        %2146 = vmatprep.subr.mxu0 0.0
        %2147 = vmatpush1.msra.mxu0 0.0
        %2148 = vmatprep.subr.mxu0 0.0
        %2149 = vmatpush1.msra.mxu0 0.0
        %2150 = vmatprep.subr.mxu0 0.0
        %2151 = vmatpush1.msra.mxu0 0.0
        %2152 = vmatprep.subr.mxu0 0.0
        %2153 = vmatpush1.msra.mxu0 0.0
        %2154 = vmatprep.subr.mxu0 0.0
        %2155 = vmatpush1.msra.mxu0 0.0
        %2156 = vmatprep.subr.mxu0 0.0
        %2157 = vmatpush1.msra.mxu0 0.0
        %2158 = vmatprep.subr.mxu0 0.0
        %2159 = vmatpush1.msra.mxu0 0.0
        %2160 = vmatprep.subr.mxu0 0.0
        %2161 = vmatpush1.msra.mxu0 0.0
        %2162 = vmatprep.subr.mxu0 0.0
        %2163 = vmatpush1.msra.mxu0 0.0
        %2164 = vmatprep.subr.mxu0 0.0
        %2165 = vmatpush1.msra.mxu0 0.0
        %2166 = vmatprep.mubr.f32.mxu0 0.0
        %2167 = vmatmul.mubr.f32.gmra.mrb[0].mxu0 %v769
        %v2168 = vpop.f32.mrb[0].mxu0
        %v2169 = vadd.f32 0.0, %v2168
        %v2170 = vpop.f32.mrb[0].mxu0
        %2171 = vdwg.mxu0
        %v2172 = vadd.f32 %v2098, %v2169
        %v2173 = vadd.f32 %v2172, %v848
        %v2175 = vcombine.high %v2173, %v2173
        %v2177 = vunpack.c.l.s4 1966171168
        %v2178 = vunpack.c.0.s8 %v2177
        %v2179 = vlaneseq
        %v2180 = vshrl.u32 %v2179, 7
        %v2181 = vsub.s32 %v2178, %v2180
        %v2182 = vrot.slane %v2173, %v2181
        %v2184 = vunpack.c.l.s4 1966171168
        %v2185 = vunpack.c.0.s8 %v2184
        %v2186 = vlaneseq
        %v2187 = vshrl.u32 %v2186, 7
        %v2188 = vsub.s32 %v2185, %v2187
        %v2189 = vrot.slane %v2175, %v2188
        %v2190 = vcombine.high %v2182, %v2182
        %v2191 = vcombine.high %v2189, %v2189
        %v2193 = vunpack.c.l.s4 1966171168
        %v2194 = vunpack.c.0.s8 %v2193
        %v2195 = vlaneseq
        %v2196 = vshrl.u32 %v2195, 7
        %v2197 = vsub.s32 %v2194, %v2196
        %v2198 = vrot.slane %v2182, %v2197
        %v2200 = vunpack.c.l.s4 1966171168
        %v2201 = vunpack.c.0.s8 %v2200
        %v2202 = vlaneseq
        %v2203 = vshrl.u32 %v2202, 7
        %v2204 = vsub.s32 %v2201, %v2203
        %v2205 = vrot.slane %v2189, %v2204
        %v2207 = vunpack.c.l.s4 1966171168
        %v2208 = vunpack.c.0.s8 %v2207
        %v2209 = vlaneseq
        %v2210 = vshrl.u32 %v2209, 7
        %v2211 = vsub.s32 %v2208, %v2210
        %v2212 = vrot.slane %v2190, %v2211
        %v2214 = vunpack.c.l.s4 1966171168
        %v2215 = vunpack.c.0.s8 %v2214
        %v2216 = vlaneseq
        %v2217 = vshrl.u32 %v2216, 7
        %v2218 = vsub.s32 %v2215, %v2217
        %v2219 = vrot.slane %v2191, %v2218
        %v2220 = vcombine.high %v2198, %v2198
        %v2221 = vcombine.high %v2205, %v2205
        %v2222 = vcombine.high %v2212, %v2212
        %v2223 = vcombine.high %v2219, %v2219
        %2232 = vst.msk [vmem:[%s205 + $0x2] sm:$0x1] %vm909, %v2198
        %2233 = vst.msk [vmem:[%s205 + $0xa] sm:$0x1] %vm909, %v2212
        %2234 = vst.msk [vmem:[%s205 + $0x12] sm:$0x1] %vm909, %v2220
        %2235 = vst.msk [vmem:[%s205 + $0x1a] sm:$0x1] %vm909, %v2222
        %2236 = vst.msk [vmem:[%s205 + $0x22] sm:$0x1] %vm909, %v2205
        %2237 = vst.msk [vmem:[%s205 + $0x2a] sm:$0x1] %vm909, %v2219
        %2238 = vst.msk [vmem:[%s205 + $0x32] sm:$0x1] %vm909, %v2221
        %2239 = vst.msk [vmem:[%s205 + $0x3a] sm:$0x1] %vm909, %v2223
        %v2240 = vld [vmem:[%s183 + $0x3] sm:$0x1]
        %v2241 = vld [vmem:[%s183 + $0xb] sm:$0x1]
        %v2242 = vld [vmem:[%s183 + $0x13] sm:$0x1]
        %v2243 = vld [vmem:[%s183 + $0x1b] sm:$0x1]
        %v2248 = vrot.slane %v2241, 7
        %v2249 = vsel %vm242, %v2248, %v2240
        %v2250 = vrot.slane %v2242, 6
        %v2251 = vsel %vm245, %v2250, %v2249
        %v2252 = vrot.slane %v2243, 5
        %v2253 = vsel %vm248, %v2252, %v2251
        %v2254 = vsel %vm250, %v2253, 0
        %2256 = vmatprep.subr.mxu0 0.0
        %2257 = vmatpush1.msra.mxu0 %v216
        %2258 = vmatprep.subr.mxu0 0.0
        %2259 = vmatpush1.msra.mxu0 %v217
        %2260 = vmatprep.subr.mxu0 0.0
        %2261 = vmatpush1.msra.mxu0 0.0
        %2262 = vmatprep.subr.mxu0 0.0
        %2263 = vmatpush1.msra.mxu0 0.0
        %2264 = vmatprep.subr.mxu0 0.0
        %2265 = vmatpush1.msra.mxu0 0.0
        %2266 = vmatprep.subr.mxu0 0.0
        %2267 = vmatpush1.msra.mxu0 0.0
        %2268 = vmatprep.subr.mxu0 0.0
        %2269 = vmatpush1.msra.mxu0 0.0
        %2270 = vmatprep.subr.mxu0 0.0
        %2271 = vmatpush1.msra.mxu0 0.0
        %2272 = vmatprep.subr.mxu0 0.0
        %2273 = vmatpush1.msra.mxu0 0.0
        %2274 = vmatprep.subr.mxu0 0.0
        %2275 = vmatpush1.msra.mxu0 0.0
        %2276 = vmatprep.subr.mxu0 0.0
        %2277 = vmatpush1.msra.mxu0 0.0
        %2278 = vmatprep.subr.mxu0 0.0
        %2279 = vmatpush1.msra.mxu0 0.0
        %2280 = vmatprep.subr.mxu0 0.0
        %2281 = vmatpush1.msra.mxu0 0.0
        %2282 = vmatprep.subr.mxu0 0.0
        %2283 = vmatpush1.msra.mxu0 0.0
        %2284 = vmatprep.subr.mxu0 0.0
        %2285 = vmatpush1.msra.mxu0 0.0
        %2286 = vmatprep.subr.mxu0 0.0
        %2287 = vmatpush1.msra.mxu0 0.0
        %2288 = vmatprep.subr.mxu0 0.0
        %2289 = vmatpush1.msra.mxu0 0.0
        %2290 = vmatprep.subr.mxu0 0.0
        %2291 = vmatpush1.msra.mxu0 0.0
        %2292 = vmatprep.subr.mxu0 0.0
        %2293 = vmatpush1.msra.mxu0 0.0
        %2294 = vmatprep.subr.mxu0 0.0
        %2295 = vmatpush1.msra.mxu0 0.0
        %2296 = vmatprep.subr.mxu0 0.0
        %2297 = vmatpush1.msra.mxu0 0.0
        %2298 = vmatprep.subr.mxu0 0.0
        %2299 = vmatpush1.msra.mxu0 0.0
        %2300 = vmatprep.subr.mxu0 0.0
        %2301 = vmatpush1.msra.mxu0 0.0
        %2302 = vmatprep.subr.mxu0 0.0
        %2303 = vmatpush1.msra.mxu0 0.0
        %2304 = vmatprep.subr.mxu0 0.0
        %2305 = vmatpush1.msra.mxu0 0.0
        %2306 = vmatprep.subr.mxu0 0.0
        %2307 = vmatpush1.msra.mxu0 0.0
        %2308 = vmatprep.subr.mxu0 0.0
        %2309 = vmatpush1.msra.mxu0 0.0
        %2310 = vmatprep.subr.mxu0 0.0
        %2311 = vmatpush1.msra.mxu0 0.0
        %2312 = vmatprep.subr.mxu0 0.0
        %2313 = vmatpush1.msra.mxu0 0.0
        %2314 = vmatprep.subr.mxu0 0.0
        %2315 = vmatpush1.msra.mxu0 0.0
        %2316 = vmatprep.subr.mxu0 0.0
        %2317 = vmatpush1.msra.mxu0 0.0
        %2318 = vmatprep.subr.mxu0 0.0
        %2319 = vmatpush1.msra.mxu0 0.0
        %2320 = vmatprep.mubr.f32.mxu0 0.0
        %2321 = vmatmul.mubr.f32.gmra.mrb[0].mxu0 %v2254
        %v2322 = vpop.f32.mrb[0].mxu0
        %v2323 = vadd.f32 0.0, %v2322
        %v2324 = vpop.f32.mrb[0].mxu0
        %2325 = vdwg.mxu0
        %2326 = vmatprep.subr.mxu0 0.0
        %2327 = vmatpush1.msra.mxu0 %v223
        %2328 = vmatprep.subr.mxu0 0.0
        %2329 = vmatpush1.msra.mxu0 %v224
        %2330 = vmatprep.subr.mxu0 0.0
        %2331 = vmatpush1.msra.mxu0 0.0
        %2332 = vmatprep.subr.mxu0 0.0
        %2333 = vmatpush1.msra.mxu0 0.0
        %2334 = vmatprep.subr.mxu0 0.0
        %2335 = vmatpush1.msra.mxu0 0.0
        %2336 = vmatprep.subr.mxu0 0.0
        %2337 = vmatpush1.msra.mxu0 0.0
        %2338 = vmatprep.subr.mxu0 0.0
        %2339 = vmatpush1.msra.mxu0 0.0
        %2340 = vmatprep.subr.mxu0 0.0
        %2341 = vmatpush1.msra.mxu0 0.0
        %2342 = vmatprep.subr.mxu0 0.0
        %2343 = vmatpush1.msra.mxu0 0.0
        %2344 = vmatprep.subr.mxu0 0.0
        %2345 = vmatpush1.msra.mxu0 0.0
        %2346 = vmatprep.subr.mxu0 0.0
        %2347 = vmatpush1.msra.mxu0 0.0
        %2348 = vmatprep.subr.mxu0 0.0
        %2349 = vmatpush1.msra.mxu0 0.0
        %2350 = vmatprep.subr.mxu0 0.0
        %2351 = vmatpush1.msra.mxu0 0.0
        %2352 = vmatprep.subr.mxu0 0.0
        %2353 = vmatpush1.msra.mxu0 0.0
        %2354 = vmatprep.subr.mxu0 0.0
        %2355 = vmatpush1.msra.mxu0 0.0
        %2356 = vmatprep.subr.mxu0 0.0
        %2357 = vmatpush1.msra.mxu0 0.0
        %2358 = vmatprep.subr.mxu0 0.0
        %2359 = vmatpush1.msra.mxu0 0.0
        %2360 = vmatprep.subr.mxu0 0.0
        %2361 = vmatpush1.msra.mxu0 0.0
        %2362 = vmatprep.subr.mxu0 0.0
        %2363 = vmatpush1.msra.mxu0 0.0
        %2364 = vmatprep.subr.mxu0 0.0
        %2365 = vmatpush1.msra.mxu0 0.0
        %2366 = vmatprep.subr.mxu0 0.0
        %2367 = vmatpush1.msra.mxu0 0.0
        %2368 = vmatprep.subr.mxu0 0.0
        %2369 = vmatpush1.msra.mxu0 0.0
        %2370 = vmatprep.subr.mxu0 0.0
        %2371 = vmatpush1.msra.mxu0 0.0
        %2372 = vmatprep.subr.mxu0 0.0
        %2373 = vmatpush1.msra.mxu0 0.0
        %2374 = vmatprep.subr.mxu0 0.0
        %2375 = vmatpush1.msra.mxu0 0.0
        %2376 = vmatprep.subr.mxu0 0.0
        %2377 = vmatpush1.msra.mxu0 0.0
        %2378 = vmatprep.subr.mxu0 0.0
        %2379 = vmatpush1.msra.mxu0 0.0
        %2380 = vmatprep.subr.mxu0 0.0
        %2381 = vmatpush1.msra.mxu0 0.0
        %2382 = vmatprep.subr.mxu0 0.0
        %2383 = vmatpush1.msra.mxu0 0.0
        %2384 = vmatprep.subr.mxu0 0.0
        %2385 = vmatpush1.msra.mxu0 0.0
        %2386 = vmatprep.subr.mxu0 0.0
        %2387 = vmatpush1.msra.mxu0 0.0
        %2388 = vmatprep.subr.mxu0 0.0
        %2389 = vmatpush1.msra.mxu0 0.0
        %2390 = vmatprep.mubr.f32.mxu0 0.0
        %2391 = vmatmul.mubr.f32.gmra.mrb[0].mxu0 %v2254
        %v2392 = vpop.f32.mrb[0].mxu0
        %v2393 = vadd.f32 0.0, %v2392
        %v2394 = vpop.f32.mrb[0].mxu0
        %2395 = vdwg.mxu0
        %2396 = vrot.lane.b32.xlu0 %v2253, 112
        %v2397 = vpop.permute.xlu0 %2396
        %v2398 = vsel %vm250, %v2397, 0
        %2400 = vmatprep.subr.mxu0 0.0
        %2401 = vmatpush1.msra.mxu0 %v216
        %2402 = vmatprep.subr.mxu0 0.0
        %2403 = vmatpush1.msra.mxu0 %v217
        %2404 = vmatprep.subr.mxu0 0.0
        %2405 = vmatpush1.msra.mxu0 0.0
        %2406 = vmatprep.subr.mxu0 0.0
        %2407 = vmatpush1.msra.mxu0 0.0
        %2408 = vmatprep.subr.mxu0 0.0
        %2409 = vmatpush1.msra.mxu0 0.0
        %2410 = vmatprep.subr.mxu0 0.0
        %2411 = vmatpush1.msra.mxu0 0.0
        %2412 = vmatprep.subr.mxu0 0.0
        %2413 = vmatpush1.msra.mxu0 0.0
        %2414 = vmatprep.subr.mxu0 0.0
        %2415 = vmatpush1.msra.mxu0 0.0
        %2416 = vmatprep.subr.mxu0 0.0
        %2417 = vmatpush1.msra.mxu0 0.0
        %2418 = vmatprep.subr.mxu0 0.0
        %2419 = vmatpush1.msra.mxu0 0.0
        %2420 = vmatprep.subr.mxu0 0.0
        %2421 = vmatpush1.msra.mxu0 0.0
        %2422 = vmatprep.subr.mxu0 0.0
        %2423 = vmatpush1.msra.mxu0 0.0
        %2424 = vmatprep.subr.mxu0 0.0
        %2425 = vmatpush1.msra.mxu0 0.0
        %2426 = vmatprep.subr.mxu0 0.0
        %2427 = vmatpush1.msra.mxu0 0.0
        %2428 = vmatprep.subr.mxu0 0.0
        %2429 = vmatpush1.msra.mxu0 0.0
        %2430 = vmatprep.subr.mxu0 0.0
        %2431 = vmatpush1.msra.mxu0 0.0
        %2432 = vmatprep.subr.mxu0 0.0
        %2433 = vmatpush1.msra.mxu0 0.0
        %2434 = vmatprep.subr.mxu0 0.0
        %2435 = vmatpush1.msra.mxu0 0.0
        %2436 = vmatprep.subr.mxu0 0.0
        %2437 = vmatpush1.msra.mxu0 0.0
        %2438 = vmatprep.subr.mxu0 0.0
        %2439 = vmatpush1.msra.mxu0 0.0
        %2440 = vmatprep.subr.mxu0 0.0
        %2441 = vmatpush1.msra.mxu0 0.0
        %2442 = vmatprep.subr.mxu0 0.0
        %2443 = vmatpush1.msra.mxu0 0.0
        %2444 = vmatprep.subr.mxu0 0.0
        %2445 = vmatpush1.msra.mxu0 0.0
        %2446 = vmatprep.subr.mxu0 0.0
        %2447 = vmatpush1.msra.mxu0 0.0
        %2448 = vmatprep.subr.mxu0 0.0
        %2449 = vmatpush1.msra.mxu0 0.0
        %2450 = vmatprep.subr.mxu0 0.0
        %2451 = vmatpush1.msra.mxu0 0.0
        %2452 = vmatprep.subr.mxu0 0.0
        %2453 = vmatpush1.msra.mxu0 0.0
        %2454 = vmatprep.subr.mxu0 0.0
        %2455 = vmatpush1.msra.mxu0 0.0
        %2456 = vmatprep.subr.mxu0 0.0
        %2457 = vmatpush1.msra.mxu0 0.0
        %2458 = vmatprep.subr.mxu0 0.0
        %2459 = vmatpush1.msra.mxu0 0.0
        %2460 = vmatprep.subr.mxu0 0.0
        %2461 = vmatpush1.msra.mxu0 0.0
        %2462 = vmatprep.subr.mxu0 0.0
        %2463 = vmatpush1.msra.mxu0 0.0
        %2464 = vmatprep.mubr.f32.mxu0 0.0
        %2465 = vmatmul.mubr.f32.gmra.mrb[0].mxu0 %v2398
        %v2466 = vpop.f32.mrb[0].mxu0
        %v2467 = vadd.f32 0.0, %v2466
        %v2468 = vpop.f32.mrb[0].mxu0
        %2469 = vdwg.mxu0
        %2470 = vmatprep.subr.mxu0 0.0
        %2471 = vmatpush1.msra.mxu0 %v223
        %2472 = vmatprep.subr.mxu0 0.0
        %2473 = vmatpush1.msra.mxu0 %v224
        %2474 = vmatprep.subr.mxu0 0.0
        %2475 = vmatpush1.msra.mxu0 0.0
        %2476 = vmatprep.subr.mxu0 0.0
        %2477 = vmatpush1.msra.mxu0 0.0
        %2478 = vmatprep.subr.mxu0 0.0
        %2479 = vmatpush1.msra.mxu0 0.0
        %2480 = vmatprep.subr.mxu0 0.0
        %2481 = vmatpush1.msra.mxu0 0.0
        %2482 = vmatprep.subr.mxu0 0.0
        %2483 = vmatpush1.msra.mxu0 0.0
        %2484 = vmatprep.subr.mxu0 0.0
        %2485 = vmatpush1.msra.mxu0 0.0
        %2486 = vmatprep.subr.mxu0 0.0
        %2487 = vmatpush1.msra.mxu0 0.0
        %2488 = vmatprep.subr.mxu0 0.0
        %2489 = vmatpush1.msra.mxu0 0.0
        %2490 = vmatprep.subr.mxu0 0.0
        %2491 = vmatpush1.msra.mxu0 0.0
        %2492 = vmatprep.subr.mxu0 0.0
        %2493 = vmatpush1.msra.mxu0 0.0
        %2494 = vmatprep.subr.mxu0 0.0
        %2495 = vmatpush1.msra.mxu0 0.0
        %2496 = vmatprep.subr.mxu0 0.0
        %2497 = vmatpush1.msra.mxu0 0.0
        %2498 = vmatprep.subr.mxu0 0.0
        %2499 = vmatpush1.msra.mxu0 0.0
        %2500 = vmatprep.subr.mxu0 0.0
        %2501 = vmatpush1.msra.mxu0 0.0
        %2502 = vmatprep.subr.mxu0 0.0
        %2503 = vmatpush1.msra.mxu0 0.0
        %2504 = vmatprep.subr.mxu0 0.0
        %2505 = vmatpush1.msra.mxu0 0.0
        %2506 = vmatprep.subr.mxu0 0.0
        %2507 = vmatpush1.msra.mxu0 0.0
        %2508 = vmatprep.subr.mxu0 0.0
        %2509 = vmatpush1.msra.mxu0 0.0
        %2510 = vmatprep.subr.mxu0 0.0
        %2511 = vmatpush1.msra.mxu0 0.0
        %2512 = vmatprep.subr.mxu0 0.0
        %2513 = vmatpush1.msra.mxu0 0.0
        %2514 = vmatprep.subr.mxu0 0.0
        %2515 = vmatpush1.msra.mxu0 0.0
        %2516 = vmatprep.subr.mxu0 0.0
        %2517 = vmatpush1.msra.mxu0 0.0
        %2518 = vmatprep.subr.mxu0 0.0
        %2519 = vmatpush1.msra.mxu0 0.0
        %2520 = vmatprep.subr.mxu0 0.0
        %2521 = vmatpush1.msra.mxu0 0.0
        %2522 = vmatprep.subr.mxu0 0.0
        %2523 = vmatpush1.msra.mxu0 0.0
        %2524 = vmatprep.subr.mxu0 0.0
        %2525 = vmatpush1.msra.mxu0 0.0
        %2526 = vmatprep.subr.mxu0 0.0
        %2527 = vmatpush1.msra.mxu0 0.0
        %2528 = vmatprep.subr.mxu0 0.0
        %2529 = vmatpush1.msra.mxu0 0.0
        %2530 = vmatprep.subr.mxu0 0.0
        %2531 = vmatpush1.msra.mxu0 0.0
        %2532 = vmatprep.subr.mxu0 0.0
        %2533 = vmatpush1.msra.mxu0 0.0
        %2534 = vmatprep.mubr.f32.mxu0 0.0
        %2535 = vmatmul.mubr.f32.gmra.mrb[0].mxu0 %v2398
        %v2536 = vpop.f32.mrb[0].mxu0
        %v2537 = vadd.f32 0.0, %v2536
        %v2538 = vpop.f32.mrb[0].mxu0
        %2539 = vdwg.mxu0
        %v2541 = vsel %vm541, %v2393, 0
        %2543 = vmatprep.subr.mxu0 0.0
        %2544 = vmatpush1.msra.mxu0 %v2541
        %2545 = vmatprep.subr.mxu0 0.0
        %2546 = vmatpush1.msra.mxu0 0.0
        %2547 = vmatprep.subr.mxu0 0.0
        %2548 = vmatpush1.msra.mxu0 0.0
        %2549 = vmatprep.subr.mxu0 0.0
        %2550 = vmatpush1.msra.mxu0 0.0
        %2551 = vmatprep.subr.mxu0 0.0
        %2552 = vmatpush1.msra.mxu0 0.0
        %2553 = vmatprep.subr.mxu0 0.0
        %2554 = vmatpush1.msra.mxu0 0.0
        %2555 = vmatprep.subr.mxu0 0.0
        %2556 = vmatpush1.msra.mxu0 0.0
        %2557 = vmatprep.subr.mxu0 0.0
        %2558 = vmatpush1.msra.mxu0 0.0
        %2559 = vmatprep.subr.mxu0 0.0
        %2560 = vmatpush1.msra.mxu0 0.0
        %2561 = vmatprep.subr.mxu0 0.0
        %2562 = vmatpush1.msra.mxu0 0.0
        %2563 = vmatprep.subr.mxu0 0.0
        %2564 = vmatpush1.msra.mxu0 0.0
        %2565 = vmatprep.subr.mxu0 0.0
        %2566 = vmatpush1.msra.mxu0 0.0
        %2567 = vmatprep.subr.mxu0 0.0
        %2568 = vmatpush1.msra.mxu0 0.0
        %2569 = vmatprep.subr.mxu0 0.0
        %2570 = vmatpush1.msra.mxu0 0.0
        %2571 = vmatprep.subr.mxu0 0.0
        %2572 = vmatpush1.msra.mxu0 0.0
        %2573 = vmatprep.subr.mxu0 0.0
        %2574 = vmatpush1.msra.mxu0 0.0
        %2575 = vmatprep.subr.mxu0 0.0
        %2576 = vmatpush1.msra.mxu0 0.0
        %2577 = vmatprep.subr.mxu0 0.0
        %2578 = vmatpush1.msra.mxu0 0.0
        %2579 = vmatprep.subr.mxu0 0.0
        %2580 = vmatpush1.msra.mxu0 0.0
        %2581 = vmatprep.subr.mxu0 0.0
        %2582 = vmatpush1.msra.mxu0 0.0
        %2583 = vmatprep.subr.mxu0 0.0
        %2584 = vmatpush1.msra.mxu0 0.0
        %2585 = vmatprep.subr.mxu0 0.0
        %2586 = vmatpush1.msra.mxu0 0.0
        %2587 = vmatprep.subr.mxu0 0.0
        %2588 = vmatpush1.msra.mxu0 0.0
        %2589 = vmatprep.subr.mxu0 0.0
        %2590 = vmatpush1.msra.mxu0 0.0
        %2591 = vmatprep.subr.mxu0 0.0
        %2592 = vmatpush1.msra.mxu0 0.0
        %2593 = vmatprep.subr.mxu0 0.0
        %2594 = vmatpush1.msra.mxu0 0.0
        %2595 = vmatprep.subr.mxu0 0.0
        %2596 = vmatpush1.msra.mxu0 0.0
        %2597 = vmatprep.subr.mxu0 0.0
        %2598 = vmatpush1.msra.mxu0 0.0
        %2599 = vmatprep.subr.mxu0 0.0
        %2600 = vmatpush1.msra.mxu0 0.0
        %2601 = vmatprep.subr.mxu0 0.0
        %2602 = vmatpush1.msra.mxu0 0.0
        %2603 = vmatprep.subr.mxu0 0.0
        %2604 = vmatpush1.msra.mxu0 0.0
        %2605 = vmatprep.subr.mxu0 0.0
        %2606 = vmatpush1.msra.mxu0 0.0
        %2607 = vmatprep.mubr.f32.mxu0 0.0
        %2608 = vmatmul.mubr.f32.gmra.mrb[0].mxu0 %v539
        %v2609 = vpop.f32.mrb[0].mxu0
        %v2610 = vadd.f32 0.0, %v2609
        %v2611 = vpop.f32.mrb[0].mxu0
        %2612 = vdwg.mxu0
        %v2614 = vsel %vm541, %v2323, 0
        %2616 = vmatprep.subr.mxu0 0.0
        %2617 = vmatpush1.msra.mxu0 %v2614
        %2618 = vmatprep.subr.mxu0 0.0
        %2619 = vmatpush1.msra.mxu0 0.0
        %2620 = vmatprep.subr.mxu0 0.0
        %2621 = vmatpush1.msra.mxu0 0.0
        %2622 = vmatprep.subr.mxu0 0.0
        %2623 = vmatpush1.msra.mxu0 0.0
        %2624 = vmatprep.subr.mxu0 0.0
        %2625 = vmatpush1.msra.mxu0 0.0
        %2626 = vmatprep.subr.mxu0 0.0
        %2627 = vmatpush1.msra.mxu0 0.0
        %2628 = vmatprep.subr.mxu0 0.0
        %2629 = vmatpush1.msra.mxu0 0.0
        %2630 = vmatprep.subr.mxu0 0.0
        %2631 = vmatpush1.msra.mxu0 0.0
        %2632 = vmatprep.subr.mxu0 0.0
        %2633 = vmatpush1.msra.mxu0 0.0
        %2634 = vmatprep.subr.mxu0 0.0
        %2635 = vmatpush1.msra.mxu0 0.0
        %2636 = vmatprep.subr.mxu0 0.0
        %2637 = vmatpush1.msra.mxu0 0.0
        %2638 = vmatprep.subr.mxu0 0.0
        %2639 = vmatpush1.msra.mxu0 0.0
        %2640 = vmatprep.subr.mxu0 0.0
        %2641 = vmatpush1.msra.mxu0 0.0
        %2642 = vmatprep.subr.mxu0 0.0
        %2643 = vmatpush1.msra.mxu0 0.0
        %2644 = vmatprep.subr.mxu0 0.0
        %2645 = vmatpush1.msra.mxu0 0.0
        %2646 = vmatprep.subr.mxu0 0.0
        %2647 = vmatpush1.msra.mxu0 0.0
        %2648 = vmatprep.subr.mxu0 0.0
        %2649 = vmatpush1.msra.mxu0 0.0
        %2650 = vmatprep.subr.mxu0 0.0
        %2651 = vmatpush1.msra.mxu0 0.0
        %2652 = vmatprep.subr.mxu0 0.0
        %2653 = vmatpush1.msra.mxu0 0.0
        %2654 = vmatprep.subr.mxu0 0.0
        %2655 = vmatpush1.msra.mxu0 0.0
        %2656 = vmatprep.subr.mxu0 0.0
        %2657 = vmatpush1.msra.mxu0 0.0
        %2658 = vmatprep.subr.mxu0 0.0
        %2659 = vmatpush1.msra.mxu0 0.0
        %2660 = vmatprep.subr.mxu0 0.0
        %2661 = vmatpush1.msra.mxu0 0.0
        %2662 = vmatprep.subr.mxu0 0.0
        %2663 = vmatpush1.msra.mxu0 0.0
        %2664 = vmatprep.subr.mxu0 0.0
        %2665 = vmatpush1.msra.mxu0 0.0
        %2666 = vmatprep.subr.mxu0 0.0
        %2667 = vmatpush1.msra.mxu0 0.0
        %2668 = vmatprep.subr.mxu0 0.0
        %2669 = vmatpush1.msra.mxu0 0.0
        %2670 = vmatprep.subr.mxu0 0.0
        %2671 = vmatpush1.msra.mxu0 0.0
        %2672 = vmatprep.subr.mxu0 0.0
        %2673 = vmatpush1.msra.mxu0 0.0
        %2674 = vmatprep.subr.mxu0 0.0
        %2675 = vmatpush1.msra.mxu0 0.0
        %2676 = vmatprep.subr.mxu0 0.0
        %2677 = vmatpush1.msra.mxu0 0.0
        %2678 = vmatprep.subr.mxu0 0.0
        %2679 = vmatpush1.msra.mxu0 0.0
        %2680 = vmatprep.mubr.f32.mxu0 0.0
        %2681 = vmatmul.mubr.f32.gmra.mrb[0].mxu0 %v616
        %v2682 = vpop.f32.mrb[0].mxu0
        %v2683 = vadd.f32 %v2610, %v2682
        %v2684 = vpop.f32.mrb[0].mxu0
        %2685 = vdwg.mxu0
        %v2687 = vsel %vm541, %v2467, 0
        %2689 = vmatprep.subr.mxu0 0.0
        %2690 = vmatpush1.msra.mxu0 %v2687
        %2691 = vmatprep.subr.mxu0 0.0
        %2692 = vmatpush1.msra.mxu0 0.0
        %2693 = vmatprep.subr.mxu0 0.0
        %2694 = vmatpush1.msra.mxu0 0.0
        %2695 = vmatprep.subr.mxu0 0.0
        %2696 = vmatpush1.msra.mxu0 0.0
        %2697 = vmatprep.subr.mxu0 0.0
        %2698 = vmatpush1.msra.mxu0 0.0
        %2699 = vmatprep.subr.mxu0 0.0
        %2700 = vmatpush1.msra.mxu0 0.0
        %2701 = vmatprep.subr.mxu0 0.0
        %2702 = vmatpush1.msra.mxu0 0.0
        %2703 = vmatprep.subr.mxu0 0.0
        %2704 = vmatpush1.msra.mxu0 0.0
        %2705 = vmatprep.subr.mxu0 0.0
        %2706 = vmatpush1.msra.mxu0 0.0
        %2707 = vmatprep.subr.mxu0 0.0
        %2708 = vmatpush1.msra.mxu0 0.0
        %2709 = vmatprep.subr.mxu0 0.0
        %2710 = vmatpush1.msra.mxu0 0.0
        %2711 = vmatprep.subr.mxu0 0.0
        %2712 = vmatpush1.msra.mxu0 0.0
        %2713 = vmatprep.subr.mxu0 0.0
        %2714 = vmatpush1.msra.mxu0 0.0
        %2715 = vmatprep.subr.mxu0 0.0
        %2716 = vmatpush1.msra.mxu0 0.0
        %2717 = vmatprep.subr.mxu0 0.0
        %2718 = vmatpush1.msra.mxu0 0.0
        %2719 = vmatprep.subr.mxu0 0.0
        %2720 = vmatpush1.msra.mxu0 0.0
        %2721 = vmatprep.subr.mxu0 0.0
        %2722 = vmatpush1.msra.mxu0 0.0
        %2723 = vmatprep.subr.mxu0 0.0
        %2724 = vmatpush1.msra.mxu0 0.0
        %2725 = vmatprep.subr.mxu0 0.0
        %2726 = vmatpush1.msra.mxu0 0.0
        %2727 = vmatprep.subr.mxu0 0.0
        %2728 = vmatpush1.msra.mxu0 0.0
        %2729 = vmatprep.subr.mxu0 0.0
        %2730 = vmatpush1.msra.mxu0 0.0
        %2731 = vmatprep.subr.mxu0 0.0
        %2732 = vmatpush1.msra.mxu0 0.0
        %2733 = vmatprep.subr.mxu0 0.0
        %2734 = vmatpush1.msra.mxu0 0.0
        %2735 = vmatprep.subr.mxu0 0.0
        %2736 = vmatpush1.msra.mxu0 0.0
        %2737 = vmatprep.subr.mxu0 0.0
        %2738 = vmatpush1.msra.mxu0 0.0
        %2739 = vmatprep.subr.mxu0 0.0
        %2740 = vmatpush1.msra.mxu0 0.0
        %2741 = vmatprep.subr.mxu0 0.0
        %2742 = vmatpush1.msra.mxu0 0.0
        %2743 = vmatprep.subr.mxu0 0.0
        %2744 = vmatpush1.msra.mxu0 0.0
        %2745 = vmatprep.subr.mxu0 0.0
        %2746 = vmatpush1.msra.mxu0 0.0
        %2747 = vmatprep.subr.mxu0 0.0
        %2748 = vmatpush1.msra.mxu0 0.0
        %2749 = vmatprep.subr.mxu0 0.0
        %2750 = vmatpush1.msra.mxu0 0.0
        %2751 = vmatprep.subr.mxu0 0.0
        %2752 = vmatpush1.msra.mxu0 0.0
        %2753 = vmatprep.mubr.f32.mxu0 0.0
        %2754 = vmatmul.mubr.f32.gmra.mrb[0].mxu0 %v692
        %v2755 = vpop.f32.mrb[0].mxu0
        %v2756 = vadd.f32 0.0, %v2755
        %v2757 = vpop.f32.mrb[0].mxu0
        %2758 = vdwg.mxu0
        %v2759 = vadd.f32 %v2683, %v2756
        %v2761 = vsel %vm541, %v2537, 0
        %2763 = vmatprep.subr.mxu0 0.0
        %2764 = vmatpush1.msra.mxu0 %v2761
        %2765 = vmatprep.subr.mxu0 0.0
        %2766 = vmatpush1.msra.mxu0 0.0
        %2767 = vmatprep.subr.mxu0 0.0
        %2768 = vmatpush1.msra.mxu0 0.0
        %2769 = vmatprep.subr.mxu0 0.0
        %2770 = vmatpush1.msra.mxu0 0.0
        %2771 = vmatprep.subr.mxu0 0.0
        %2772 = vmatpush1.msra.mxu0 0.0
        %2773 = vmatprep.subr.mxu0 0.0
        %2774 = vmatpush1.msra.mxu0 0.0
        %2775 = vmatprep.subr.mxu0 0.0
        %2776 = vmatpush1.msra.mxu0 0.0
        %2777 = vmatprep.subr.mxu0 0.0
        %2778 = vmatpush1.msra.mxu0 0.0
        %2779 = vmatprep.subr.mxu0 0.0
        %2780 = vmatpush1.msra.mxu0 0.0
        %2781 = vmatprep.subr.mxu0 0.0
        %2782 = vmatpush1.msra.mxu0 0.0
        %2783 = vmatprep.subr.mxu0 0.0
        %2784 = vmatpush1.msra.mxu0 0.0
        %2785 = vmatprep.subr.mxu0 0.0
        %2786 = vmatpush1.msra.mxu0 0.0
        %2787 = vmatprep.subr.mxu0 0.0
        %2788 = vmatpush1.msra.mxu0 0.0
        %2789 = vmatprep.subr.mxu0 0.0
        %2790 = vmatpush1.msra.mxu0 0.0
        %2791 = vmatprep.subr.mxu0 0.0
        %2792 = vmatpush1.msra.mxu0 0.0
        %2793 = vmatprep.subr.mxu0 0.0
        %2794 = vmatpush1.msra.mxu0 0.0
        %2795 = vmatprep.subr.mxu0 0.0
        %2796 = vmatpush1.msra.mxu0 0.0
        %2797 = vmatprep.subr.mxu0 0.0
        %2798 = vmatpush1.msra.mxu0 0.0
        %2799 = vmatprep.subr.mxu0 0.0
        %2800 = vmatpush1.msra.mxu0 0.0
        %2801 = vmatprep.subr.mxu0 0.0
        %2802 = vmatpush1.msra.mxu0 0.0
        %2803 = vmatprep.subr.mxu0 0.0
        %2804 = vmatpush1.msra.mxu0 0.0
        %2805 = vmatprep.subr.mxu0 0.0
        %2806 = vmatpush1.msra.mxu0 0.0
        %2807 = vmatprep.subr.mxu0 0.0
        %2808 = vmatpush1.msra.mxu0 0.0
        %2809 = vmatprep.subr.mxu0 0.0
        %2810 = vmatpush1.msra.mxu0 0.0
        %2811 = vmatprep.subr.mxu0 0.0
        %2812 = vmatpush1.msra.mxu0 0.0
        %2813 = vmatprep.subr.mxu0 0.0
        %2814 = vmatpush1.msra.mxu0 0.0
        %2815 = vmatprep.subr.mxu0 0.0
        %2816 = vmatpush1.msra.mxu0 0.0
        %2817 = vmatprep.subr.mxu0 0.0
        %2818 = vmatpush1.msra.mxu0 0.0
        %2819 = vmatprep.subr.mxu0 0.0
        %2820 = vmatpush1.msra.mxu0 0.0
        %2821 = vmatprep.subr.mxu0 0.0
        %2822 = vmatpush1.msra.mxu0 0.0
        %2823 = vmatprep.subr.mxu0 0.0
        %2824 = vmatpush1.msra.mxu0 0.0
        %2825 = vmatprep.subr.mxu0 0.0
        %2826 = vmatpush1.msra.mxu0 0.0
        %2827 = vmatprep.mubr.f32.mxu0 0.0
        %2828 = vmatmul.mubr.f32.gmra.mrb[0].mxu0 %v769
        %v2829 = vpop.f32.mrb[0].mxu0
        %v2830 = vadd.f32 0.0, %v2829
        %v2831 = vpop.f32.mrb[0].mxu0
        %2832 = vdwg.mxu0
        %v2833 = vadd.f32 %v2759, %v2830
        %v2834 = vadd.f32 %v2833, %v848
        %v2836 = vcombine.high %v2834, %v2834
        %v2838 = vunpack.c.l.s4 1966171168
        %v2839 = vunpack.c.0.s8 %v2838
        %v2840 = vlaneseq
        %v2841 = vshrl.u32 %v2840, 7
        %v2842 = vsub.s32 %v2839, %v2841
        %v2843 = vrot.slane %v2834, %v2842
        %v2845 = vunpack.c.l.s4 1966171168
        %v2846 = vunpack.c.0.s8 %v2845
        %v2847 = vlaneseq
        %v2848 = vshrl.u32 %v2847, 7
        %v2849 = vsub.s32 %v2846, %v2848
        %v2850 = vrot.slane %v2836, %v2849
        %v2851 = vcombine.high %v2843, %v2843
        %v2852 = vcombine.high %v2850, %v2850
        %v2854 = vunpack.c.l.s4 1966171168
        %v2855 = vunpack.c.0.s8 %v2854
        %v2856 = vlaneseq
        %v2857 = vshrl.u32 %v2856, 7
        %v2858 = vsub.s32 %v2855, %v2857
        %v2859 = vrot.slane %v2843, %v2858
        %v2861 = vunpack.c.l.s4 1966171168
        %v2862 = vunpack.c.0.s8 %v2861
        %v2863 = vlaneseq
        %v2864 = vshrl.u32 %v2863, 7
        %v2865 = vsub.s32 %v2862, %v2864
        %v2866 = vrot.slane %v2850, %v2865
        %v2868 = vunpack.c.l.s4 1966171168
        %v2869 = vunpack.c.0.s8 %v2868
        %v2870 = vlaneseq
        %v2871 = vshrl.u32 %v2870, 7
        %v2872 = vsub.s32 %v2869, %v2871
        %v2873 = vrot.slane %v2851, %v2872
        %v2875 = vunpack.c.l.s4 1966171168
        %v2876 = vunpack.c.0.s8 %v2875
        %v2877 = vlaneseq
        %v2878 = vshrl.u32 %v2877, 7
        %v2879 = vsub.s32 %v2876, %v2878
        %v2880 = vrot.slane %v2852, %v2879
        %v2881 = vcombine.high %v2859, %v2859
        %v2882 = vcombine.high %v2866, %v2866
        %v2883 = vcombine.high %v2873, %v2873
        %v2884 = vcombine.high %v2880, %v2880
        %2893 = vst.msk [vmem:[%s205 + $0x3] sm:$0x1] %vm909, %v2859
        %2894 = vst.msk [vmem:[%s205 + $0xb] sm:$0x1] %vm909, %v2873
        %2895 = vst.msk [vmem:[%s205 + $0x13] sm:$0x1] %vm909, %v2881
        %2896 = vst.msk [vmem:[%s205 + $0x1b] sm:$0x1] %vm909, %v2883
        %2897 = vst.msk [vmem:[%s205 + $0x23] sm:$0x1] %vm909, %v2866
        %2898 = vst.msk [vmem:[%s205 + $0x2b] sm:$0x1] %vm909, %v2880
        %2899 = vst.msk [vmem:[%s205 + $0x33] sm:$0x1] %vm909, %v2882
        %2900 = vst.msk [vmem:[%s205 + $0x3b] sm:$0x1] %vm909, %v2884
        %v2901 = vld [vmem:[%s183 + $0x4] sm:$0x1]
        %v2902 = vld [vmem:[%s183 + $0xc] sm:$0x1]
        %v2903 = vld [vmem:[%s183 + $0x14] sm:$0x1]
        %v2904 = vld [vmem:[%s183 + $0x1c] sm:$0x1]
        %v2909 = vrot.slane %v2902, 7
        %v2910 = vsel %vm242, %v2909, %v2901
        %v2911 = vrot.slane %v2903, 6
        %v2912 = vsel %vm245, %v2911, %v2910
        %v2913 = vrot.slane %v2904, 5
        %v2914 = vsel %vm248, %v2913, %v2912
        %v2915 = vsel %vm250, %v2914, 0
        %2917 = vmatprep.subr.mxu0 0.0
        %2918 = vmatpush1.msra.mxu0 %v216
        %2919 = vmatprep.subr.mxu0 0.0
        %2920 = vmatpush1.msra.mxu0 %v217
        %2921 = vmatprep.subr.mxu0 0.0
        %2922 = vmatpush1.msra.mxu0 0.0
        %2923 = vmatprep.subr.mxu0 0.0
        %2924 = vmatpush1.msra.mxu0 0.0
        %2925 = vmatprep.subr.mxu0 0.0
        %2926 = vmatpush1.msra.mxu0 0.0
        %2927 = vmatprep.subr.mxu0 0.0
        %2928 = vmatpush1.msra.mxu0 0.0
        %2929 = vmatprep.subr.mxu0 0.0
        %2930 = vmatpush1.msra.mxu0 0.0
        %2931 = vmatprep.subr.mxu0 0.0
        %2932 = vmatpush1.msra.mxu0 0.0
        %2933 = vmatprep.subr.mxu0 0.0
        %2934 = vmatpush1.msra.mxu0 0.0
        %2935 = vmatprep.subr.mxu0 0.0
        %2936 = vmatpush1.msra.mxu0 0.0
        %2937 = vmatprep.subr.mxu0 0.0
        %2938 = vmatpush1.msra.mxu0 0.0
        %2939 = vmatprep.subr.mxu0 0.0
        %2940 = vmatpush1.msra.mxu0 0.0
        %2941 = vmatprep.subr.mxu0 0.0
        %2942 = vmatpush1.msra.mxu0 0.0
        %2943 = vmatprep.subr.mxu0 0.0
        %2944 = vmatpush1.msra.mxu0 0.0
        %2945 = vmatprep.subr.mxu0 0.0
        %2946 = vmatpush1.msra.mxu0 0.0
        %2947 = vmatprep.subr.mxu0 0.0
        %2948 = vmatpush1.msra.mxu0 0.0
        %2949 = vmatprep.subr.mxu0 0.0
        %2950 = vmatpush1.msra.mxu0 0.0
        %2951 = vmatprep.subr.mxu0 0.0
        %2952 = vmatpush1.msra.mxu0 0.0
        %2953 = vmatprep.subr.mxu0 0.0
        %2954 = vmatpush1.msra.mxu0 0.0
        %2955 = vmatprep.subr.mxu0 0.0
        %2956 = vmatpush1.msra.mxu0 0.0
        %2957 = vmatprep.subr.mxu0 0.0
        %2958 = vmatpush1.msra.mxu0 0.0
        %2959 = vmatprep.subr.mxu0 0.0
        %2960 = vmatpush1.msra.mxu0 0.0
        %2961 = vmatprep.subr.mxu0 0.0
        %2962 = vmatpush1.msra.mxu0 0.0
        %2963 = vmatprep.subr.mxu0 0.0
        %2964 = vmatpush1.msra.mxu0 0.0
        %2965 = vmatprep.subr.mxu0 0.0
        %2966 = vmatpush1.msra.mxu0 0.0
        %2967 = vmatprep.subr.mxu0 0.0
        %2968 = vmatpush1.msra.mxu0 0.0
        %2969 = vmatprep.subr.mxu0 0.0
        %2970 = vmatpush1.msra.mxu0 0.0
        %2971 = vmatprep.subr.mxu0 0.0
        %2972 = vmatpush1.msra.mxu0 0.0
        %2973 = vmatprep.subr.mxu0 0.0
        %2974 = vmatpush1.msra.mxu0 0.0
        %2975 = vmatprep.subr.mxu0 0.0
        %2976 = vmatpush1.msra.mxu0 0.0
        %2977 = vmatprep.subr.mxu0 0.0
        %2978 = vmatpush1.msra.mxu0 0.0
        %2979 = vmatprep.subr.mxu0 0.0
        %2980 = vmatpush1.msra.mxu0 0.0
        %2981 = vmatprep.mubr.f32.mxu0 0.0
        %2982 = vmatmul.mubr.f32.gmra.mrb[0].mxu0 %v2915
        %v2983 = vpop.f32.mrb[0].mxu0
        %v2984 = vadd.f32 0.0, %v2983
        %v2985 = vpop.f32.mrb[0].mxu0
        %2986 = vdwg.mxu0
        %2987 = vmatprep.subr.mxu0 0.0
        %2988 = vmatpush1.msra.mxu0 %v223
        %2989 = vmatprep.subr.mxu0 0.0
        %2990 = vmatpush1.msra.mxu0 %v224
        %2991 = vmatprep.subr.mxu0 0.0
        %2992 = vmatpush1.msra.mxu0 0.0
        %2993 = vmatprep.subr.mxu0 0.0
        %2994 = vmatpush1.msra.mxu0 0.0
        %2995 = vmatprep.subr.mxu0 0.0
        %2996 = vmatpush1.msra.mxu0 0.0
        %2997 = vmatprep.subr.mxu0 0.0
        %2998 = vmatpush1.msra.mxu0 0.0
        %2999 = vmatprep.subr.mxu0 0.0
        %3000 = vmatpush1.msra.mxu0 0.0
        %3001 = vmatprep.subr.mxu0 0.0
        %3002 = vmatpush1.msra.mxu0 0.0
        %3003 = vmatprep.subr.mxu0 0.0
        %3004 = vmatpush1.msra.mxu0 0.0
        %3005 = vmatprep.subr.mxu0 0.0
        %3006 = vmatpush1.msra.mxu0 0.0
        %3007 = vmatprep.subr.mxu0 0.0
        %3008 = vmatpush1.msra.mxu0 0.0
        %3009 = vmatprep.subr.mxu0 0.0
        %3010 = vmatpush1.msra.mxu0 0.0
        %3011 = vmatprep.subr.mxu0 0.0
        %3012 = vmatpush1.msra.mxu0 0.0
        %3013 = vmatprep.subr.mxu0 0.0
        %3014 = vmatpush1.msra.mxu0 0.0
        %3015 = vmatprep.subr.mxu0 0.0
        %3016 = vmatpush1.msra.mxu0 0.0
        %3017 = vmatprep.subr.mxu0 0.0
        %3018 = vmatpush1.msra.mxu0 0.0
        %3019 = vmatprep.subr.mxu0 0.0
        %3020 = vmatpush1.msra.mxu0 0.0
        %3021 = vmatprep.subr.mxu0 0.0
        %3022 = vmatpush1.msra.mxu0 0.0
        %3023 = vmatprep.subr.mxu0 0.0
        %3024 = vmatpush1.msra.mxu0 0.0
        %3025 = vmatprep.subr.mxu0 0.0
        %3026 = vmatpush1.msra.mxu0 0.0
        %3027 = vmatprep.subr.mxu0 0.0
        %3028 = vmatpush1.msra.mxu0 0.0
        %3029 = vmatprep.subr.mxu0 0.0
        %3030 = vmatpush1.msra.mxu0 0.0
        %3031 = vmatprep.subr.mxu0 0.0
        %3032 = vmatpush1.msra.mxu0 0.0
        %3033 = vmatprep.subr.mxu0 0.0
        %3034 = vmatpush1.msra.mxu0 0.0
        %3035 = vmatprep.subr.mxu0 0.0
        %3036 = vmatpush1.msra.mxu0 0.0
        %3037 = vmatprep.subr.mxu0 0.0
        %3038 = vmatpush1.msra.mxu0 0.0
        %3039 = vmatprep.subr.mxu0 0.0
        %3040 = vmatpush1.msra.mxu0 0.0
        %3041 = vmatprep.subr.mxu0 0.0
        %3042 = vmatpush1.msra.mxu0 0.0
        %3043 = vmatprep.subr.mxu0 0.0
        %3044 = vmatpush1.msra.mxu0 0.0
        %3045 = vmatprep.subr.mxu0 0.0
        %3046 = vmatpush1.msra.mxu0 0.0
        %3047 = vmatprep.subr.mxu0 0.0
        %3048 = vmatpush1.msra.mxu0 0.0
        %3049 = vmatprep.subr.mxu0 0.0
        %3050 = vmatpush1.msra.mxu0 0.0
        %3051 = vmatprep.mubr.f32.mxu0 0.0
        %3052 = vmatmul.mubr.f32.gmra.mrb[0].mxu0 %v2915
        %v3053 = vpop.f32.mrb[0].mxu0
        %v3054 = vadd.f32 0.0, %v3053
        %v3055 = vpop.f32.mrb[0].mxu0
        %3056 = vdwg.mxu0
        %3057 = vrot.lane.b32.xlu0 %v2914, 112
        %v3058 = vpop.permute.xlu0 %3057
        %v3059 = vsel %vm250, %v3058, 0
        %3061 = vmatprep.subr.mxu0 0.0
        %3062 = vmatpush1.msra.mxu0 %v216
        %3063 = vmatprep.subr.mxu0 0.0
        %3064 = vmatpush1.msra.mxu0 %v217
        %3065 = vmatprep.subr.mxu0 0.0
        %3066 = vmatpush1.msra.mxu0 0.0
        %3067 = vmatprep.subr.mxu0 0.0
        %3068 = vmatpush1.msra.mxu0 0.0
        %3069 = vmatprep.subr.mxu0 0.0
        %3070 = vmatpush1.msra.mxu0 0.0
        %3071 = vmatprep.subr.mxu0 0.0
        %3072 = vmatpush1.msra.mxu0 0.0
        %3073 = vmatprep.subr.mxu0 0.0
        %3074 = vmatpush1.msra.mxu0 0.0
        %3075 = vmatprep.subr.mxu0 0.0
        %3076 = vmatpush1.msra.mxu0 0.0
        %3077 = vmatprep.subr.mxu0 0.0
        %3078 = vmatpush1.msra.mxu0 0.0
        %3079 = vmatprep.subr.mxu0 0.0
        %3080 = vmatpush1.msra.mxu0 0.0
        %3081 = vmatprep.subr.mxu0 0.0
        %3082 = vmatpush1.msra.mxu0 0.0
        %3083 = vmatprep.subr.mxu0 0.0
        %3084 = vmatpush1.msra.mxu0 0.0
        %3085 = vmatprep.subr.mxu0 0.0
        %3086 = vmatpush1.msra.mxu0 0.0
        %3087 = vmatprep.subr.mxu0 0.0
        %3088 = vmatpush1.msra.mxu0 0.0
        %3089 = vmatprep.subr.mxu0 0.0
        %3090 = vmatpush1.msra.mxu0 0.0
        %3091 = vmatprep.subr.mxu0 0.0
        %3092 = vmatpush1.msra.mxu0 0.0
        %3093 = vmatprep.subr.mxu0 0.0
        %3094 = vmatpush1.msra.mxu0 0.0
        %3095 = vmatprep.subr.mxu0 0.0
        %3096 = vmatpush1.msra.mxu0 0.0
        %3097 = vmatprep.subr.mxu0 0.0
        %3098 = vmatpush1.msra.mxu0 0.0
        %3099 = vmatprep.subr.mxu0 0.0
        %3100 = vmatpush1.msra.mxu0 0.0
        %3101 = vmatprep.subr.mxu0 0.0
        %3102 = vmatpush1.msra.mxu0 0.0
        %3103 = vmatprep.subr.mxu0 0.0
        %3104 = vmatpush1.msra.mxu0 0.0
        %3105 = vmatprep.subr.mxu0 0.0
        %3106 = vmatpush1.msra.mxu0 0.0
        %3107 = vmatprep.subr.mxu0 0.0
        %3108 = vmatpush1.msra.mxu0 0.0
        %3109 = vmatprep.subr.mxu0 0.0
        %3110 = vmatpush1.msra.mxu0 0.0
        %3111 = vmatprep.subr.mxu0 0.0
        %3112 = vmatpush1.msra.mxu0 0.0
        %3113 = vmatprep.subr.mxu0 0.0
        %3114 = vmatpush1.msra.mxu0 0.0
        %3115 = vmatprep.subr.mxu0 0.0
        %3116 = vmatpush1.msra.mxu0 0.0
        %3117 = vmatprep.subr.mxu0 0.0
        %3118 = vmatpush1.msra.mxu0 0.0
        %3119 = vmatprep.subr.mxu0 0.0
        %3120 = vmatpush1.msra.mxu0 0.0
        %3121 = vmatprep.subr.mxu0 0.0
        %3122 = vmatpush1.msra.mxu0 0.0
        %3123 = vmatprep.subr.mxu0 0.0
        %3124 = vmatpush1.msra.mxu0 0.0
        %3125 = vmatprep.mubr.f32.mxu0 0.0
        %3126 = vmatmul.mubr.f32.gmra.mrb[0].mxu0 %v3059
        %v3127 = vpop.f32.mrb[0].mxu0
        %v3128 = vadd.f32 0.0, %v3127
        %v3129 = vpop.f32.mrb[0].mxu0
        %3130 = vdwg.mxu0
        %3131 = vmatprep.subr.mxu0 0.0
        %3132 = vmatpush1.msra.mxu0 %v223
        %3133 = vmatprep.subr.mxu0 0.0
        %3134 = vmatpush1.msra.mxu0 %v224
        %3135 = vmatprep.subr.mxu0 0.0
        %3136 = vmatpush1.msra.mxu0 0.0
        %3137 = vmatprep.subr.mxu0 0.0
        %3138 = vmatpush1.msra.mxu0 0.0
        %3139 = vmatprep.subr.mxu0 0.0
        %3140 = vmatpush1.msra.mxu0 0.0
        %3141 = vmatprep.subr.mxu0 0.0
        %3142 = vmatpush1.msra.mxu0 0.0
        %3143 = vmatprep.subr.mxu0 0.0
        %3144 = vmatpush1.msra.mxu0 0.0
        %3145 = vmatprep.subr.mxu0 0.0
        %3146 = vmatpush1.msra.mxu0 0.0
        %3147 = vmatprep.subr.mxu0 0.0
        %3148 = vmatpush1.msra.mxu0 0.0
        %3149 = vmatprep.subr.mxu0 0.0
        %3150 = vmatpush1.msra.mxu0 0.0
        %3151 = vmatprep.subr.mxu0 0.0
        %3152 = vmatpush1.msra.mxu0 0.0
        %3153 = vmatprep.subr.mxu0 0.0
        %3154 = vmatpush1.msra.mxu0 0.0
        %3155 = vmatprep.subr.mxu0 0.0
        %3156 = vmatpush1.msra.mxu0 0.0
        %3157 = vmatprep.subr.mxu0 0.0
        %3158 = vmatpush1.msra.mxu0 0.0
        %3159 = vmatprep.subr.mxu0 0.0
        %3160 = vmatpush1.msra.mxu0 0.0
        %3161 = vmatprep.subr.mxu0 0.0
        %3162 = vmatpush1.msra.mxu0 0.0
        %3163 = vmatprep.subr.mxu0 0.0
        %3164 = vmatpush1.msra.mxu0 0.0
        %3165 = vmatprep.subr.mxu0 0.0
        %3166 = vmatpush1.msra.mxu0 0.0
        %3167 = vmatprep.subr.mxu0 0.0
        %3168 = vmatpush1.msra.mxu0 0.0
        %3169 = vmatprep.subr.mxu0 0.0
        %3170 = vmatpush1.msra.mxu0 0.0
        %3171 = vmatprep.subr.mxu0 0.0
        %3172 = vmatpush1.msra.mxu0 0.0
        %3173 = vmatprep.subr.mxu0 0.0
        %3174 = vmatpush1.msra.mxu0 0.0
        %3175 = vmatprep.subr.mxu0 0.0
        %3176 = vmatpush1.msra.mxu0 0.0
        %3177 = vmatprep.subr.mxu0 0.0
        %3178 = vmatpush1.msra.mxu0 0.0
        %3179 = vmatprep.subr.mxu0 0.0
        %3180 = vmatpush1.msra.mxu0 0.0
        %3181 = vmatprep.subr.mxu0 0.0
        %3182 = vmatpush1.msra.mxu0 0.0
        %3183 = vmatprep.subr.mxu0 0.0
        %3184 = vmatpush1.msra.mxu0 0.0
        %3185 = vmatprep.subr.mxu0 0.0
        %3186 = vmatpush1.msra.mxu0 0.0
        %3187 = vmatprep.subr.mxu0 0.0
        %3188 = vmatpush1.msra.mxu0 0.0
        %3189 = vmatprep.subr.mxu0 0.0
        %3190 = vmatpush1.msra.mxu0 0.0
        %3191 = vmatprep.subr.mxu0 0.0
        %3192 = vmatpush1.msra.mxu0 0.0
        %3193 = vmatprep.subr.mxu0 0.0
        %3194 = vmatpush1.msra.mxu0 0.0
        %3195 = vmatprep.mubr.f32.mxu0 0.0
        %3196 = vmatmul.mubr.f32.gmra.mrb[0].mxu0 %v3059
        %v3197 = vpop.f32.mrb[0].mxu0
        %v3198 = vadd.f32 0.0, %v3197
        %v3199 = vpop.f32.mrb[0].mxu0
        %3200 = vdwg.mxu0
        %v3202 = vsel %vm541, %v3054, 0
        %3204 = vmatprep.subr.mxu0 0.0
        %3205 = vmatpush1.msra.mxu0 %v3202
        %3206 = vmatprep.subr.mxu0 0.0
        %3207 = vmatpush1.msra.mxu0 0.0
        %3208 = vmatprep.subr.mxu0 0.0
        %3209 = vmatpush1.msra.mxu0 0.0
        %3210 = vmatprep.subr.mxu0 0.0
        %3211 = vmatpush1.msra.mxu0 0.0
        %3212 = vmatprep.subr.mxu0 0.0
        %3213 = vmatpush1.msra.mxu0 0.0
        %3214 = vmatprep.subr.mxu0 0.0
        %3215 = vmatpush1.msra.mxu0 0.0
        %3216 = vmatprep.subr.mxu0 0.0
        %3217 = vmatpush1.msra.mxu0 0.0
        %3218 = vmatprep.subr.mxu0 0.0
        %3219 = vmatpush1.msra.mxu0 0.0
        %3220 = vmatprep.subr.mxu0 0.0
        %3221 = vmatpush1.msra.mxu0 0.0
        %3222 = vmatprep.subr.mxu0 0.0
        %3223 = vmatpush1.msra.mxu0 0.0
        %3224 = vmatprep.subr.mxu0 0.0
        %3225 = vmatpush1.msra.mxu0 0.0
        %3226 = vmatprep.subr.mxu0 0.0
        %3227 = vmatpush1.msra.mxu0 0.0
        %3228 = vmatprep.subr.mxu0 0.0
        %3229 = vmatpush1.msra.mxu0 0.0
        %3230 = vmatprep.subr.mxu0 0.0
        %3231 = vmatpush1.msra.mxu0 0.0
        %3232 = vmatprep.subr.mxu0 0.0
        %3233 = vmatpush1.msra.mxu0 0.0
        %3234 = vmatprep.subr.mxu0 0.0
        %3235 = vmatpush1.msra.mxu0 0.0
        %3236 = vmatprep.subr.mxu0 0.0
        %3237 = vmatpush1.msra.mxu0 0.0
        %3238 = vmatprep.subr.mxu0 0.0
        %3239 = vmatpush1.msra.mxu0 0.0
        %3240 = vmatprep.subr.mxu0 0.0
        %3241 = vmatpush1.msra.mxu0 0.0
        %3242 = vmatprep.subr.mxu0 0.0
        %3243 = vmatpush1.msra.mxu0 0.0
        %3244 = vmatprep.subr.mxu0 0.0
        %3245 = vmatpush1.msra.mxu0 0.0
        %3246 = vmatprep.subr.mxu0 0.0
        %3247 = vmatpush1.msra.mxu0 0.0
        %3248 = vmatprep.subr.mxu0 0.0
        %3249 = vmatpush1.msra.mxu0 0.0
        %3250 = vmatprep.subr.mxu0 0.0
        %3251 = vmatpush1.msra.mxu0 0.0
        %3252 = vmatprep.subr.mxu0 0.0
        %3253 = vmatpush1.msra.mxu0 0.0
        %3254 = vmatprep.subr.mxu0 0.0
        %3255 = vmatpush1.msra.mxu0 0.0
        %3256 = vmatprep.subr.mxu0 0.0
        %3257 = vmatpush1.msra.mxu0 0.0
        %3258 = vmatprep.subr.mxu0 0.0
        %3259 = vmatpush1.msra.mxu0 0.0
        %3260 = vmatprep.subr.mxu0 0.0
        %3261 = vmatpush1.msra.mxu0 0.0
        %3262 = vmatprep.subr.mxu0 0.0
        %3263 = vmatpush1.msra.mxu0 0.0
        %3264 = vmatprep.subr.mxu0 0.0
        %3265 = vmatpush1.msra.mxu0 0.0
        %3266 = vmatprep.subr.mxu0 0.0
        %3267 = vmatpush1.msra.mxu0 0.0
        %3268 = vmatprep.mubr.f32.mxu0 0.0
        %3269 = vmatmul.mubr.f32.gmra.mrb[0].mxu0 %v539
        %v3270 = vpop.f32.mrb[0].mxu0
        %v3271 = vadd.f32 0.0, %v3270
        %v3272 = vpop.f32.mrb[0].mxu0
        %3273 = vdwg.mxu0
        %v3275 = vsel %vm541, %v2984, 0
        %3277 = vmatprep.subr.mxu0 0.0
        %3278 = vmatpush1.msra.mxu0 %v3275
        %3279 = vmatprep.subr.mxu0 0.0
        %3280 = vmatpush1.msra.mxu0 0.0
        %3281 = vmatprep.subr.mxu0 0.0
        %3282 = vmatpush1.msra.mxu0 0.0
        %3283 = vmatprep.subr.mxu0 0.0
        %3284 = vmatpush1.msra.mxu0 0.0
        %3285 = vmatprep.subr.mxu0 0.0
        %3286 = vmatpush1.msra.mxu0 0.0
        %3287 = vmatprep.subr.mxu0 0.0
        %3288 = vmatpush1.msra.mxu0 0.0
        %3289 = vmatprep.subr.mxu0 0.0
        %3290 = vmatpush1.msra.mxu0 0.0
        %3291 = vmatprep.subr.mxu0 0.0
        %3292 = vmatpush1.msra.mxu0 0.0
        %3293 = vmatprep.subr.mxu0 0.0
        %3294 = vmatpush1.msra.mxu0 0.0
        %3295 = vmatprep.subr.mxu0 0.0
        %3296 = vmatpush1.msra.mxu0 0.0
        %3297 = vmatprep.subr.mxu0 0.0
        %3298 = vmatpush1.msra.mxu0 0.0
        %3299 = vmatprep.subr.mxu0 0.0
        %3300 = vmatpush1.msra.mxu0 0.0
        %3301 = vmatprep.subr.mxu0 0.0
        %3302 = vmatpush1.msra.mxu0 0.0
        %3303 = vmatprep.subr.mxu0 0.0
        %3304 = vmatpush1.msra.mxu0 0.0
        %3305 = vmatprep.subr.mxu0 0.0
        %3306 = vmatpush1.msra.mxu0 0.0
        %3307 = vmatprep.subr.mxu0 0.0
        %3308 = vmatpush1.msra.mxu0 0.0
        %3309 = vmatprep.subr.mxu0 0.0
        %3310 = vmatpush1.msra.mxu0 0.0
        %3311 = vmatprep.subr.mxu0 0.0
        %3312 = vmatpush1.msra.mxu0 0.0
        %3313 = vmatprep.subr.mxu0 0.0
        %3314 = vmatpush1.msra.mxu0 0.0
        %3315 = vmatprep.subr.mxu0 0.0
        %3316 = vmatpush1.msra.mxu0 0.0
        %3317 = vmatprep.subr.mxu0 0.0
        %3318 = vmatpush1.msra.mxu0 0.0
        %3319 = vmatprep.subr.mxu0 0.0
        %3320 = vmatpush1.msra.mxu0 0.0
        %3321 = vmatprep.subr.mxu0 0.0
        %3322 = vmatpush1.msra.mxu0 0.0
        %3323 = vmatprep.subr.mxu0 0.0
        %3324 = vmatpush1.msra.mxu0 0.0
        %3325 = vmatprep.subr.mxu0 0.0
        %3326 = vmatpush1.msra.mxu0 0.0
        %3327 = vmatprep.subr.mxu0 0.0
        %3328 = vmatpush1.msra.mxu0 0.0
        %3329 = vmatprep.subr.mxu0 0.0
        %3330 = vmatpush1.msra.mxu0 0.0
        %3331 = vmatprep.subr.mxu0 0.0
        %3332 = vmatpush1.msra.mxu0 0.0
        %3333 = vmatprep.subr.mxu0 0.0
        %3334 = vmatpush1.msra.mxu0 0.0
        %3335 = vmatprep.subr.mxu0 0.0
        %3336 = vmatpush1.msra.mxu0 0.0
        %3337 = vmatprep.subr.mxu0 0.0
        %3338 = vmatpush1.msra.mxu0 0.0
        %3339 = vmatprep.subr.mxu0 0.0
        %3340 = vmatpush1.msra.mxu0 0.0
        %3341 = vmatprep.mubr.f32.mxu0 0.0
        %3342 = vmatmul.mubr.f32.gmra.mrb[0].mxu0 %v616
        %v3343 = vpop.f32.mrb[0].mxu0
        %v3344 = vadd.f32 %v3271, %v3343
        %v3345 = vpop.f32.mrb[0].mxu0
        %3346 = vdwg.mxu0
        %v3348 = vsel %vm541, %v3128, 0
        %3350 = vmatprep.subr.mxu0 0.0
        %3351 = vmatpush1.msra.mxu0 %v3348
        %3352 = vmatprep.subr.mxu0 0.0
        %3353 = vmatpush1.msra.mxu0 0.0
        %3354 = vmatprep.subr.mxu0 0.0
        %3355 = vmatpush1.msra.mxu0 0.0
        %3356 = vmatprep.subr.mxu0 0.0
        %3357 = vmatpush1.msra.mxu0 0.0
        %3358 = vmatprep.subr.mxu0 0.0
        %3359 = vmatpush1.msra.mxu0 0.0
        %3360 = vmatprep.subr.mxu0 0.0
        %3361 = vmatpush1.msra.mxu0 0.0
        %3362 = vmatprep.subr.mxu0 0.0
        %3363 = vmatpush1.msra.mxu0 0.0
        %3364 = vmatprep.subr.mxu0 0.0
        %3365 = vmatpush1.msra.mxu0 0.0
        %3366 = vmatprep.subr.mxu0 0.0
        %3367 = vmatpush1.msra.mxu0 0.0
        %3368 = vmatprep.subr.mxu0 0.0
        %3369 = vmatpush1.msra.mxu0 0.0
        %3370 = vmatprep.subr.mxu0 0.0
        %3371 = vmatpush1.msra.mxu0 0.0
        %3372 = vmatprep.subr.mxu0 0.0
        %3373 = vmatpush1.msra.mxu0 0.0
        %3374 = vmatprep.subr.mxu0 0.0
        %3375 = vmatpush1.msra.mxu0 0.0
        %3376 = vmatprep.subr.mxu0 0.0
        %3377 = vmatpush1.msra.mxu0 0.0
        %3378 = vmatprep.subr.mxu0 0.0
        %3379 = vmatpush1.msra.mxu0 0.0
        %3380 = vmatprep.subr.mxu0 0.0
        %3381 = vmatpush1.msra.mxu0 0.0
        %3382 = vmatprep.subr.mxu0 0.0
        %3383 = vmatpush1.msra.mxu0 0.0
        %3384 = vmatprep.subr.mxu0 0.0
        %3385 = vmatpush1.msra.mxu0 0.0
        %3386 = vmatprep.subr.mxu0 0.0
        %3387 = vmatpush1.msra.mxu0 0.0
        %3388 = vmatprep.subr.mxu0 0.0
        %3389 = vmatpush1.msra.mxu0 0.0
        %3390 = vmatprep.subr.mxu0 0.0
        %3391 = vmatpush1.msra.mxu0 0.0
        %3392 = vmatprep.subr.mxu0 0.0
        %3393 = vmatpush1.msra.mxu0 0.0
        %3394 = vmatprep.subr.mxu0 0.0
        %3395 = vmatpush1.msra.mxu0 0.0
        %3396 = vmatprep.subr.mxu0 0.0
        %3397 = vmatpush1.msra.mxu0 0.0
        %3398 = vmatprep.subr.mxu0 0.0
        %3399 = vmatpush1.msra.mxu0 0.0
        %3400 = vmatprep.subr.mxu0 0.0
        %3401 = vmatpush1.msra.mxu0 0.0
        %3402 = vmatprep.subr.mxu0 0.0
        %3403 = vmatpush1.msra.mxu0 0.0
        %3404 = vmatprep.subr.mxu0 0.0
        %3405 = vmatpush1.msra.mxu0 0.0
        %3406 = vmatprep.subr.mxu0 0.0
        %3407 = vmatpush1.msra.mxu0 0.0
        %3408 = vmatprep.subr.mxu0 0.0
        %3409 = vmatpush1.msra.mxu0 0.0
        %3410 = vmatprep.subr.mxu0 0.0
        %3411 = vmatpush1.msra.mxu0 0.0
        %3412 = vmatprep.subr.mxu0 0.0
        %3413 = vmatpush1.msra.mxu0 0.0
        %3414 = vmatprep.mubr.f32.mxu0 0.0
        %3415 = vmatmul.mubr.f32.gmra.mrb[0].mxu0 %v692
        %v3416 = vpop.f32.mrb[0].mxu0
        %v3417 = vadd.f32 0.0, %v3416
        %v3418 = vpop.f32.mrb[0].mxu0
        %3419 = vdwg.mxu0
        %v3420 = vadd.f32 %v3344, %v3417
        %v3422 = vsel %vm541, %v3198, 0
        %3424 = vmatprep.subr.mxu0 0.0
        %3425 = vmatpush1.msra.mxu0 %v3422
        %3426 = vmatprep.subr.mxu0 0.0
        %3427 = vmatpush1.msra.mxu0 0.0
        %3428 = vmatprep.subr.mxu0 0.0
        %3429 = vmatpush1.msra.mxu0 0.0
        %3430 = vmatprep.subr.mxu0 0.0
        %3431 = vmatpush1.msra.mxu0 0.0
        %3432 = vmatprep.subr.mxu0 0.0
        %3433 = vmatpush1.msra.mxu0 0.0
        %3434 = vmatprep.subr.mxu0 0.0
        %3435 = vmatpush1.msra.mxu0 0.0
        %3436 = vmatprep.subr.mxu0 0.0
        %3437 = vmatpush1.msra.mxu0 0.0
        %3438 = vmatprep.subr.mxu0 0.0
        %3439 = vmatpush1.msra.mxu0 0.0
        %3440 = vmatprep.subr.mxu0 0.0
        %3441 = vmatpush1.msra.mxu0 0.0
        %3442 = vmatprep.subr.mxu0 0.0
        %3443 = vmatpush1.msra.mxu0 0.0
        %3444 = vmatprep.subr.mxu0 0.0
        %3445 = vmatpush1.msra.mxu0 0.0
        %3446 = vmatprep.subr.mxu0 0.0
        %3447 = vmatpush1.msra.mxu0 0.0
        %3448 = vmatprep.subr.mxu0 0.0
        %3449 = vmatpush1.msra.mxu0 0.0
        %3450 = vmatprep.subr.mxu0 0.0
        %3451 = vmatpush1.msra.mxu0 0.0
        %3452 = vmatprep.subr.mxu0 0.0
        %3453 = vmatpush1.msra.mxu0 0.0
        %3454 = vmatprep.subr.mxu0 0.0
        %3455 = vmatpush1.msra.mxu0 0.0
        %3456 = vmatprep.subr.mxu0 0.0
        %3457 = vmatpush1.msra.mxu0 0.0
        %3458 = vmatprep.subr.mxu0 0.0
        %3459 = vmatpush1.msra.mxu0 0.0
        %3460 = vmatprep.subr.mxu0 0.0
        %3461 = vmatpush1.msra.mxu0 0.0
        %3462 = vmatprep.subr.mxu0 0.0
        %3463 = vmatpush1.msra.mxu0 0.0
        %3464 = vmatprep.subr.mxu0 0.0
        %3465 = vmatpush1.msra.mxu0 0.0
        %3466 = vmatprep.subr.mxu0 0.0
        %3467 = vmatpush1.msra.mxu0 0.0
        %3468 = vmatprep.subr.mxu0 0.0
        %3469 = vmatpush1.msra.mxu0 0.0
        %3470 = vmatprep.subr.mxu0 0.0
        %3471 = vmatpush1.msra.mxu0 0.0
        %3472 = vmatprep.subr.mxu0 0.0
        %3473 = vmatpush1.msra.mxu0 0.0
        %3474 = vmatprep.subr.mxu0 0.0
        %3475 = vmatpush1.msra.mxu0 0.0
        %3476 = vmatprep.subr.mxu0 0.0
        %3477 = vmatpush1.msra.mxu0 0.0
        %3478 = vmatprep.subr.mxu0 0.0
        %3479 = vmatpush1.msra.mxu0 0.0
        %3480 = vmatprep.subr.mxu0 0.0
        %3481 = vmatpush1.msra.mxu0 0.0
        %3482 = vmatprep.subr.mxu0 0.0
        %3483 = vmatpush1.msra.mxu0 0.0
        %3484 = vmatprep.subr.mxu0 0.0
        %3485 = vmatpush1.msra.mxu0 0.0
        %3486 = vmatprep.subr.mxu0 0.0
        %3487 = vmatpush1.msra.mxu0 0.0
        %3488 = vmatprep.mubr.f32.mxu0 0.0
        %3489 = vmatmul.mubr.f32.gmra.mrb[0].mxu0 %v769
        %v3490 = vpop.f32.mrb[0].mxu0
        %v3491 = vadd.f32 0.0, %v3490
        %v3492 = vpop.f32.mrb[0].mxu0
        %3493 = vdwg.mxu0
        %v3494 = vadd.f32 %v3420, %v3491
        %v3495 = vadd.f32 %v3494, %v848
        %v3497 = vcombine.high %v3495, %v3495
        %v3499 = vunpack.c.l.s4 1966171168
        %v3500 = vunpack.c.0.s8 %v3499
        %v3501 = vlaneseq
        %v3502 = vshrl.u32 %v3501, 7
        %v3503 = vsub.s32 %v3500, %v3502
        %v3504 = vrot.slane %v3495, %v3503
        %v3506 = vunpack.c.l.s4 1966171168
        %v3507 = vunpack.c.0.s8 %v3506
        %v3508 = vlaneseq
        %v3509 = vshrl.u32 %v3508, 7
        %v3510 = vsub.s32 %v3507, %v3509
        %v3511 = vrot.slane %v3497, %v3510
        %v3512 = vcombine.high %v3504, %v3504
        %v3513 = vcombine.high %v3511, %v3511
        %v3515 = vunpack.c.l.s4 1966171168
        %v3516 = vunpack.c.0.s8 %v3515
        %v3517 = vlaneseq
        %v3518 = vshrl.u32 %v3517, 7
        %v3519 = vsub.s32 %v3516, %v3518
        %v3520 = vrot.slane %v3504, %v3519
        %v3522 = vunpack.c.l.s4 1966171168
        %v3523 = vunpack.c.0.s8 %v3522
        %v3524 = vlaneseq
        %v3525 = vshrl.u32 %v3524, 7
        %v3526 = vsub.s32 %v3523, %v3525
        %v3527 = vrot.slane %v3511, %v3526
        %v3529 = vunpack.c.l.s4 1966171168
        %v3530 = vunpack.c.0.s8 %v3529
        %v3531 = vlaneseq
        %v3532 = vshrl.u32 %v3531, 7
        %v3533 = vsub.s32 %v3530, %v3532
        %v3534 = vrot.slane %v3512, %v3533
        %v3536 = vunpack.c.l.s4 1966171168
        %v3537 = vunpack.c.0.s8 %v3536
        %v3538 = vlaneseq
        %v3539 = vshrl.u32 %v3538, 7
        %v3540 = vsub.s32 %v3537, %v3539
        %v3541 = vrot.slane %v3513, %v3540
        %v3542 = vcombine.high %v3520, %v3520
        %v3543 = vcombine.high %v3527, %v3527
        %v3544 = vcombine.high %v3534, %v3534
        %v3545 = vcombine.high %v3541, %v3541
        %3554 = vst.msk [vmem:[%s205 + $0x4] sm:$0x1] %vm909, %v3520
        %3555 = vst.msk [vmem:[%s205 + $0xc] sm:$0x1] %vm909, %v3534
        %3556 = vst.msk [vmem:[%s205 + $0x14] sm:$0x1] %vm909, %v3542
        %3557 = vst.msk [vmem:[%s205 + $0x1c] sm:$0x1] %vm909, %v3544
        %3558 = vst.msk [vmem:[%s205 + $0x24] sm:$0x1] %vm909, %v3527
        %3559 = vst.msk [vmem:[%s205 + $0x2c] sm:$0x1] %vm909, %v3541
        %3560 = vst.msk [vmem:[%s205 + $0x34] sm:$0x1] %vm909, %v3543
        %3561 = vst.msk [vmem:[%s205 + $0x3c] sm:$0x1] %vm909, %v3545
        %v3562 = vld [vmem:[%s183 + $0x5] sm:$0x1]
        %v3563 = vld [vmem:[%s183 + $0xd] sm:$0x1]
        %v3564 = vld [vmem:[%s183 + $0x15] sm:$0x1]
        %v3565 = vld [vmem:[%s183 + $0x1d] sm:$0x1]
        %v3570 = vrot.slane %v3563, 7
        %v3571 = vsel %vm242, %v3570, %v3562
        %v3572 = vrot.slane %v3564, 6
        %v3573 = vsel %vm245, %v3572, %v3571
        %v3574 = vrot.slane %v3565, 5
        %v3575 = vsel %vm248, %v3574, %v3573
        %v3576 = vsel %vm250, %v3575, 0
        %3578 = vmatprep.subr.mxu0 0.0
        %3579 = vmatpush1.msra.mxu0 %v216
        %3580 = vmatprep.subr.mxu0 0.0
        %3581 = vmatpush1.msra.mxu0 %v217
        %3582 = vmatprep.subr.mxu0 0.0
        %3583 = vmatpush1.msra.mxu0 0.0
        %3584 = vmatprep.subr.mxu0 0.0
        %3585 = vmatpush1.msra.mxu0 0.0
        %3586 = vmatprep.subr.mxu0 0.0
        %3587 = vmatpush1.msra.mxu0 0.0
        %3588 = vmatprep.subr.mxu0 0.0
        %3589 = vmatpush1.msra.mxu0 0.0
        %3590 = vmatprep.subr.mxu0 0.0
        %3591 = vmatpush1.msra.mxu0 0.0
        %3592 = vmatprep.subr.mxu0 0.0
        %3593 = vmatpush1.msra.mxu0 0.0
        %3594 = vmatprep.subr.mxu0 0.0
        %3595 = vmatpush1.msra.mxu0 0.0
        %3596 = vmatprep.subr.mxu0 0.0
        %3597 = vmatpush1.msra.mxu0 0.0
        %3598 = vmatprep.subr.mxu0 0.0
        %3599 = vmatpush1.msra.mxu0 0.0
        %3600 = vmatprep.subr.mxu0 0.0
        %3601 = vmatpush1.msra.mxu0 0.0
        %3602 = vmatprep.subr.mxu0 0.0
        %3603 = vmatpush1.msra.mxu0 0.0
        %3604 = vmatprep.subr.mxu0 0.0
        %3605 = vmatpush1.msra.mxu0 0.0
        %3606 = vmatprep.subr.mxu0 0.0
        %3607 = vmatpush1.msra.mxu0 0.0
        %3608 = vmatprep.subr.mxu0 0.0
        %3609 = vmatpush1.msra.mxu0 0.0
        %3610 = vmatprep.subr.mxu0 0.0
        %3611 = vmatpush1.msra.mxu0 0.0
        %3612 = vmatprep.subr.mxu0 0.0
        %3613 = vmatpush1.msra.mxu0 0.0
        %3614 = vmatprep.subr.mxu0 0.0
        %3615 = vmatpush1.msra.mxu0 0.0
        %3616 = vmatprep.subr.mxu0 0.0
        %3617 = vmatpush1.msra.mxu0 0.0
        %3618 = vmatprep.subr.mxu0 0.0
        %3619 = vmatpush1.msra.mxu0 0.0
        %3620 = vmatprep.subr.mxu0 0.0
        %3621 = vmatpush1.msra.mxu0 0.0
        %3622 = vmatprep.subr.mxu0 0.0
        %3623 = vmatpush1.msra.mxu0 0.0
        %3624 = vmatprep.subr.mxu0 0.0
        %3625 = vmatpush1.msra.mxu0 0.0
        %3626 = vmatprep.subr.mxu0 0.0
        %3627 = vmatpush1.msra.mxu0 0.0
        %3628 = vmatprep.subr.mxu0 0.0
        %3629 = vmatpush1.msra.mxu0 0.0
        %3630 = vmatprep.subr.mxu0 0.0
        %3631 = vmatpush1.msra.mxu0 0.0
        %3632 = vmatprep.subr.mxu0 0.0
        %3633 = vmatpush1.msra.mxu0 0.0
        %3634 = vmatprep.subr.mxu0 0.0
        %3635 = vmatpush1.msra.mxu0 0.0
        %3636 = vmatprep.subr.mxu0 0.0
        %3637 = vmatpush1.msra.mxu0 0.0
        %3638 = vmatprep.subr.mxu0 0.0
        %3639 = vmatpush1.msra.mxu0 0.0
        %3640 = vmatprep.subr.mxu0 0.0
        %3641 = vmatpush1.msra.mxu0 0.0
        %3642 = vmatprep.mubr.f32.mxu0 0.0
        %3643 = vmatmul.mubr.f32.gmra.mrb[0].mxu0 %v3576
        %v3644 = vpop.f32.mrb[0].mxu0
        %v3645 = vadd.f32 0.0, %v3644
        %v3646 = vpop.f32.mrb[0].mxu0
        %3647 = vdwg.mxu0
        %3648 = vmatprep.subr.mxu0 0.0
        %3649 = vmatpush1.msra.mxu0 %v223
        %3650 = vmatprep.subr.mxu0 0.0
        %3651 = vmatpush1.msra.mxu0 %v224
        %3652 = vmatprep.subr.mxu0 0.0
        %3653 = vmatpush1.msra.mxu0 0.0
        %3654 = vmatprep.subr.mxu0 0.0
        %3655 = vmatpush1.msra.mxu0 0.0
        %3656 = vmatprep.subr.mxu0 0.0
        %3657 = vmatpush1.msra.mxu0 0.0
        %3658 = vmatprep.subr.mxu0 0.0
        %3659 = vmatpush1.msra.mxu0 0.0
        %3660 = vmatprep.subr.mxu0 0.0
        %3661 = vmatpush1.msra.mxu0 0.0
        %3662 = vmatprep.subr.mxu0 0.0
        %3663 = vmatpush1.msra.mxu0 0.0
        %3664 = vmatprep.subr.mxu0 0.0
        %3665 = vmatpush1.msra.mxu0 0.0
        %3666 = vmatprep.subr.mxu0 0.0
        %3667 = vmatpush1.msra.mxu0 0.0
        %3668 = vmatprep.subr.mxu0 0.0
        %3669 = vmatpush1.msra.mxu0 0.0
        %3670 = vmatprep.subr.mxu0 0.0
        %3671 = vmatpush1.msra.mxu0 0.0
        %3672 = vmatprep.subr.mxu0 0.0
        %3673 = vmatpush1.msra.mxu0 0.0
        %3674 = vmatprep.subr.mxu0 0.0
        %3675 = vmatpush1.msra.mxu0 0.0
        %3676 = vmatprep.subr.mxu0 0.0
        %3677 = vmatpush1.msra.mxu0 0.0
        %3678 = vmatprep.subr.mxu0 0.0
        %3679 = vmatpush1.msra.mxu0 0.0
        %3680 = vmatprep.subr.mxu0 0.0
        %3681 = vmatpush1.msra.mxu0 0.0
        %3682 = vmatprep.subr.mxu0 0.0
        %3683 = vmatpush1.msra.mxu0 0.0
        %3684 = vmatprep.subr.mxu0 0.0
        %3685 = vmatpush1.msra.mxu0 0.0
        %3686 = vmatprep.subr.mxu0 0.0
        %3687 = vmatpush1.msra.mxu0 0.0
        %3688 = vmatprep.subr.mxu0 0.0
        %3689 = vmatpush1.msra.mxu0 0.0
        %3690 = vmatprep.subr.mxu0 0.0
        %3691 = vmatpush1.msra.mxu0 0.0
        %3692 = vmatprep.subr.mxu0 0.0
        %3693 = vmatpush1.msra.mxu0 0.0
        %3694 = vmatprep.subr.mxu0 0.0
        %3695 = vmatpush1.msra.mxu0 0.0
        %3696 = vmatprep.subr.mxu0 0.0
        %3697 = vmatpush1.msra.mxu0 0.0
        %3698 = vmatprep.subr.mxu0 0.0
        %3699 = vmatpush1.msra.mxu0 0.0
        %3700 = vmatprep.subr.mxu0 0.0
        %3701 = vmatpush1.msra.mxu0 0.0
        %3702 = vmatprep.subr.mxu0 0.0
        %3703 = vmatpush1.msra.mxu0 0.0
        %3704 = vmatprep.subr.mxu0 0.0
        %3705 = vmatpush1.msra.mxu0 0.0
        %3706 = vmatprep.subr.mxu0 0.0
        %3707 = vmatpush1.msra.mxu0 0.0
        %3708 = vmatprep.subr.mxu0 0.0
        %3709 = vmatpush1.msra.mxu0 0.0
        %3710 = vmatprep.subr.mxu0 0.0
        %3711 = vmatpush1.msra.mxu0 0.0
        %3712 = vmatprep.mubr.f32.mxu0 0.0
        %3713 = vmatmul.mubr.f32.gmra.mrb[0].mxu0 %v3576
        %v3714 = vpop.f32.mrb[0].mxu0
        %v3715 = vadd.f32 0.0, %v3714
        %v3716 = vpop.f32.mrb[0].mxu0
        %3717 = vdwg.mxu0
        %3718 = vrot.lane.b32.xlu0 %v3575, 112
        %v3719 = vpop.permute.xlu0 %3718
        %v3720 = vsel %vm250, %v3719, 0
        %3722 = vmatprep.subr.mxu0 0.0
        %3723 = vmatpush1.msra.mxu0 %v216
        %3724 = vmatprep.subr.mxu0 0.0
        %3725 = vmatpush1.msra.mxu0 %v217
        %3726 = vmatprep.subr.mxu0 0.0
        %3727 = vmatpush1.msra.mxu0 0.0
        %3728 = vmatprep.subr.mxu0 0.0
        %3729 = vmatpush1.msra.mxu0 0.0
        %3730 = vmatprep.subr.mxu0 0.0
        %3731 = vmatpush1.msra.mxu0 0.0
        %3732 = vmatprep.subr.mxu0 0.0
        %3733 = vmatpush1.msra.mxu0 0.0
        %3734 = vmatprep.subr.mxu0 0.0
        %3735 = vmatpush1.msra.mxu0 0.0
        %3736 = vmatprep.subr.mxu0 0.0
        %3737 = vmatpush1.msra.mxu0 0.0
        %3738 = vmatprep.subr.mxu0 0.0
        %3739 = vmatpush1.msra.mxu0 0.0
        %3740 = vmatprep.subr.mxu0 0.0
        %3741 = vmatpush1.msra.mxu0 0.0
        %3742 = vmatprep.subr.mxu0 0.0
        %3743 = vmatpush1.msra.mxu0 0.0
        %3744 = vmatprep.subr.mxu0 0.0
        %3745 = vmatpush1.msra.mxu0 0.0
        %3746 = vmatprep.subr.mxu0 0.0
        %3747 = vmatpush1.msra.mxu0 0.0
        %3748 = vmatprep.subr.mxu0 0.0
        %3749 = vmatpush1.msra.mxu0 0.0
        %3750 = vmatprep.subr.mxu0 0.0
        %3751 = vmatpush1.msra.mxu0 0.0
        %3752 = vmatprep.subr.mxu0 0.0
        %3753 = vmatpush1.msra.mxu0 0.0
        %3754 = vmatprep.subr.mxu0 0.0
        %3755 = vmatpush1.msra.mxu0 0.0
        %3756 = vmatprep.subr.mxu0 0.0
        %3757 = vmatpush1.msra.mxu0 0.0
        %3758 = vmatprep.subr.mxu0 0.0
        %3759 = vmatpush1.msra.mxu0 0.0
        %3760 = vmatprep.subr.mxu0 0.0
        %3761 = vmatpush1.msra.mxu0 0.0
        %3762 = vmatprep.subr.mxu0 0.0
        %3763 = vmatpush1.msra.mxu0 0.0
        %3764 = vmatprep.subr.mxu0 0.0
        %3765 = vmatpush1.msra.mxu0 0.0
        %3766 = vmatprep.subr.mxu0 0.0
        %3767 = vmatpush1.msra.mxu0 0.0
        %3768 = vmatprep.subr.mxu0 0.0
        %3769 = vmatpush1.msra.mxu0 0.0
        %3770 = vmatprep.subr.mxu0 0.0
        %3771 = vmatpush1.msra.mxu0 0.0
        %3772 = vmatprep.subr.mxu0 0.0
        %3773 = vmatpush1.msra.mxu0 0.0
        %3774 = vmatprep.subr.mxu0 0.0
        %3775 = vmatpush1.msra.mxu0 0.0
        %3776 = vmatprep.subr.mxu0 0.0
        %3777 = vmatpush1.msra.mxu0 0.0
        %3778 = vmatprep.subr.mxu0 0.0
        %3779 = vmatpush1.msra.mxu0 0.0
        %3780 = vmatprep.subr.mxu0 0.0
        %3781 = vmatpush1.msra.mxu0 0.0
        %3782 = vmatprep.subr.mxu0 0.0
        %3783 = vmatpush1.msra.mxu0 0.0
        %3784 = vmatprep.subr.mxu0 0.0
        %3785 = vmatpush1.msra.mxu0 0.0
        %3786 = vmatprep.mubr.f32.mxu0 0.0
        %3787 = vmatmul.mubr.f32.gmra.mrb[0].mxu0 %v3720
        %v3788 = vpop.f32.mrb[0].mxu0
        %v3789 = vadd.f32 0.0, %v3788
        %v3790 = vpop.f32.mrb[0].mxu0
        %3791 = vdwg.mxu0
        %3792 = vmatprep.subr.mxu0 0.0
        %3793 = vmatpush1.msra.mxu0 %v223
        %3794 = vmatprep.subr.mxu0 0.0
        %3795 = vmatpush1.msra.mxu0 %v224
        %3796 = vmatprep.subr.mxu0 0.0
        %3797 = vmatpush1.msra.mxu0 0.0
        %3798 = vmatprep.subr.mxu0 0.0
        %3799 = vmatpush1.msra.mxu0 0.0
        %3800 = vmatprep.subr.mxu0 0.0
        %3801 = vmatpush1.msra.mxu0 0.0
        %3802 = vmatprep.subr.mxu0 0.0
        %3803 = vmatpush1.msra.mxu0 0.0
        %3804 = vmatprep.subr.mxu0 0.0
        %3805 = vmatpush1.msra.mxu0 0.0
        %3806 = vmatprep.subr.mxu0 0.0
        %3807 = vmatpush1.msra.mxu0 0.0
        %3808 = vmatprep.subr.mxu0 0.0
        %3809 = vmatpush1.msra.mxu0 0.0
        %3810 = vmatprep.subr.mxu0 0.0
        %3811 = vmatpush1.msra.mxu0 0.0
        %3812 = vmatprep.subr.mxu0 0.0
        %3813 = vmatpush1.msra.mxu0 0.0
        %3814 = vmatprep.subr.mxu0 0.0
        %3815 = vmatpush1.msra.mxu0 0.0
        %3816 = vmatprep.subr.mxu0 0.0
        %3817 = vmatpush1.msra.mxu0 0.0
        %3818 = vmatprep.subr.mxu0 0.0
        %3819 = vmatpush1.msra.mxu0 0.0
        %3820 = vmatprep.subr.mxu0 0.0
        %3821 = vmatpush1.msra.mxu0 0.0
        %3822 = vmatprep.subr.mxu0 0.0
        %3823 = vmatpush1.msra.mxu0 0.0
        %3824 = vmatprep.subr.mxu0 0.0
        %3825 = vmatpush1.msra.mxu0 0.0
        %3826 = vmatprep.subr.mxu0 0.0
        %3827 = vmatpush1.msra.mxu0 0.0
        %3828 = vmatprep.subr.mxu0 0.0
        %3829 = vmatpush1.msra.mxu0 0.0
        %3830 = vmatprep.subr.mxu0 0.0
        %3831 = vmatpush1.msra.mxu0 0.0
        %3832 = vmatprep.subr.mxu0 0.0
        %3833 = vmatpush1.msra.mxu0 0.0
        %3834 = vmatprep.subr.mxu0 0.0
        %3835 = vmatpush1.msra.mxu0 0.0
        %3836 = vmatprep.subr.mxu0 0.0
        %3837 = vmatpush1.msra.mxu0 0.0
        %3838 = vmatprep.subr.mxu0 0.0
        %3839 = vmatpush1.msra.mxu0 0.0
        %3840 = vmatprep.subr.mxu0 0.0
        %3841 = vmatpush1.msra.mxu0 0.0
        %3842 = vmatprep.subr.mxu0 0.0
        %3843 = vmatpush1.msra.mxu0 0.0
        %3844 = vmatprep.subr.mxu0 0.0
        %3845 = vmatpush1.msra.mxu0 0.0
        %3846 = vmatprep.subr.mxu0 0.0
        %3847 = vmatpush1.msra.mxu0 0.0
        %3848 = vmatprep.subr.mxu0 0.0
        %3849 = vmatpush1.msra.mxu0 0.0
        %3850 = vmatprep.subr.mxu0 0.0
        %3851 = vmatpush1.msra.mxu0 0.0
        %3852 = vmatprep.subr.mxu0 0.0
        %3853 = vmatpush1.msra.mxu0 0.0
        %3854 = vmatprep.subr.mxu0 0.0
        %3855 = vmatpush1.msra.mxu0 0.0
        %3856 = vmatprep.mubr.f32.mxu0 0.0
        %3857 = vmatmul.mubr.f32.gmra.mrb[0].mxu0 %v3720
        %v3858 = vpop.f32.mrb[0].mxu0
        %v3859 = vadd.f32 0.0, %v3858
        %v3860 = vpop.f32.mrb[0].mxu0
        %3861 = vdwg.mxu0
        %v3863 = vsel %vm541, %v3715, 0
        %3865 = vmatprep.subr.mxu0 0.0
        %3866 = vmatpush1.msra.mxu0 %v3863
        %3867 = vmatprep.subr.mxu0 0.0
        %3868 = vmatpush1.msra.mxu0 0.0
        %3869 = vmatprep.subr.mxu0 0.0
        %3870 = vmatpush1.msra.mxu0 0.0
        %3871 = vmatprep.subr.mxu0 0.0
        %3872 = vmatpush1.msra.mxu0 0.0
        %3873 = vmatprep.subr.mxu0 0.0
        %3874 = vmatpush1.msra.mxu0 0.0
        %3875 = vmatprep.subr.mxu0 0.0
        %3876 = vmatpush1.msra.mxu0 0.0
        %3877 = vmatprep.subr.mxu0 0.0
        %3878 = vmatpush1.msra.mxu0 0.0
        %3879 = vmatprep.subr.mxu0 0.0
        %3880 = vmatpush1.msra.mxu0 0.0
        %3881 = vmatprep.subr.mxu0 0.0
        %3882 = vmatpush1.msra.mxu0 0.0
        %3883 = vmatprep.subr.mxu0 0.0
        %3884 = vmatpush1.msra.mxu0 0.0
        %3885 = vmatprep.subr.mxu0 0.0
        %3886 = vmatpush1.msra.mxu0 0.0
        %3887 = vmatprep.subr.mxu0 0.0
        %3888 = vmatpush1.msra.mxu0 0.0
        %3889 = vmatprep.subr.mxu0 0.0
        %3890 = vmatpush1.msra.mxu0 0.0
        %3891 = vmatprep.subr.mxu0 0.0
        %3892 = vmatpush1.msra.mxu0 0.0
        %3893 = vmatprep.subr.mxu0 0.0
        %3894 = vmatpush1.msra.mxu0 0.0
        %3895 = vmatprep.subr.mxu0 0.0
        %3896 = vmatpush1.msra.mxu0 0.0
        %3897 = vmatprep.subr.mxu0 0.0
        %3898 = vmatpush1.msra.mxu0 0.0
        %3899 = vmatprep.subr.mxu0 0.0
        %3900 = vmatpush1.msra.mxu0 0.0
        %3901 = vmatprep.subr.mxu0 0.0
        %3902 = vmatpush1.msra.mxu0 0.0
        %3903 = vmatprep.subr.mxu0 0.0
        %3904 = vmatpush1.msra.mxu0 0.0
        %3905 = vmatprep.subr.mxu0 0.0
        %3906 = vmatpush1.msra.mxu0 0.0
        %3907 = vmatprep.subr.mxu0 0.0
        %3908 = vmatpush1.msra.mxu0 0.0
        %3909 = vmatprep.subr.mxu0 0.0
        %3910 = vmatpush1.msra.mxu0 0.0
        %3911 = vmatprep.subr.mxu0 0.0
        %3912 = vmatpush1.msra.mxu0 0.0
        %3913 = vmatprep.subr.mxu0 0.0
        %3914 = vmatpush1.msra.mxu0 0.0
        %3915 = vmatprep.subr.mxu0 0.0
        %3916 = vmatpush1.msra.mxu0 0.0
        %3917 = vmatprep.subr.mxu0 0.0
        %3918 = vmatpush1.msra.mxu0 0.0
        %3919 = vmatprep.subr.mxu0 0.0
        %3920 = vmatpush1.msra.mxu0 0.0
        %3921 = vmatprep.subr.mxu0 0.0
        %3922 = vmatpush1.msra.mxu0 0.0
        %3923 = vmatprep.subr.mxu0 0.0
        %3924 = vmatpush1.msra.mxu0 0.0
        %3925 = vmatprep.subr.mxu0 0.0
        %3926 = vmatpush1.msra.mxu0 0.0
        %3927 = vmatprep.subr.mxu0 0.0
        %3928 = vmatpush1.msra.mxu0 0.0
        %3929 = vmatprep.mubr.f32.mxu0 0.0
        %3930 = vmatmul.mubr.f32.gmra.mrb[0].mxu0 %v539
        %v3931 = vpop.f32.mrb[0].mxu0
        %v3932 = vadd.f32 0.0, %v3931
        %v3933 = vpop.f32.mrb[0].mxu0
        %3934 = vdwg.mxu0
        %v3936 = vsel %vm541, %v3645, 0
        %3938 = vmatprep.subr.mxu0 0.0
        %3939 = vmatpush1.msra.mxu0 %v3936
        %3940 = vmatprep.subr.mxu0 0.0
        %3941 = vmatpush1.msra.mxu0 0.0
        %3942 = vmatprep.subr.mxu0 0.0
        %3943 = vmatpush1.msra.mxu0 0.0
        %3944 = vmatprep.subr.mxu0 0.0
        %3945 = vmatpush1.msra.mxu0 0.0
        %3946 = vmatprep.subr.mxu0 0.0
        %3947 = vmatpush1.msra.mxu0 0.0
        %3948 = vmatprep.subr.mxu0 0.0
        %3949 = vmatpush1.msra.mxu0 0.0
        %3950 = vmatprep.subr.mxu0 0.0
        %3951 = vmatpush1.msra.mxu0 0.0
        %3952 = vmatprep.subr.mxu0 0.0
        %3953 = vmatpush1.msra.mxu0 0.0
        %3954 = vmatprep.subr.mxu0 0.0
        %3955 = vmatpush1.msra.mxu0 0.0
        %3956 = vmatprep.subr.mxu0 0.0
        %3957 = vmatpush1.msra.mxu0 0.0
        %3958 = vmatprep.subr.mxu0 0.0
        %3959 = vmatpush1.msra.mxu0 0.0
        %3960 = vmatprep.subr.mxu0 0.0
        %3961 = vmatpush1.msra.mxu0 0.0
        %3962 = vmatprep.subr.mxu0 0.0
        %3963 = vmatpush1.msra.mxu0 0.0
        %3964 = vmatprep.subr.mxu0 0.0
        %3965 = vmatpush1.msra.mxu0 0.0
        %3966 = vmatprep.subr.mxu0 0.0
        %3967 = vmatpush1.msra.mxu0 0.0
        %3968 = vmatprep.subr.mxu0 0.0
        %3969 = vmatpush1.msra.mxu0 0.0
        %3970 = vmatprep.subr.mxu0 0.0
        %3971 = vmatpush1.msra.mxu0 0.0
        %3972 = vmatprep.subr.mxu0 0.0
        %3973 = vmatpush1.msra.mxu0 0.0
        %3974 = vmatprep.subr.mxu0 0.0
        %3975 = vmatpush1.msra.mxu0 0.0
        %3976 = vmatprep.subr.mxu0 0.0
        %3977 = vmatpush1.msra.mxu0 0.0
        %3978 = vmatprep.subr.mxu0 0.0
        %3979 = vmatpush1.msra.mxu0 0.0
        %3980 = vmatprep.subr.mxu0 0.0
        %3981 = vmatpush1.msra.mxu0 0.0
        %3982 = vmatprep.subr.mxu0 0.0
        %3983 = vmatpush1.msra.mxu0 0.0
        %3984 = vmatprep.subr.mxu0 0.0
        %3985 = vmatpush1.msra.mxu0 0.0
        %3986 = vmatprep.subr.mxu0 0.0
        %3987 = vmatpush1.msra.mxu0 0.0
        %3988 = vmatprep.subr.mxu0 0.0
        %3989 = vmatpush1.msra.mxu0 0.0
        %3990 = vmatprep.subr.mxu0 0.0
        %3991 = vmatpush1.msra.mxu0 0.0
        %3992 = vmatprep.subr.mxu0 0.0
        %3993 = vmatpush1.msra.mxu0 0.0
        %3994 = vmatprep.subr.mxu0 0.0
        %3995 = vmatpush1.msra.mxu0 0.0
        %3996 = vmatprep.subr.mxu0 0.0
        %3997 = vmatpush1.msra.mxu0 0.0
        %3998 = vmatprep.subr.mxu0 0.0
        %3999 = vmatpush1.msra.mxu0 0.0
        %4000 = vmatprep.subr.mxu0 0.0
        %4001 = vmatpush1.msra.mxu0 0.0
        %4002 = vmatprep.mubr.f32.mxu0 0.0
        %4003 = vmatmul.mubr.f32.gmra.mrb[0].mxu0 %v616
        %v4004 = vpop.f32.mrb[0].mxu0
        %v4005 = vadd.f32 %v3932, %v4004
        %v4006 = vpop.f32.mrb[0].mxu0
        %4007 = vdwg.mxu0
        %v4009 = vsel %vm541, %v3789, 0
        %4011 = vmatprep.subr.mxu0 0.0
        %4012 = vmatpush1.msra.mxu0 %v4009
        %4013 = vmatprep.subr.mxu0 0.0
        %4014 = vmatpush1.msra.mxu0 0.0
        %4015 = vmatprep.subr.mxu0 0.0
        %4016 = vmatpush1.msra.mxu0 0.0
        %4017 = vmatprep.subr.mxu0 0.0
        %4018 = vmatpush1.msra.mxu0 0.0
        %4019 = vmatprep.subr.mxu0 0.0
        %4020 = vmatpush1.msra.mxu0 0.0
        %4021 = vmatprep.subr.mxu0 0.0
        %4022 = vmatpush1.msra.mxu0 0.0
        %4023 = vmatprep.subr.mxu0 0.0
        %4024 = vmatpush1.msra.mxu0 0.0
        %4025 = vmatprep.subr.mxu0 0.0
        %4026 = vmatpush1.msra.mxu0 0.0
        %4027 = vmatprep.subr.mxu0 0.0
        %4028 = vmatpush1.msra.mxu0 0.0
        %4029 = vmatprep.subr.mxu0 0.0
        %4030 = vmatpush1.msra.mxu0 0.0
        %4031 = vmatprep.subr.mxu0 0.0
        %4032 = vmatpush1.msra.mxu0 0.0
        %4033 = vmatprep.subr.mxu0 0.0
        %4034 = vmatpush1.msra.mxu0 0.0
        %4035 = vmatprep.subr.mxu0 0.0
        %4036 = vmatpush1.msra.mxu0 0.0
        %4037 = vmatprep.subr.mxu0 0.0
        %4038 = vmatpush1.msra.mxu0 0.0
        %4039 = vmatprep.subr.mxu0 0.0
        %4040 = vmatpush1.msra.mxu0 0.0
        %4041 = vmatprep.subr.mxu0 0.0
        %4042 = vmatpush1.msra.mxu0 0.0
        %4043 = vmatprep.subr.mxu0 0.0
        %4044 = vmatpush1.msra.mxu0 0.0
        %4045 = vmatprep.subr.mxu0 0.0
        %4046 = vmatpush1.msra.mxu0 0.0
        %4047 = vmatprep.subr.mxu0 0.0
        %4048 = vmatpush1.msra.mxu0 0.0
        %4049 = vmatprep.subr.mxu0 0.0
        %4050 = vmatpush1.msra.mxu0 0.0
        %4051 = vmatprep.subr.mxu0 0.0
        %4052 = vmatpush1.msra.mxu0 0.0
        %4053 = vmatprep.subr.mxu0 0.0
        %4054 = vmatpush1.msra.mxu0 0.0
        %4055 = vmatprep.subr.mxu0 0.0
        %4056 = vmatpush1.msra.mxu0 0.0
        %4057 = vmatprep.subr.mxu0 0.0
        %4058 = vmatpush1.msra.mxu0 0.0
        %4059 = vmatprep.subr.mxu0 0.0
        %4060 = vmatpush1.msra.mxu0 0.0
        %4061 = vmatprep.subr.mxu0 0.0
        %4062 = vmatpush1.msra.mxu0 0.0
        %4063 = vmatprep.subr.mxu0 0.0
        %4064 = vmatpush1.msra.mxu0 0.0
        %4065 = vmatprep.subr.mxu0 0.0
        %4066 = vmatpush1.msra.mxu0 0.0
        %4067 = vmatprep.subr.mxu0 0.0
        %4068 = vmatpush1.msra.mxu0 0.0
        %4069 = vmatprep.subr.mxu0 0.0
        %4070 = vmatpush1.msra.mxu0 0.0
        %4071 = vmatprep.subr.mxu0 0.0
        %4072 = vmatpush1.msra.mxu0 0.0
        %4073 = vmatprep.subr.mxu0 0.0
        %4074 = vmatpush1.msra.mxu0 0.0
        %4075 = vmatprep.mubr.f32.mxu0 0.0
        %4076 = vmatmul.mubr.f32.gmra.mrb[0].mxu0 %v692
        %v4077 = vpop.f32.mrb[0].mxu0
        %v4078 = vadd.f32 0.0, %v4077
        %v4079 = vpop.f32.mrb[0].mxu0
        %4080 = vdwg.mxu0
        %v4081 = vadd.f32 %v4005, %v4078
        %v4083 = vsel %vm541, %v3859, 0
        %4085 = vmatprep.subr.mxu0 0.0
        %4086 = vmatpush1.msra.mxu0 %v4083
        %4087 = vmatprep.subr.mxu0 0.0
        %4088 = vmatpush1.msra.mxu0 0.0
        %4089 = vmatprep.subr.mxu0 0.0
        %4090 = vmatpush1.msra.mxu0 0.0
        %4091 = vmatprep.subr.mxu0 0.0
        %4092 = vmatpush1.msra.mxu0 0.0
        %4093 = vmatprep.subr.mxu0 0.0
        %4094 = vmatpush1.msra.mxu0 0.0
        %4095 = vmatprep.subr.mxu0 0.0
        %4096 = vmatpush1.msra.mxu0 0.0
        %4097 = vmatprep.subr.mxu0 0.0
        %4098 = vmatpush1.msra.mxu0 0.0
        %4099 = vmatprep.subr.mxu0 0.0
        %4100 = vmatpush1.msra.mxu0 0.0
        %4101 = vmatprep.subr.mxu0 0.0
        %4102 = vmatpush1.msra.mxu0 0.0
        %4103 = vmatprep.subr.mxu0 0.0
        %4104 = vmatpush1.msra.mxu0 0.0
        %4105 = vmatprep.subr.mxu0 0.0
        %4106 = vmatpush1.msra.mxu0 0.0
        %4107 = vmatprep.subr.mxu0 0.0
        %4108 = vmatpush1.msra.mxu0 0.0
        %4109 = vmatprep.subr.mxu0 0.0
        %4110 = vmatpush1.msra.mxu0 0.0
        %4111 = vmatprep.subr.mxu0 0.0
        %4112 = vmatpush1.msra.mxu0 0.0
        %4113 = vmatprep.subr.mxu0 0.0
        %4114 = vmatpush1.msra.mxu0 0.0
        %4115 = vmatprep.subr.mxu0 0.0
        %4116 = vmatpush1.msra.mxu0 0.0
        %4117 = vmatprep.subr.mxu0 0.0
        %4118 = vmatpush1.msra.mxu0 0.0
        %4119 = vmatprep.subr.mxu0 0.0
        %4120 = vmatpush1.msra.mxu0 0.0
        %4121 = vmatprep.subr.mxu0 0.0
        %4122 = vmatpush1.msra.mxu0 0.0
        %4123 = vmatprep.subr.mxu0 0.0
        %4124 = vmatpush1.msra.mxu0 0.0
        %4125 = vmatprep.subr.mxu0 0.0
        %4126 = vmatpush1.msra.mxu0 0.0
        %4127 = vmatprep.subr.mxu0 0.0
        %4128 = vmatpush1.msra.mxu0 0.0
        %4129 = vmatprep.subr.mxu0 0.0
        %4130 = vmatpush1.msra.mxu0 0.0
        %4131 = vmatprep.subr.mxu0 0.0
        %4132 = vmatpush1.msra.mxu0 0.0
        %4133 = vmatprep.subr.mxu0 0.0
        %4134 = vmatpush1.msra.mxu0 0.0
        %4135 = vmatprep.subr.mxu0 0.0
        %4136 = vmatpush1.msra.mxu0 0.0
        %4137 = vmatprep.subr.mxu0 0.0
        %4138 = vmatpush1.msra.mxu0 0.0
        %4139 = vmatprep.subr.mxu0 0.0
        %4140 = vmatpush1.msra.mxu0 0.0
        %4141 = vmatprep.subr.mxu0 0.0
        %4142 = vmatpush1.msra.mxu0 0.0
        %4143 = vmatprep.subr.mxu0 0.0
        %4144 = vmatpush1.msra.mxu0 0.0
        %4145 = vmatprep.subr.mxu0 0.0
        %4146 = vmatpush1.msra.mxu0 0.0
        %4147 = vmatprep.subr.mxu0 0.0
        %4148 = vmatpush1.msra.mxu0 0.0
        %4149 = vmatprep.mubr.f32.mxu0 0.0
        %4150 = vmatmul.mubr.f32.gmra.mrb[0].mxu0 %v769
        %v4151 = vpop.f32.mrb[0].mxu0
        %v4152 = vadd.f32 0.0, %v4151
        %v4153 = vpop.f32.mrb[0].mxu0
        %4154 = vdwg.mxu0
        %v4155 = vadd.f32 %v4081, %v4152
        %v4156 = vadd.f32 %v4155, %v848
        %v4158 = vcombine.high %v4156, %v4156
        %v4160 = vunpack.c.l.s4 1966171168
        %v4161 = vunpack.c.0.s8 %v4160
        %v4162 = vlaneseq
        %v4163 = vshrl.u32 %v4162, 7
        %v4164 = vsub.s32 %v4161, %v4163
        %v4165 = vrot.slane %v4156, %v4164
        %v4167 = vunpack.c.l.s4 1966171168
        %v4168 = vunpack.c.0.s8 %v4167
        %v4169 = vlaneseq
        %v4170 = vshrl.u32 %v4169, 7
        %v4171 = vsub.s32 %v4168, %v4170
        %v4172 = vrot.slane %v4158, %v4171
        %v4173 = vcombine.high %v4165, %v4165
        %v4174 = vcombine.high %v4172, %v4172
        %v4176 = vunpack.c.l.s4 1966171168
        %v4177 = vunpack.c.0.s8 %v4176
        %v4178 = vlaneseq
        %v4179 = vshrl.u32 %v4178, 7
        %v4180 = vsub.s32 %v4177, %v4179
        %v4181 = vrot.slane %v4165, %v4180
        %v4183 = vunpack.c.l.s4 1966171168
        %v4184 = vunpack.c.0.s8 %v4183
        %v4185 = vlaneseq
        %v4186 = vshrl.u32 %v4185, 7
        %v4187 = vsub.s32 %v4184, %v4186
        %v4188 = vrot.slane %v4172, %v4187
        %v4190 = vunpack.c.l.s4 1966171168
        %v4191 = vunpack.c.0.s8 %v4190
        %v4192 = vlaneseq
        %v4193 = vshrl.u32 %v4192, 7
        %v4194 = vsub.s32 %v4191, %v4193
        %v4195 = vrot.slane %v4173, %v4194
        %v4197 = vunpack.c.l.s4 1966171168
        %v4198 = vunpack.c.0.s8 %v4197
        %v4199 = vlaneseq
        %v4200 = vshrl.u32 %v4199, 7
        %v4201 = vsub.s32 %v4198, %v4200
        %v4202 = vrot.slane %v4174, %v4201
        %v4203 = vcombine.high %v4181, %v4181
        %v4204 = vcombine.high %v4188, %v4188
        %v4205 = vcombine.high %v4195, %v4195
        %v4206 = vcombine.high %v4202, %v4202
        %4215 = vst.msk [vmem:[%s205 + $0x5] sm:$0x1] %vm909, %v4181
        %4216 = vst.msk [vmem:[%s205 + $0xd] sm:$0x1] %vm909, %v4195
        %4217 = vst.msk [vmem:[%s205 + $0x15] sm:$0x1] %vm909, %v4203
        %4218 = vst.msk [vmem:[%s205 + $0x1d] sm:$0x1] %vm909, %v4205
        %4219 = vst.msk [vmem:[%s205 + $0x25] sm:$0x1] %vm909, %v4188
        %4220 = vst.msk [vmem:[%s205 + $0x2d] sm:$0x1] %vm909, %v4202
        %4221 = vst.msk [vmem:[%s205 + $0x35] sm:$0x1] %vm909, %v4204
        %4222 = vst.msk [vmem:[%s205 + $0x3d] sm:$0x1] %vm909, %v4206
        %v4223 = vld [vmem:[%s183 + $0x6] sm:$0x1]
        %v4224 = vld [vmem:[%s183 + $0xe] sm:$0x1]
        %v4225 = vld [vmem:[%s183 + $0x16] sm:$0x1]
        %v4226 = vld [vmem:[%s183 + $0x1e] sm:$0x1]
        %v4231 = vrot.slane %v4224, 7
        %v4232 = vsel %vm242, %v4231, %v4223
        %v4233 = vrot.slane %v4225, 6
        %v4234 = vsel %vm245, %v4233, %v4232
        %v4235 = vrot.slane %v4226, 5
        %v4236 = vsel %vm248, %v4235, %v4234
        %v4237 = vsel %vm250, %v4236, 0
        %4239 = vmatprep.subr.mxu0 0.0
        %4240 = vmatpush1.msra.mxu0 %v216
        %4241 = vmatprep.subr.mxu0 0.0
        %4242 = vmatpush1.msra.mxu0 %v217
        %4243 = vmatprep.subr.mxu0 0.0
        %4244 = vmatpush1.msra.mxu0 0.0
        %4245 = vmatprep.subr.mxu0 0.0
        %4246 = vmatpush1.msra.mxu0 0.0
        %4247 = vmatprep.subr.mxu0 0.0
        %4248 = vmatpush1.msra.mxu0 0.0
        %4249 = vmatprep.subr.mxu0 0.0
        %4250 = vmatpush1.msra.mxu0 0.0
        %4251 = vmatprep.subr.mxu0 0.0
        %4252 = vmatpush1.msra.mxu0 0.0
        %4253 = vmatprep.subr.mxu0 0.0
        %4254 = vmatpush1.msra.mxu0 0.0
        %4255 = vmatprep.subr.mxu0 0.0
        %4256 = vmatpush1.msra.mxu0 0.0
        %4257 = vmatprep.subr.mxu0 0.0
        %4258 = vmatpush1.msra.mxu0 0.0
        %4259 = vmatprep.subr.mxu0 0.0
        %4260 = vmatpush1.msra.mxu0 0.0
        %4261 = vmatprep.subr.mxu0 0.0
        %4262 = vmatpush1.msra.mxu0 0.0
        %4263 = vmatprep.subr.mxu0 0.0
        %4264 = vmatpush1.msra.mxu0 0.0
        %4265 = vmatprep.subr.mxu0 0.0
        %4266 = vmatpush1.msra.mxu0 0.0
        %4267 = vmatprep.subr.mxu0 0.0
        %4268 = vmatpush1.msra.mxu0 0.0
        %4269 = vmatprep.subr.mxu0 0.0
        %4270 = vmatpush1.msra.mxu0 0.0
        %4271 = vmatprep.subr.mxu0 0.0
        %4272 = vmatpush1.msra.mxu0 0.0
        %4273 = vmatprep.subr.mxu0 0.0
        %4274 = vmatpush1.msra.mxu0 0.0
        %4275 = vmatprep.subr.mxu0 0.0
        %4276 = vmatpush1.msra.mxu0 0.0
        %4277 = vmatprep.subr.mxu0 0.0
        %4278 = vmatpush1.msra.mxu0 0.0
        %4279 = vmatprep.subr.mxu0 0.0
        %4280 = vmatpush1.msra.mxu0 0.0
        %4281 = vmatprep.subr.mxu0 0.0
        %4282 = vmatpush1.msra.mxu0 0.0
        %4283 = vmatprep.subr.mxu0 0.0
        %4284 = vmatpush1.msra.mxu0 0.0
        %4285 = vmatprep.subr.mxu0 0.0
        %4286 = vmatpush1.msra.mxu0 0.0
        %4287 = vmatprep.subr.mxu0 0.0
        %4288 = vmatpush1.msra.mxu0 0.0
        %4289 = vmatprep.subr.mxu0 0.0
        %4290 = vmatpush1.msra.mxu0 0.0
        %4291 = vmatprep.subr.mxu0 0.0
        %4292 = vmatpush1.msra.mxu0 0.0
        %4293 = vmatprep.subr.mxu0 0.0
        %4294 = vmatpush1.msra.mxu0 0.0
        %4295 = vmatprep.subr.mxu0 0.0
        %4296 = vmatpush1.msra.mxu0 0.0
        %4297 = vmatprep.subr.mxu0 0.0
        %4298 = vmatpush1.msra.mxu0 0.0
        %4299 = vmatprep.subr.mxu0 0.0
        %4300 = vmatpush1.msra.mxu0 0.0
        %4301 = vmatprep.subr.mxu0 0.0
        %4302 = vmatpush1.msra.mxu0 0.0
        %4303 = vmatprep.mubr.f32.mxu0 0.0
        %4304 = vmatmul.mubr.f32.gmra.mrb[0].mxu0 %v4237
        %v4305 = vpop.f32.mrb[0].mxu0
        %v4306 = vadd.f32 0.0, %v4305
        %v4307 = vpop.f32.mrb[0].mxu0
        %4308 = vdwg.mxu0
        %4309 = vmatprep.subr.mxu0 0.0
        %4310 = vmatpush1.msra.mxu0 %v223
        %4311 = vmatprep.subr.mxu0 0.0
        %4312 = vmatpush1.msra.mxu0 %v224
        %4313 = vmatprep.subr.mxu0 0.0
        %4314 = vmatpush1.msra.mxu0 0.0
        %4315 = vmatprep.subr.mxu0 0.0
        %4316 = vmatpush1.msra.mxu0 0.0
        %4317 = vmatprep.subr.mxu0 0.0
        %4318 = vmatpush1.msra.mxu0 0.0
        %4319 = vmatprep.subr.mxu0 0.0
        %4320 = vmatpush1.msra.mxu0 0.0
        %4321 = vmatprep.subr.mxu0 0.0
        %4322 = vmatpush1.msra.mxu0 0.0
        %4323 = vmatprep.subr.mxu0 0.0
        %4324 = vmatpush1.msra.mxu0 0.0
        %4325 = vmatprep.subr.mxu0 0.0
        %4326 = vmatpush1.msra.mxu0 0.0
        %4327 = vmatprep.subr.mxu0 0.0
        %4328 = vmatpush1.msra.mxu0 0.0
        %4329 = vmatprep.subr.mxu0 0.0
        %4330 = vmatpush1.msra.mxu0 0.0
        %4331 = vmatprep.subr.mxu0 0.0
        %4332 = vmatpush1.msra.mxu0 0.0
        %4333 = vmatprep.subr.mxu0 0.0
        %4334 = vmatpush1.msra.mxu0 0.0
        %4335 = vmatprep.subr.mxu0 0.0
        %4336 = vmatpush1.msra.mxu0 0.0
        %4337 = vmatprep.subr.mxu0 0.0
        %4338 = vmatpush1.msra.mxu0 0.0
        %4339 = vmatprep.subr.mxu0 0.0
        %4340 = vmatpush1.msra.mxu0 0.0
        %4341 = vmatprep.subr.mxu0 0.0
        %4342 = vmatpush1.msra.mxu0 0.0
        %4343 = vmatprep.subr.mxu0 0.0
        %4344 = vmatpush1.msra.mxu0 0.0
        %4345 = vmatprep.subr.mxu0 0.0
        %4346 = vmatpush1.msra.mxu0 0.0
        %4347 = vmatprep.subr.mxu0 0.0
        %4348 = vmatpush1.msra.mxu0 0.0
        %4349 = vmatprep.subr.mxu0 0.0
        %4350 = vmatpush1.msra.mxu0 0.0
        %4351 = vmatprep.subr.mxu0 0.0
        %4352 = vmatpush1.msra.mxu0 0.0
        %4353 = vmatprep.subr.mxu0 0.0
        %4354 = vmatpush1.msra.mxu0 0.0
        %4355 = vmatprep.subr.mxu0 0.0
        %4356 = vmatpush1.msra.mxu0 0.0
        %4357 = vmatprep.subr.mxu0 0.0
        %4358 = vmatpush1.msra.mxu0 0.0
        %4359 = vmatprep.subr.mxu0 0.0
        %4360 = vmatpush1.msra.mxu0 0.0
        %4361 = vmatprep.subr.mxu0 0.0
        %4362 = vmatpush1.msra.mxu0 0.0
        %4363 = vmatprep.subr.mxu0 0.0
        %4364 = vmatpush1.msra.mxu0 0.0
        %4365 = vmatprep.subr.mxu0 0.0
        %4366 = vmatpush1.msra.mxu0 0.0
        %4367 = vmatprep.subr.mxu0 0.0
        %4368 = vmatpush1.msra.mxu0 0.0
        %4369 = vmatprep.subr.mxu0 0.0
        %4370 = vmatpush1.msra.mxu0 0.0
        %4371 = vmatprep.subr.mxu0 0.0
        %4372 = vmatpush1.msra.mxu0 0.0
        %4373 = vmatprep.mubr.f32.mxu0 0.0
        %4374 = vmatmul.mubr.f32.gmra.mrb[0].mxu0 %v4237
        %v4375 = vpop.f32.mrb[0].mxu0
        %v4376 = vadd.f32 0.0, %v4375
        %v4377 = vpop.f32.mrb[0].mxu0
        %4378 = vdwg.mxu0
        %4379 = vrot.lane.b32.xlu0 %v4236, 112
        %v4380 = vpop.permute.xlu0 %4379
        %v4381 = vsel %vm250, %v4380, 0
        %4383 = vmatprep.subr.mxu0 0.0
        %4384 = vmatpush1.msra.mxu0 %v216
        %4385 = vmatprep.subr.mxu0 0.0
        %4386 = vmatpush1.msra.mxu0 %v217
        %4387 = vmatprep.subr.mxu0 0.0
        %4388 = vmatpush1.msra.mxu0 0.0
        %4389 = vmatprep.subr.mxu0 0.0
        %4390 = vmatpush1.msra.mxu0 0.0
        %4391 = vmatprep.subr.mxu0 0.0
        %4392 = vmatpush1.msra.mxu0 0.0
        %4393 = vmatprep.subr.mxu0 0.0
        %4394 = vmatpush1.msra.mxu0 0.0
        %4395 = vmatprep.subr.mxu0 0.0
        %4396 = vmatpush1.msra.mxu0 0.0
        %4397 = vmatprep.subr.mxu0 0.0
        %4398 = vmatpush1.msra.mxu0 0.0
        %4399 = vmatprep.subr.mxu0 0.0
        %4400 = vmatpush1.msra.mxu0 0.0
        %4401 = vmatprep.subr.mxu0 0.0
        %4402 = vmatpush1.msra.mxu0 0.0
        %4403 = vmatprep.subr.mxu0 0.0
        %4404 = vmatpush1.msra.mxu0 0.0
        %4405 = vmatprep.subr.mxu0 0.0
        %4406 = vmatpush1.msra.mxu0 0.0
        %4407 = vmatprep.subr.mxu0 0.0
        %4408 = vmatpush1.msra.mxu0 0.0
        %4409 = vmatprep.subr.mxu0 0.0
        %4410 = vmatpush1.msra.mxu0 0.0
        %4411 = vmatprep.subr.mxu0 0.0
        %4412 = vmatpush1.msra.mxu0 0.0
        %4413 = vmatprep.subr.mxu0 0.0
        %4414 = vmatpush1.msra.mxu0 0.0
        %4415 = vmatprep.subr.mxu0 0.0
        %4416 = vmatpush1.msra.mxu0 0.0
        %4417 = vmatprep.subr.mxu0 0.0
        %4418 = vmatpush1.msra.mxu0 0.0
        %4419 = vmatprep.subr.mxu0 0.0
        %4420 = vmatpush1.msra.mxu0 0.0
        %4421 = vmatprep.subr.mxu0 0.0
        %4422 = vmatpush1.msra.mxu0 0.0
        %4423 = vmatprep.subr.mxu0 0.0
        %4424 = vmatpush1.msra.mxu0 0.0
        %4425 = vmatprep.subr.mxu0 0.0
        %4426 = vmatpush1.msra.mxu0 0.0
        %4427 = vmatprep.subr.mxu0 0.0
        %4428 = vmatpush1.msra.mxu0 0.0
        %4429 = vmatprep.subr.mxu0 0.0
        %4430 = vmatpush1.msra.mxu0 0.0
        %4431 = vmatprep.subr.mxu0 0.0
        %4432 = vmatpush1.msra.mxu0 0.0
        %4433 = vmatprep.subr.mxu0 0.0
        %4434 = vmatpush1.msra.mxu0 0.0
        %4435 = vmatprep.subr.mxu0 0.0
        %4436 = vmatpush1.msra.mxu0 0.0
        %4437 = vmatprep.subr.mxu0 0.0
        %4438 = vmatpush1.msra.mxu0 0.0
        %4439 = vmatprep.subr.mxu0 0.0
        %4440 = vmatpush1.msra.mxu0 0.0
        %4441 = vmatprep.subr.mxu0 0.0
        %4442 = vmatpush1.msra.mxu0 0.0
        %4443 = vmatprep.subr.mxu0 0.0
        %4444 = vmatpush1.msra.mxu0 0.0
        %4445 = vmatprep.subr.mxu0 0.0
        %4446 = vmatpush1.msra.mxu0 0.0
        %4447 = vmatprep.mubr.f32.mxu0 0.0
        %4448 = vmatmul.mubr.f32.gmra.mrb[0].mxu0 %v4381
        %v4449 = vpop.f32.mrb[0].mxu0
        %v4450 = vadd.f32 0.0, %v4449
        %v4451 = vpop.f32.mrb[0].mxu0
        %4452 = vdwg.mxu0
        %4453 = vmatprep.subr.mxu0 0.0
        %4454 = vmatpush1.msra.mxu0 %v223
        %4455 = vmatprep.subr.mxu0 0.0
        %4456 = vmatpush1.msra.mxu0 %v224
        %4457 = vmatprep.subr.mxu0 0.0
        %4458 = vmatpush1.msra.mxu0 0.0
        %4459 = vmatprep.subr.mxu0 0.0
        %4460 = vmatpush1.msra.mxu0 0.0
        %4461 = vmatprep.subr.mxu0 0.0
        %4462 = vmatpush1.msra.mxu0 0.0
        %4463 = vmatprep.subr.mxu0 0.0
        %4464 = vmatpush1.msra.mxu0 0.0
        %4465 = vmatprep.subr.mxu0 0.0
        %4466 = vmatpush1.msra.mxu0 0.0
        %4467 = vmatprep.subr.mxu0 0.0
        %4468 = vmatpush1.msra.mxu0 0.0
        %4469 = vmatprep.subr.mxu0 0.0
        %4470 = vmatpush1.msra.mxu0 0.0
        %4471 = vmatprep.subr.mxu0 0.0
        %4472 = vmatpush1.msra.mxu0 0.0
        %4473 = vmatprep.subr.mxu0 0.0
        %4474 = vmatpush1.msra.mxu0 0.0
        %4475 = vmatprep.subr.mxu0 0.0
        %4476 = vmatpush1.msra.mxu0 0.0
        %4477 = vmatprep.subr.mxu0 0.0
        %4478 = vmatpush1.msra.mxu0 0.0
        %4479 = vmatprep.subr.mxu0 0.0
        %4480 = vmatpush1.msra.mxu0 0.0
        %4481 = vmatprep.subr.mxu0 0.0
        %4482 = vmatpush1.msra.mxu0 0.0
        %4483 = vmatprep.subr.mxu0 0.0
        %4484 = vmatpush1.msra.mxu0 0.0
        %4485 = vmatprep.subr.mxu0 0.0
        %4486 = vmatpush1.msra.mxu0 0.0
        %4487 = vmatprep.subr.mxu0 0.0
        %4488 = vmatpush1.msra.mxu0 0.0
        %4489 = vmatprep.subr.mxu0 0.0
        %4490 = vmatpush1.msra.mxu0 0.0
        %4491 = vmatprep.subr.mxu0 0.0
        %4492 = vmatpush1.msra.mxu0 0.0
        %4493 = vmatprep.subr.mxu0 0.0
        %4494 = vmatpush1.msra.mxu0 0.0
        %4495 = vmatprep.subr.mxu0 0.0
        %4496 = vmatpush1.msra.mxu0 0.0
        %4497 = vmatprep.subr.mxu0 0.0
        %4498 = vmatpush1.msra.mxu0 0.0
        %4499 = vmatprep.subr.mxu0 0.0
        %4500 = vmatpush1.msra.mxu0 0.0
        %4501 = vmatprep.subr.mxu0 0.0
        %4502 = vmatpush1.msra.mxu0 0.0
        %4503 = vmatprep.subr.mxu0 0.0
        %4504 = vmatpush1.msra.mxu0 0.0
        %4505 = vmatprep.subr.mxu0 0.0
        %4506 = vmatpush1.msra.mxu0 0.0
        %4507 = vmatprep.subr.mxu0 0.0
        %4508 = vmatpush1.msra.mxu0 0.0
        %4509 = vmatprep.subr.mxu0 0.0
        %4510 = vmatpush1.msra.mxu0 0.0
        %4511 = vmatprep.subr.mxu0 0.0
        %4512 = vmatpush1.msra.mxu0 0.0
        %4513 = vmatprep.subr.mxu0 0.0
        %4514 = vmatpush1.msra.mxu0 0.0
        %4515 = vmatprep.subr.mxu0 0.0
        %4516 = vmatpush1.msra.mxu0 0.0
        %4517 = vmatprep.mubr.f32.mxu0 0.0
        %4518 = vmatmul.mubr.f32.gmra.mrb[0].mxu0 %v4381
        %v4519 = vpop.f32.mrb[0].mxu0
        %v4520 = vadd.f32 0.0, %v4519
        %v4521 = vpop.f32.mrb[0].mxu0
        %4522 = vdwg.mxu0
        %v4524 = vsel %vm541, %v4376, 0
        %4526 = vmatprep.subr.mxu0 0.0
        %4527 = vmatpush1.msra.mxu0 %v4524
        %4528 = vmatprep.subr.mxu0 0.0
        %4529 = vmatpush1.msra.mxu0 0.0
        %4530 = vmatprep.subr.mxu0 0.0
        %4531 = vmatpush1.msra.mxu0 0.0
        %4532 = vmatprep.subr.mxu0 0.0
        %4533 = vmatpush1.msra.mxu0 0.0
        %4534 = vmatprep.subr.mxu0 0.0
        %4535 = vmatpush1.msra.mxu0 0.0
        %4536 = vmatprep.subr.mxu0 0.0
        %4537 = vmatpush1.msra.mxu0 0.0
        %4538 = vmatprep.subr.mxu0 0.0
        %4539 = vmatpush1.msra.mxu0 0.0
        %4540 = vmatprep.subr.mxu0 0.0
        %4541 = vmatpush1.msra.mxu0 0.0
        %4542 = vmatprep.subr.mxu0 0.0
        %4543 = vmatpush1.msra.mxu0 0.0
        %4544 = vmatprep.subr.mxu0 0.0
        %4545 = vmatpush1.msra.mxu0 0.0
        %4546 = vmatprep.subr.mxu0 0.0
        %4547 = vmatpush1.msra.mxu0 0.0
        %4548 = vmatprep.subr.mxu0 0.0
        %4549 = vmatpush1.msra.mxu0 0.0
        %4550 = vmatprep.subr.mxu0 0.0
        %4551 = vmatpush1.msra.mxu0 0.0
        %4552 = vmatprep.subr.mxu0 0.0
        %4553 = vmatpush1.msra.mxu0 0.0
        %4554 = vmatprep.subr.mxu0 0.0
        %4555 = vmatpush1.msra.mxu0 0.0
        %4556 = vmatprep.subr.mxu0 0.0
        %4557 = vmatpush1.msra.mxu0 0.0
        %4558 = vmatprep.subr.mxu0 0.0
        %4559 = vmatpush1.msra.mxu0 0.0
        %4560 = vmatprep.subr.mxu0 0.0
        %4561 = vmatpush1.msra.mxu0 0.0
        %4562 = vmatprep.subr.mxu0 0.0
        %4563 = vmatpush1.msra.mxu0 0.0
        %4564 = vmatprep.subr.mxu0 0.0
        %4565 = vmatpush1.msra.mxu0 0.0
        %4566 = vmatprep.subr.mxu0 0.0
        %4567 = vmatpush1.msra.mxu0 0.0
        %4568 = vmatprep.subr.mxu0 0.0
        %4569 = vmatpush1.msra.mxu0 0.0
        %4570 = vmatprep.subr.mxu0 0.0
        %4571 = vmatpush1.msra.mxu0 0.0
        %4572 = vmatprep.subr.mxu0 0.0
        %4573 = vmatpush1.msra.mxu0 0.0
        %4574 = vmatprep.subr.mxu0 0.0
        %4575 = vmatpush1.msra.mxu0 0.0
        %4576 = vmatprep.subr.mxu0 0.0
        %4577 = vmatpush1.msra.mxu0 0.0
        %4578 = vmatprep.subr.mxu0 0.0
        %4579 = vmatpush1.msra.mxu0 0.0
        %4580 = vmatprep.subr.mxu0 0.0
        %4581 = vmatpush1.msra.mxu0 0.0
        %4582 = vmatprep.subr.mxu0 0.0
        %4583 = vmatpush1.msra.mxu0 0.0
        %4584 = vmatprep.subr.mxu0 0.0
        %4585 = vmatpush1.msra.mxu0 0.0
        %4586 = vmatprep.subr.mxu0 0.0
        %4587 = vmatpush1.msra.mxu0 0.0
        %4588 = vmatprep.subr.mxu0 0.0
        %4589 = vmatpush1.msra.mxu0 0.0
        %4590 = vmatprep.mubr.f32.mxu0 0.0
        %4591 = vmatmul.mubr.f32.gmra.mrb[0].mxu0 %v539
        %v4592 = vpop.f32.mrb[0].mxu0
        %v4593 = vadd.f32 0.0, %v4592
        %v4594 = vpop.f32.mrb[0].mxu0
        %4595 = vdwg.mxu0
        %v4597 = vsel %vm541, %v4306, 0
        %4599 = vmatprep.subr.mxu0 0.0
        %4600 = vmatpush1.msra.mxu0 %v4597
        %4601 = vmatprep.subr.mxu0 0.0
        %4602 = vmatpush1.msra.mxu0 0.0
        %4603 = vmatprep.subr.mxu0 0.0
        %4604 = vmatpush1.msra.mxu0 0.0
        %4605 = vmatprep.subr.mxu0 0.0
        %4606 = vmatpush1.msra.mxu0 0.0
        %4607 = vmatprep.subr.mxu0 0.0
        %4608 = vmatpush1.msra.mxu0 0.0
        %4609 = vmatprep.subr.mxu0 0.0
        %4610 = vmatpush1.msra.mxu0 0.0
        %4611 = vmatprep.subr.mxu0 0.0
        %4612 = vmatpush1.msra.mxu0 0.0
        %4613 = vmatprep.subr.mxu0 0.0
        %4614 = vmatpush1.msra.mxu0 0.0
        %4615 = vmatprep.subr.mxu0 0.0
        %4616 = vmatpush1.msra.mxu0 0.0
        %4617 = vmatprep.subr.mxu0 0.0
        %4618 = vmatpush1.msra.mxu0 0.0
        %4619 = vmatprep.subr.mxu0 0.0
        %4620 = vmatpush1.msra.mxu0 0.0
        %4621 = vmatprep.subr.mxu0 0.0
        %4622 = vmatpush1.msra.mxu0 0.0
        %4623 = vmatprep.subr.mxu0 0.0
        %4624 = vmatpush1.msra.mxu0 0.0
        %4625 = vmatprep.subr.mxu0 0.0
        %4626 = vmatpush1.msra.mxu0 0.0
        %4627 = vmatprep.subr.mxu0 0.0
        %4628 = vmatpush1.msra.mxu0 0.0
        %4629 = vmatprep.subr.mxu0 0.0
        %4630 = vmatpush1.msra.mxu0 0.0
        %4631 = vmatprep.subr.mxu0 0.0
        %4632 = vmatpush1.msra.mxu0 0.0
        %4633 = vmatprep.subr.mxu0 0.0
        %4634 = vmatpush1.msra.mxu0 0.0
        %4635 = vmatprep.subr.mxu0 0.0
        %4636 = vmatpush1.msra.mxu0 0.0
        %4637 = vmatprep.subr.mxu0 0.0
        %4638 = vmatpush1.msra.mxu0 0.0
        %4639 = vmatprep.subr.mxu0 0.0
        %4640 = vmatpush1.msra.mxu0 0.0
        %4641 = vmatprep.subr.mxu0 0.0
        %4642 = vmatpush1.msra.mxu0 0.0
        %4643 = vmatprep.subr.mxu0 0.0
        %4644 = vmatpush1.msra.mxu0 0.0
        %4645 = vmatprep.subr.mxu0 0.0
        %4646 = vmatpush1.msra.mxu0 0.0
        %4647 = vmatprep.subr.mxu0 0.0
        %4648 = vmatpush1.msra.mxu0 0.0
        %4649 = vmatprep.subr.mxu0 0.0
        %4650 = vmatpush1.msra.mxu0 0.0
        %4651 = vmatprep.subr.mxu0 0.0
        %4652 = vmatpush1.msra.mxu0 0.0
        %4653 = vmatprep.subr.mxu0 0.0
        %4654 = vmatpush1.msra.mxu0 0.0
        %4655 = vmatprep.subr.mxu0 0.0
        %4656 = vmatpush1.msra.mxu0 0.0
        %4657 = vmatprep.subr.mxu0 0.0
        %4658 = vmatpush1.msra.mxu0 0.0
        %4659 = vmatprep.subr.mxu0 0.0
        %4660 = vmatpush1.msra.mxu0 0.0
        %4661 = vmatprep.subr.mxu0 0.0
        %4662 = vmatpush1.msra.mxu0 0.0
        %4663 = vmatprep.mubr.f32.mxu0 0.0
        %4664 = vmatmul.mubr.f32.gmra.mrb[0].mxu0 %v616
        %v4665 = vpop.f32.mrb[0].mxu0
        %v4666 = vadd.f32 %v4593, %v4665
        %v4667 = vpop.f32.mrb[0].mxu0
        %4668 = vdwg.mxu0
        %v4670 = vsel %vm541, %v4450, 0
        %4672 = vmatprep.subr.mxu0 0.0
        %4673 = vmatpush1.msra.mxu0 %v4670
        %4674 = vmatprep.subr.mxu0 0.0
        %4675 = vmatpush1.msra.mxu0 0.0
        %4676 = vmatprep.subr.mxu0 0.0
        %4677 = vmatpush1.msra.mxu0 0.0
        %4678 = vmatprep.subr.mxu0 0.0
        %4679 = vmatpush1.msra.mxu0 0.0
        %4680 = vmatprep.subr.mxu0 0.0
        %4681 = vmatpush1.msra.mxu0 0.0
        %4682 = vmatprep.subr.mxu0 0.0
        %4683 = vmatpush1.msra.mxu0 0.0
        %4684 = vmatprep.subr.mxu0 0.0
        %4685 = vmatpush1.msra.mxu0 0.0
        %4686 = vmatprep.subr.mxu0 0.0
        %4687 = vmatpush1.msra.mxu0 0.0
        %4688 = vmatprep.subr.mxu0 0.0
        %4689 = vmatpush1.msra.mxu0 0.0
        %4690 = vmatprep.subr.mxu0 0.0
        %4691 = vmatpush1.msra.mxu0 0.0
        %4692 = vmatprep.subr.mxu0 0.0
        %4693 = vmatpush1.msra.mxu0 0.0
        %4694 = vmatprep.subr.mxu0 0.0
        %4695 = vmatpush1.msra.mxu0 0.0
        %4696 = vmatprep.subr.mxu0 0.0
        %4697 = vmatpush1.msra.mxu0 0.0
        %4698 = vmatprep.subr.mxu0 0.0
        %4699 = vmatpush1.msra.mxu0 0.0
        %4700 = vmatprep.subr.mxu0 0.0
        %4701 = vmatpush1.msra.mxu0 0.0
        %4702 = vmatprep.subr.mxu0 0.0
        %4703 = vmatpush1.msra.mxu0 0.0
        %4704 = vmatprep.subr.mxu0 0.0
        %4705 = vmatpush1.msra.mxu0 0.0
        %4706 = vmatprep.subr.mxu0 0.0
        %4707 = vmatpush1.msra.mxu0 0.0
        %4708 = vmatprep.subr.mxu0 0.0
        %4709 = vmatpush1.msra.mxu0 0.0
        %4710 = vmatprep.subr.mxu0 0.0
        %4711 = vmatpush1.msra.mxu0 0.0
        %4712 = vmatprep.subr.mxu0 0.0
        %4713 = vmatpush1.msra.mxu0 0.0
        %4714 = vmatprep.subr.mxu0 0.0
        %4715 = vmatpush1.msra.mxu0 0.0
        %4716 = vmatprep.subr.mxu0 0.0
        %4717 = vmatpush1.msra.mxu0 0.0
        %4718 = vmatprep.subr.mxu0 0.0
        %4719 = vmatpush1.msra.mxu0 0.0
        %4720 = vmatprep.subr.mxu0 0.0
        %4721 = vmatpush1.msra.mxu0 0.0
        %4722 = vmatprep.subr.mxu0 0.0
        %4723 = vmatpush1.msra.mxu0 0.0
        %4724 = vmatprep.subr.mxu0 0.0
        %4725 = vmatpush1.msra.mxu0 0.0
        %4726 = vmatprep.subr.mxu0 0.0
        %4727 = vmatpush1.msra.mxu0 0.0
        %4728 = vmatprep.subr.mxu0 0.0
        %4729 = vmatpush1.msra.mxu0 0.0
        %4730 = vmatprep.subr.mxu0 0.0
        %4731 = vmatpush1.msra.mxu0 0.0
        %4732 = vmatprep.subr.mxu0 0.0
        %4733 = vmatpush1.msra.mxu0 0.0
        %4734 = vmatprep.subr.mxu0 0.0
        %4735 = vmatpush1.msra.mxu0 0.0
        %4736 = vmatprep.mubr.f32.mxu0 0.0
        %4737 = vmatmul.mubr.f32.gmra.mrb[0].mxu0 %v692
        %v4738 = vpop.f32.mrb[0].mxu0
        %v4739 = vadd.f32 0.0, %v4738
        %v4740 = vpop.f32.mrb[0].mxu0
        %4741 = vdwg.mxu0
        %v4742 = vadd.f32 %v4666, %v4739
        %v4744 = vsel %vm541, %v4520, 0
        %4746 = vmatprep.subr.mxu0 0.0
        %4747 = vmatpush1.msra.mxu0 %v4744
        %4748 = vmatprep.subr.mxu0 0.0
        %4749 = vmatpush1.msra.mxu0 0.0
        %4750 = vmatprep.subr.mxu0 0.0
        %4751 = vmatpush1.msra.mxu0 0.0
        %4752 = vmatprep.subr.mxu0 0.0
        %4753 = vmatpush1.msra.mxu0 0.0
        %4754 = vmatprep.subr.mxu0 0.0
        %4755 = vmatpush1.msra.mxu0 0.0
        %4756 = vmatprep.subr.mxu0 0.0
        %4757 = vmatpush1.msra.mxu0 0.0
        %4758 = vmatprep.subr.mxu0 0.0
        %4759 = vmatpush1.msra.mxu0 0.0
        %4760 = vmatprep.subr.mxu0 0.0
        %4761 = vmatpush1.msra.mxu0 0.0
        %4762 = vmatprep.subr.mxu0 0.0
        %4763 = vmatpush1.msra.mxu0 0.0
        %4764 = vmatprep.subr.mxu0 0.0
        %4765 = vmatpush1.msra.mxu0 0.0
        %4766 = vmatprep.subr.mxu0 0.0
        %4767 = vmatpush1.msra.mxu0 0.0
        %4768 = vmatprep.subr.mxu0 0.0
        %4769 = vmatpush1.msra.mxu0 0.0
        %4770 = vmatprep.subr.mxu0 0.0
        %4771 = vmatpush1.msra.mxu0 0.0
        %4772 = vmatprep.subr.mxu0 0.0
        %4773 = vmatpush1.msra.mxu0 0.0
        %4774 = vmatprep.subr.mxu0 0.0
        %4775 = vmatpush1.msra.mxu0 0.0
        %4776 = vmatprep.subr.mxu0 0.0
        %4777 = vmatpush1.msra.mxu0 0.0
        %4778 = vmatprep.subr.mxu0 0.0
        %4779 = vmatpush1.msra.mxu0 0.0
        %4780 = vmatprep.subr.mxu0 0.0
        %4781 = vmatpush1.msra.mxu0 0.0
        %4782 = vmatprep.subr.mxu0 0.0
        %4783 = vmatpush1.msra.mxu0 0.0
        %4784 = vmatprep.subr.mxu0 0.0
        %4785 = vmatpush1.msra.mxu0 0.0
        %4786 = vmatprep.subr.mxu0 0.0
        %4787 = vmatpush1.msra.mxu0 0.0
        %4788 = vmatprep.subr.mxu0 0.0
        %4789 = vmatpush1.msra.mxu0 0.0
        %4790 = vmatprep.subr.mxu0 0.0
        %4791 = vmatpush1.msra.mxu0 0.0
        %4792 = vmatprep.subr.mxu0 0.0
        %4793 = vmatpush1.msra.mxu0 0.0
        %4794 = vmatprep.subr.mxu0 0.0
        %4795 = vmatpush1.msra.mxu0 0.0
        %4796 = vmatprep.subr.mxu0 0.0
        %4797 = vmatpush1.msra.mxu0 0.0
        %4798 = vmatprep.subr.mxu0 0.0
        %4799 = vmatpush1.msra.mxu0 0.0
        %4800 = vmatprep.subr.mxu0 0.0
        %4801 = vmatpush1.msra.mxu0 0.0
        %4802 = vmatprep.subr.mxu0 0.0
        %4803 = vmatpush1.msra.mxu0 0.0
        %4804 = vmatprep.subr.mxu0 0.0
        %4805 = vmatpush1.msra.mxu0 0.0
        %4806 = vmatprep.subr.mxu0 0.0
        %4807 = vmatpush1.msra.mxu0 0.0
        %4808 = vmatprep.subr.mxu0 0.0
        %4809 = vmatpush1.msra.mxu0 0.0
        %4810 = vmatprep.mubr.f32.mxu0 0.0
        %4811 = vmatmul.mubr.f32.gmra.mrb[0].mxu0 %v769
        %v4812 = vpop.f32.mrb[0].mxu0
        %v4813 = vadd.f32 0.0, %v4812
        %v4814 = vpop.f32.mrb[0].mxu0
        %4815 = vdwg.mxu0
        %v4816 = vadd.f32 %v4742, %v4813
        %v4817 = vadd.f32 %v4816, %v848
        %v4819 = vcombine.high %v4817, %v4817
        %v4821 = vunpack.c.l.s4 1966171168
        %v4822 = vunpack.c.0.s8 %v4821
        %v4823 = vlaneseq
        %v4824 = vshrl.u32 %v4823, 7
        %v4825 = vsub.s32 %v4822, %v4824
        %v4826 = vrot.slane %v4817, %v4825
        %v4828 = vunpack.c.l.s4 1966171168
        %v4829 = vunpack.c.0.s8 %v4828
        %v4830 = vlaneseq
        %v4831 = vshrl.u32 %v4830, 7
        %v4832 = vsub.s32 %v4829, %v4831
        %v4833 = vrot.slane %v4819, %v4832
        %v4834 = vcombine.high %v4826, %v4826
        %v4835 = vcombine.high %v4833, %v4833
        %v4837 = vunpack.c.l.s4 1966171168
        %v4838 = vunpack.c.0.s8 %v4837
        %v4839 = vlaneseq
        %v4840 = vshrl.u32 %v4839, 7
        %v4841 = vsub.s32 %v4838, %v4840
        %v4842 = vrot.slane %v4826, %v4841
        %v4844 = vunpack.c.l.s4 1966171168
        %v4845 = vunpack.c.0.s8 %v4844
        %v4846 = vlaneseq
        %v4847 = vshrl.u32 %v4846, 7
        %v4848 = vsub.s32 %v4845, %v4847
        %v4849 = vrot.slane %v4833, %v4848
        %v4851 = vunpack.c.l.s4 1966171168
        %v4852 = vunpack.c.0.s8 %v4851
        %v4853 = vlaneseq
        %v4854 = vshrl.u32 %v4853, 7
        %v4855 = vsub.s32 %v4852, %v4854
        %v4856 = vrot.slane %v4834, %v4855
        %v4858 = vunpack.c.l.s4 1966171168
        %v4859 = vunpack.c.0.s8 %v4858
        %v4860 = vlaneseq
        %v4861 = vshrl.u32 %v4860, 7
        %v4862 = vsub.s32 %v4859, %v4861
        %v4863 = vrot.slane %v4835, %v4862
        %v4864 = vcombine.high %v4842, %v4842
        %v4865 = vcombine.high %v4849, %v4849
        %v4866 = vcombine.high %v4856, %v4856
        %v4867 = vcombine.high %v4863, %v4863
        %4876 = vst.msk [vmem:[%s205 + $0x6] sm:$0x1] %vm909, %v4842
        %4877 = vst.msk [vmem:[%s205 + $0xe] sm:$0x1] %vm909, %v4856
        %4878 = vst.msk [vmem:[%s205 + $0x16] sm:$0x1] %vm909, %v4864
        %4879 = vst.msk [vmem:[%s205 + $0x1e] sm:$0x1] %vm909, %v4866
        %4880 = vst.msk [vmem:[%s205 + $0x26] sm:$0x1] %vm909, %v4849
        %4881 = vst.msk [vmem:[%s205 + $0x2e] sm:$0x1] %vm909, %v4863
        %4882 = vst.msk [vmem:[%s205 + $0x36] sm:$0x1] %vm909, %v4865
        %4883 = vst.msk [vmem:[%s205 + $0x3e] sm:$0x1] %vm909, %v4867
        %v4884 = vld [vmem:[%s183 + $0x7] sm:$0x1]
        %v4885 = vld [vmem:[%s183 + $0xf] sm:$0x1]
        %v4886 = vld [vmem:[%s183 + $0x17] sm:$0x1]
        %v4887 = vld [vmem:[%s183 + $0x1f] sm:$0x1]
        %v4892 = vrot.slane %v4885, 7
        %v4893 = vsel %vm242, %v4892, %v4884
        %v4894 = vrot.slane %v4886, 6
        %v4895 = vsel %vm245, %v4894, %v4893
        %v4896 = vrot.slane %v4887, 5
        %v4897 = vsel %vm248, %v4896, %v4895
        %v4898 = vsel %vm250, %v4897, 0
        %4900 = vmatprep.subr.mxu0 0.0
        %4901 = vmatpush1.msra.mxu0 %v216
        %4902 = vmatprep.subr.mxu0 0.0
        %4903 = vmatpush1.msra.mxu0 %v217
        %4904 = vmatprep.subr.mxu0 0.0
        %4905 = vmatpush1.msra.mxu0 0.0
        %4906 = vmatprep.subr.mxu0 0.0
        %4907 = vmatpush1.msra.mxu0 0.0
        %4908 = vmatprep.subr.mxu0 0.0
        %4909 = vmatpush1.msra.mxu0 0.0
        %4910 = vmatprep.subr.mxu0 0.0
        %4911 = vmatpush1.msra.mxu0 0.0
        %4912 = vmatprep.subr.mxu0 0.0
        %4913 = vmatpush1.msra.mxu0 0.0
        %4914 = vmatprep.subr.mxu0 0.0
        %4915 = vmatpush1.msra.mxu0 0.0
        %4916 = vmatprep.subr.mxu0 0.0
        %4917 = vmatpush1.msra.mxu0 0.0
        %4918 = vmatprep.subr.mxu0 0.0
        %4919 = vmatpush1.msra.mxu0 0.0
        %4920 = vmatprep.subr.mxu0 0.0
        %4921 = vmatpush1.msra.mxu0 0.0
        %4922 = vmatprep.subr.mxu0 0.0
        %4923 = vmatpush1.msra.mxu0 0.0
        %4924 = vmatprep.subr.mxu0 0.0
        %4925 = vmatpush1.msra.mxu0 0.0
        %4926 = vmatprep.subr.mxu0 0.0
        %4927 = vmatpush1.msra.mxu0 0.0
        %4928 = vmatprep.subr.mxu0 0.0
        %4929 = vmatpush1.msra.mxu0 0.0
        %4930 = vmatprep.subr.mxu0 0.0
        %4931 = vmatpush1.msra.mxu0 0.0
        %4932 = vmatprep.subr.mxu0 0.0
        %4933 = vmatpush1.msra.mxu0 0.0
        %4934 = vmatprep.subr.mxu0 0.0
        %4935 = vmatpush1.msra.mxu0 0.0
        %4936 = vmatprep.subr.mxu0 0.0
        %4937 = vmatpush1.msra.mxu0 0.0
        %4938 = vmatprep.subr.mxu0 0.0
        %4939 = vmatpush1.msra.mxu0 0.0
        %4940 = vmatprep.subr.mxu0 0.0
        %4941 = vmatpush1.msra.mxu0 0.0
        %4942 = vmatprep.subr.mxu0 0.0
        %4943 = vmatpush1.msra.mxu0 0.0
        %4944 = vmatprep.subr.mxu0 0.0
        %4945 = vmatpush1.msra.mxu0 0.0
        %4946 = vmatprep.subr.mxu0 0.0
        %4947 = vmatpush1.msra.mxu0 0.0
        %4948 = vmatprep.subr.mxu0 0.0
        %4949 = vmatpush1.msra.mxu0 0.0
        %4950 = vmatprep.subr.mxu0 0.0
        %4951 = vmatpush1.msra.mxu0 0.0
        %4952 = vmatprep.subr.mxu0 0.0
        %4953 = vmatpush1.msra.mxu0 0.0
        %4954 = vmatprep.subr.mxu0 0.0
        %4955 = vmatpush1.msra.mxu0 0.0
        %4956 = vmatprep.subr.mxu0 0.0
        %4957 = vmatpush1.msra.mxu0 0.0
        %4958 = vmatprep.subr.mxu0 0.0
        %4959 = vmatpush1.msra.mxu0 0.0
        %4960 = vmatprep.subr.mxu0 0.0
        %4961 = vmatpush1.msra.mxu0 0.0
        %4962 = vmatprep.subr.mxu0 0.0
        %4963 = vmatpush1.msra.mxu0 0.0
        %4964 = vmatprep.mubr.f32.mxu0 0.0
        %4965 = vmatmul.mubr.f32.gmra.mrb[0].mxu0 %v4898
        %v4966 = vpop.f32.mrb[0].mxu0
        %v4967 = vadd.f32 0.0, %v4966
        %v4968 = vpop.f32.mrb[0].mxu0
        %4969 = vdwg.mxu0
        %4970 = vmatprep.subr.mxu0 0.0
        %4971 = vmatpush1.msra.mxu0 %v223
        %4972 = vmatprep.subr.mxu0 0.0
        %4973 = vmatpush1.msra.mxu0 %v224
        %4974 = vmatprep.subr.mxu0 0.0
        %4975 = vmatpush1.msra.mxu0 0.0
        %4976 = vmatprep.subr.mxu0 0.0
        %4977 = vmatpush1.msra.mxu0 0.0
        %4978 = vmatprep.subr.mxu0 0.0
        %4979 = vmatpush1.msra.mxu0 0.0
        %4980 = vmatprep.subr.mxu0 0.0
        %4981 = vmatpush1.msra.mxu0 0.0
        %4982 = vmatprep.subr.mxu0 0.0
        %4983 = vmatpush1.msra.mxu0 0.0
        %4984 = vmatprep.subr.mxu0 0.0
        %4985 = vmatpush1.msra.mxu0 0.0
        %4986 = vmatprep.subr.mxu0 0.0
        %4987 = vmatpush1.msra.mxu0 0.0
        %4988 = vmatprep.subr.mxu0 0.0
        %4989 = vmatpush1.msra.mxu0 0.0
        %4990 = vmatprep.subr.mxu0 0.0
        %4991 = vmatpush1.msra.mxu0 0.0
        %4992 = vmatprep.subr.mxu0 0.0
        %4993 = vmatpush1.msra.mxu0 0.0
        %4994 = vmatprep.subr.mxu0 0.0
        %4995 = vmatpush1.msra.mxu0 0.0
        %4996 = vmatprep.subr.mxu0 0.0
        %4997 = vmatpush1.msra.mxu0 0.0
        %4998 = vmatprep.subr.mxu0 0.0
        %4999 = vmatpush1.msra.mxu0 0.0
        %5000 = vmatprep.subr.mxu0 0.0
        %5001 = vmatpush1.msra.mxu0 0.0
        %5002 = vmatprep.subr.mxu0 0.0
        %5003 = vmatpush1.msra.mxu0 0.0
        %5004 = vmatprep.subr.mxu0 0.0
        %5005 = vmatpush1.msra.mxu0 0.0
        %5006 = vmatprep.subr.mxu0 0.0
        %5007 = vmatpush1.msra.mxu0 0.0
        %5008 = vmatprep.subr.mxu0 0.0
        %5009 = vmatpush1.msra.mxu0 0.0
        %5010 = vmatprep.subr.mxu0 0.0
        %5011 = vmatpush1.msra.mxu0 0.0
        %5012 = vmatprep.subr.mxu0 0.0
        %5013 = vmatpush1.msra.mxu0 0.0
        %5014 = vmatprep.subr.mxu0 0.0
        %5015 = vmatpush1.msra.mxu0 0.0
        %5016 = vmatprep.subr.mxu0 0.0
        %5017 = vmatpush1.msra.mxu0 0.0
        %5018 = vmatprep.subr.mxu0 0.0
        %5019 = vmatpush1.msra.mxu0 0.0
        %5020 = vmatprep.subr.mxu0 0.0
        %5021 = vmatpush1.msra.mxu0 0.0
        %5022 = vmatprep.subr.mxu0 0.0
        %5023 = vmatpush1.msra.mxu0 0.0
        %5024 = vmatprep.subr.mxu0 0.0
        %5025 = vmatpush1.msra.mxu0 0.0
        %5026 = vmatprep.subr.mxu0 0.0
        %5027 = vmatpush1.msra.mxu0 0.0
        %5028 = vmatprep.subr.mxu0 0.0
        %5029 = vmatpush1.msra.mxu0 0.0
        %5030 = vmatprep.subr.mxu0 0.0
        %5031 = vmatpush1.msra.mxu0 0.0
        %5032 = vmatprep.subr.mxu0 0.0
        %5033 = vmatpush1.msra.mxu0 0.0
        %5034 = vmatprep.mubr.f32.mxu0 0.0
        %5035 = vmatmul.mubr.f32.gmra.mrb[0].mxu0 %v4898
        %v5036 = vpop.f32.mrb[0].mxu0
        %v5037 = vadd.f32 0.0, %v5036
        %v5038 = vpop.f32.mrb[0].mxu0
        %5039 = vdwg.mxu0
        %5040 = vrot.lane.b32.xlu0 %v4897, 112
        %v5041 = vpop.permute.xlu0 %5040
        %v5042 = vsel %vm250, %v5041, 0
        %5044 = vmatprep.subr.mxu0 0.0
        %5045 = vmatpush1.msra.mxu0 %v216
        %5046 = vmatprep.subr.mxu0 0.0
        %5047 = vmatpush1.msra.mxu0 %v217
        %5048 = vmatprep.subr.mxu0 0.0
        %5049 = vmatpush1.msra.mxu0 0.0
        %5050 = vmatprep.subr.mxu0 0.0
        %5051 = vmatpush1.msra.mxu0 0.0
        %5052 = vmatprep.subr.mxu0 0.0
        %5053 = vmatpush1.msra.mxu0 0.0
        %5054 = vmatprep.subr.mxu0 0.0
        %5055 = vmatpush1.msra.mxu0 0.0
        %5056 = vmatprep.subr.mxu0 0.0
        %5057 = vmatpush1.msra.mxu0 0.0
        %5058 = vmatprep.subr.mxu0 0.0
        %5059 = vmatpush1.msra.mxu0 0.0
        %5060 = vmatprep.subr.mxu0 0.0
        %5061 = vmatpush1.msra.mxu0 0.0
        %5062 = vmatprep.subr.mxu0 0.0
        %5063 = vmatpush1.msra.mxu0 0.0
        %5064 = vmatprep.subr.mxu0 0.0
        %5065 = vmatpush1.msra.mxu0 0.0
        %5066 = vmatprep.subr.mxu0 0.0
        %5067 = vmatpush1.msra.mxu0 0.0
        %5068 = vmatprep.subr.mxu0 0.0
        %5069 = vmatpush1.msra.mxu0 0.0
        %5070 = vmatprep.subr.mxu0 0.0
        %5071 = vmatpush1.msra.mxu0 0.0
        %5072 = vmatprep.subr.mxu0 0.0
        %5073 = vmatpush1.msra.mxu0 0.0
        %5074 = vmatprep.subr.mxu0 0.0
        %5075 = vmatpush1.msra.mxu0 0.0
        %5076 = vmatprep.subr.mxu0 0.0
        %5077 = vmatpush1.msra.mxu0 0.0
        %5078 = vmatprep.subr.mxu0 0.0
        %5079 = vmatpush1.msra.mxu0 0.0
        %5080 = vmatprep.subr.mxu0 0.0
        %5081 = vmatpush1.msra.mxu0 0.0
        %5082 = vmatprep.subr.mxu0 0.0
        %5083 = vmatpush1.msra.mxu0 0.0
        %5084 = vmatprep.subr.mxu0 0.0
        %5085 = vmatpush1.msra.mxu0 0.0
        %5086 = vmatprep.subr.mxu0 0.0
        %5087 = vmatpush1.msra.mxu0 0.0
        %5088 = vmatprep.subr.mxu0 0.0
        %5089 = vmatpush1.msra.mxu0 0.0
        %5090 = vmatprep.subr.mxu0 0.0
        %5091 = vmatpush1.msra.mxu0 0.0
        %5092 = vmatprep.subr.mxu0 0.0
        %5093 = vmatpush1.msra.mxu0 0.0
        %5094 = vmatprep.subr.mxu0 0.0
        %5095 = vmatpush1.msra.mxu0 0.0
        %5096 = vmatprep.subr.mxu0 0.0
        %5097 = vmatpush1.msra.mxu0 0.0
        %5098 = vmatprep.subr.mxu0 0.0
        %5099 = vmatpush1.msra.mxu0 0.0
        %5100 = vmatprep.subr.mxu0 0.0
        %5101 = vmatpush1.msra.mxu0 0.0
        %5102 = vmatprep.subr.mxu0 0.0
        %5103 = vmatpush1.msra.mxu0 0.0
        %5104 = vmatprep.subr.mxu0 0.0
        %5105 = vmatpush1.msra.mxu0 0.0
        %5106 = vmatprep.subr.mxu0 0.0
        %5107 = vmatpush1.msra.mxu0 0.0
        %5108 = vmatprep.mubr.f32.mxu0 0.0
        %5109 = vmatmul.mubr.f32.gmra.mrb[0].mxu0 %v5042
        %v5110 = vpop.f32.mrb[0].mxu0
        %v5111 = vadd.f32 0.0, %v5110
        %v5112 = vpop.f32.mrb[0].mxu0
        %5113 = vdwg.mxu0
        %5114 = vmatprep.subr.mxu0 0.0
        %5115 = vmatpush1.msra.mxu0 %v223
        %5116 = vmatprep.subr.mxu0 0.0
        %5117 = vmatpush1.msra.mxu0 %v224
        %5118 = vmatprep.subr.mxu0 0.0
        %5119 = vmatpush1.msra.mxu0 0.0
        %5120 = vmatprep.subr.mxu0 0.0
        %5121 = vmatpush1.msra.mxu0 0.0
        %5122 = vmatprep.subr.mxu0 0.0
        %5123 = vmatpush1.msra.mxu0 0.0
        %5124 = vmatprep.subr.mxu0 0.0
        %5125 = vmatpush1.msra.mxu0 0.0
        %5126 = vmatprep.subr.mxu0 0.0
        %5127 = vmatpush1.msra.mxu0 0.0
        %5128 = vmatprep.subr.mxu0 0.0
        %5129 = vmatpush1.msra.mxu0 0.0
        %5130 = vmatprep.subr.mxu0 0.0
        %5131 = vmatpush1.msra.mxu0 0.0
        %5132 = vmatprep.subr.mxu0 0.0
        %5133 = vmatpush1.msra.mxu0 0.0
        %5134 = vmatprep.subr.mxu0 0.0
        %5135 = vmatpush1.msra.mxu0 0.0
        %5136 = vmatprep.subr.mxu0 0.0
        %5137 = vmatpush1.msra.mxu0 0.0
        %5138 = vmatprep.subr.mxu0 0.0
        %5139 = vmatpush1.msra.mxu0 0.0
        %5140 = vmatprep.subr.mxu0 0.0
        %5141 = vmatpush1.msra.mxu0 0.0
        %5142 = vmatprep.subr.mxu0 0.0
        %5143 = vmatpush1.msra.mxu0 0.0
        %5144 = vmatprep.subr.mxu0 0.0
        %5145 = vmatpush1.msra.mxu0 0.0
        %5146 = vmatprep.subr.mxu0 0.0
        %5147 = vmatpush1.msra.mxu0 0.0
        %5148 = vmatprep.subr.mxu0 0.0
        %5149 = vmatpush1.msra.mxu0 0.0
        %5150 = vmatprep.subr.mxu0 0.0
        %5151 = vmatpush1.msra.mxu0 0.0
        %5152 = vmatprep.subr.mxu0 0.0
        %5153 = vmatpush1.msra.mxu0 0.0
        %5154 = vmatprep.subr.mxu0 0.0
        %5155 = vmatpush1.msra.mxu0 0.0
        %5156 = vmatprep.subr.mxu0 0.0
        %5157 = vmatpush1.msra.mxu0 0.0
        %5158 = vmatprep.subr.mxu0 0.0
        %5159 = vmatpush1.msra.mxu0 0.0
        %5160 = vmatprep.subr.mxu0 0.0
        %5161 = vmatpush1.msra.mxu0 0.0
        %5162 = vmatprep.subr.mxu0 0.0
        %5163 = vmatpush1.msra.mxu0 0.0
        %5164 = vmatprep.subr.mxu0 0.0
        %5165 = vmatpush1.msra.mxu0 0.0
        %5166 = vmatprep.subr.mxu0 0.0
        %5167 = vmatpush1.msra.mxu0 0.0
        %5168 = vmatprep.subr.mxu0 0.0
        %5169 = vmatpush1.msra.mxu0 0.0
        %5170 = vmatprep.subr.mxu0 0.0
        %5171 = vmatpush1.msra.mxu0 0.0
        %5172 = vmatprep.subr.mxu0 0.0
        %5173 = vmatpush1.msra.mxu0 0.0
        %5174 = vmatprep.subr.mxu0 0.0
        %5175 = vmatpush1.msra.mxu0 0.0
        %5176 = vmatprep.subr.mxu0 0.0
        %5177 = vmatpush1.msra.mxu0 0.0
        %5178 = vmatprep.mubr.f32.mxu0 0.0
        %5179 = vmatmul.mubr.f32.gmra.mrb[0].mxu0 %v5042
        %v5180 = vpop.f32.mrb[0].mxu0
        %v5181 = vadd.f32 0.0, %v5180
        %v5182 = vpop.f32.mrb[0].mxu0
        %5183 = vdwg.mxu0
        %v5185 = vsel %vm541, %v5037, 0
        %5187 = vmatprep.subr.mxu0 0.0
        %5188 = vmatpush1.msra.mxu0 %v5185
        %5189 = vmatprep.subr.mxu0 0.0
        %5190 = vmatpush1.msra.mxu0 0.0
        %5191 = vmatprep.subr.mxu0 0.0
        %5192 = vmatpush1.msra.mxu0 0.0
        %5193 = vmatprep.subr.mxu0 0.0
        %5194 = vmatpush1.msra.mxu0 0.0
        %5195 = vmatprep.subr.mxu0 0.0
        %5196 = vmatpush1.msra.mxu0 0.0
        %5197 = vmatprep.subr.mxu0 0.0
        %5198 = vmatpush1.msra.mxu0 0.0
        %5199 = vmatprep.subr.mxu0 0.0
        %5200 = vmatpush1.msra.mxu0 0.0
        %5201 = vmatprep.subr.mxu0 0.0
        %5202 = vmatpush1.msra.mxu0 0.0
        %5203 = vmatprep.subr.mxu0 0.0
        %5204 = vmatpush1.msra.mxu0 0.0
        %5205 = vmatprep.subr.mxu0 0.0
        %5206 = vmatpush1.msra.mxu0 0.0
        %5207 = vmatprep.subr.mxu0 0.0
        %5208 = vmatpush1.msra.mxu0 0.0
        %5209 = vmatprep.subr.mxu0 0.0
        %5210 = vmatpush1.msra.mxu0 0.0
        %5211 = vmatprep.subr.mxu0 0.0
        %5212 = vmatpush1.msra.mxu0 0.0
        %5213 = vmatprep.subr.mxu0 0.0
        %5214 = vmatpush1.msra.mxu0 0.0
        %5215 = vmatprep.subr.mxu0 0.0
        %5216 = vmatpush1.msra.mxu0 0.0
        %5217 = vmatprep.subr.mxu0 0.0
        %5218 = vmatpush1.msra.mxu0 0.0
        %5219 = vmatprep.subr.mxu0 0.0
        %5220 = vmatpush1.msra.mxu0 0.0
        %5221 = vmatprep.subr.mxu0 0.0
        %5222 = vmatpush1.msra.mxu0 0.0
        %5223 = vmatprep.subr.mxu0 0.0
        %5224 = vmatpush1.msra.mxu0 0.0
        %5225 = vmatprep.subr.mxu0 0.0
        %5226 = vmatpush1.msra.mxu0 0.0
        %5227 = vmatprep.subr.mxu0 0.0
        %5228 = vmatpush1.msra.mxu0 0.0
        %5229 = vmatprep.subr.mxu0 0.0
        %5230 = vmatpush1.msra.mxu0 0.0
        %5231 = vmatprep.subr.mxu0 0.0
        %5232 = vmatpush1.msra.mxu0 0.0
        %5233 = vmatprep.subr.mxu0 0.0
        %5234 = vmatpush1.msra.mxu0 0.0
        %5235 = vmatprep.subr.mxu0 0.0
        %5236 = vmatpush1.msra.mxu0 0.0
        %5237 = vmatprep.subr.mxu0 0.0
        %5238 = vmatpush1.msra.mxu0 0.0
        %5239 = vmatprep.subr.mxu0 0.0
        %5240 = vmatpush1.msra.mxu0 0.0
        %5241 = vmatprep.subr.mxu0 0.0
        %5242 = vmatpush1.msra.mxu0 0.0
        %5243 = vmatprep.subr.mxu0 0.0
        %5244 = vmatpush1.msra.mxu0 0.0
        %5245 = vmatprep.subr.mxu0 0.0
        %5246 = vmatpush1.msra.mxu0 0.0
        %5247 = vmatprep.subr.mxu0 0.0
        %5248 = vmatpush1.msra.mxu0 0.0
        %5249 = vmatprep.subr.mxu0 0.0
        %5250 = vmatpush1.msra.mxu0 0.0
        %5251 = vmatprep.mubr.f32.mxu0 0.0
        %5252 = vmatmul.mubr.f32.gmra.mrb[0].mxu0 %v539
        %v5253 = vpop.f32.mrb[0].mxu0
        %v5254 = vadd.f32 0.0, %v5253
        %v5255 = vpop.f32.mrb[0].mxu0
        %5256 = vdwg.mxu0
        %v5258 = vsel %vm541, %v4967, 0
        %5260 = vmatprep.subr.mxu0 0.0
        %5261 = vmatpush1.msra.mxu0 %v5258
        %5262 = vmatprep.subr.mxu0 0.0
        %5263 = vmatpush1.msra.mxu0 0.0
        %5264 = vmatprep.subr.mxu0 0.0
        %5265 = vmatpush1.msra.mxu0 0.0
        %5266 = vmatprep.subr.mxu0 0.0
        %5267 = vmatpush1.msra.mxu0 0.0
        %5268 = vmatprep.subr.mxu0 0.0
        %5269 = vmatpush1.msra.mxu0 0.0
        %5270 = vmatprep.subr.mxu0 0.0
        %5271 = vmatpush1.msra.mxu0 0.0
        %5272 = vmatprep.subr.mxu0 0.0
        %5273 = vmatpush1.msra.mxu0 0.0
        %5274 = vmatprep.subr.mxu0 0.0
        %5275 = vmatpush1.msra.mxu0 0.0
        %5276 = vmatprep.subr.mxu0 0.0
        %5277 = vmatpush1.msra.mxu0 0.0
        %5278 = vmatprep.subr.mxu0 0.0
        %5279 = vmatpush1.msra.mxu0 0.0
        %5280 = vmatprep.subr.mxu0 0.0
        %5281 = vmatpush1.msra.mxu0 0.0
        %5282 = vmatprep.subr.mxu0 0.0
        %5283 = vmatpush1.msra.mxu0 0.0
        %5284 = vmatprep.subr.mxu0 0.0
        %5285 = vmatpush1.msra.mxu0 0.0
        %5286 = vmatprep.subr.mxu0 0.0
        %5287 = vmatpush1.msra.mxu0 0.0
        %5288 = vmatprep.subr.mxu0 0.0
        %5289 = vmatpush1.msra.mxu0 0.0
        %5290 = vmatprep.subr.mxu0 0.0
        %5291 = vmatpush1.msra.mxu0 0.0
        %5292 = vmatprep.subr.mxu0 0.0
        %5293 = vmatpush1.msra.mxu0 0.0
        %5294 = vmatprep.subr.mxu0 0.0
        %5295 = vmatpush1.msra.mxu0 0.0
        %5296 = vmatprep.subr.mxu0 0.0
        %5297 = vmatpush1.msra.mxu0 0.0
        %5298 = vmatprep.subr.mxu0 0.0
        %5299 = vmatpush1.msra.mxu0 0.0
        %5300 = vmatprep.subr.mxu0 0.0
        %5301 = vmatpush1.msra.mxu0 0.0
        %5302 = vmatprep.subr.mxu0 0.0
        %5303 = vmatpush1.msra.mxu0 0.0
        %5304 = vmatprep.subr.mxu0 0.0
        %5305 = vmatpush1.msra.mxu0 0.0
        %5306 = vmatprep.subr.mxu0 0.0
        %5307 = vmatpush1.msra.mxu0 0.0
        %5308 = vmatprep.subr.mxu0 0.0
        %5309 = vmatpush1.msra.mxu0 0.0
        %5310 = vmatprep.subr.mxu0 0.0
        %5311 = vmatpush1.msra.mxu0 0.0
        %5312 = vmatprep.subr.mxu0 0.0
        %5313 = vmatpush1.msra.mxu0 0.0
        %5314 = vmatprep.subr.mxu0 0.0
        %5315 = vmatpush1.msra.mxu0 0.0
        %5316 = vmatprep.subr.mxu0 0.0
        %5317 = vmatpush1.msra.mxu0 0.0
        %5318 = vmatprep.subr.mxu0 0.0
        %5319 = vmatpush1.msra.mxu0 0.0
        %5320 = vmatprep.subr.mxu0 0.0
        %5321 = vmatpush1.msra.mxu0 0.0
        %5322 = vmatprep.subr.mxu0 0.0
        %5323 = vmatpush1.msra.mxu0 0.0
        %5324 = vmatprep.mubr.f32.mxu0 0.0
        %5325 = vmatmul.mubr.f32.gmra.mrb[0].mxu0 %v616
        %v5326 = vpop.f32.mrb[0].mxu0
        %v5327 = vadd.f32 %v5254, %v5326
        %v5328 = vpop.f32.mrb[0].mxu0
        %5329 = vdwg.mxu0
        %v5331 = vsel %vm541, %v5111, 0
        %5333 = vmatprep.subr.mxu0 0.0
        %5334 = vmatpush1.msra.mxu0 %v5331
        %5335 = vmatprep.subr.mxu0 0.0
        %5336 = vmatpush1.msra.mxu0 0.0
        %5337 = vmatprep.subr.mxu0 0.0
        %5338 = vmatpush1.msra.mxu0 0.0
        %5339 = vmatprep.subr.mxu0 0.0
        %5340 = vmatpush1.msra.mxu0 0.0
        %5341 = vmatprep.subr.mxu0 0.0
        %5342 = vmatpush1.msra.mxu0 0.0
        %5343 = vmatprep.subr.mxu0 0.0
        %5344 = vmatpush1.msra.mxu0 0.0
        %5345 = vmatprep.subr.mxu0 0.0
        %5346 = vmatpush1.msra.mxu0 0.0
        %5347 = vmatprep.subr.mxu0 0.0
        %5348 = vmatpush1.msra.mxu0 0.0
        %5349 = vmatprep.subr.mxu0 0.0
        %5350 = vmatpush1.msra.mxu0 0.0
        %5351 = vmatprep.subr.mxu0 0.0
        %5352 = vmatpush1.msra.mxu0 0.0
        %5353 = vmatprep.subr.mxu0 0.0
        %5354 = vmatpush1.msra.mxu0 0.0
        %5355 = vmatprep.subr.mxu0 0.0
        %5356 = vmatpush1.msra.mxu0 0.0
        %5357 = vmatprep.subr.mxu0 0.0
        %5358 = vmatpush1.msra.mxu0 0.0
        %5359 = vmatprep.subr.mxu0 0.0
        %5360 = vmatpush1.msra.mxu0 0.0
        %5361 = vmatprep.subr.mxu0 0.0
        %5362 = vmatpush1.msra.mxu0 0.0
        %5363 = vmatprep.subr.mxu0 0.0
        %5364 = vmatpush1.msra.mxu0 0.0
        %5365 = vmatprep.subr.mxu0 0.0
        %5366 = vmatpush1.msra.mxu0 0.0
        %5367 = vmatprep.subr.mxu0 0.0
        %5368 = vmatpush1.msra.mxu0 0.0
        %5369 = vmatprep.subr.mxu0 0.0
        %5370 = vmatpush1.msra.mxu0 0.0
        %5371 = vmatprep.subr.mxu0 0.0
        %5372 = vmatpush1.msra.mxu0 0.0
        %5373 = vmatprep.subr.mxu0 0.0
        %5374 = vmatpush1.msra.mxu0 0.0
        %5375 = vmatprep.subr.mxu0 0.0
        %5376 = vmatpush1.msra.mxu0 0.0
        %5377 = vmatprep.subr.mxu0 0.0
        %5378 = vmatpush1.msra.mxu0 0.0
        %5379 = vmatprep.subr.mxu0 0.0
        %5380 = vmatpush1.msra.mxu0 0.0
        %5381 = vmatprep.subr.mxu0 0.0
        %5382 = vmatpush1.msra.mxu0 0.0
        %5383 = vmatprep.subr.mxu0 0.0
        %5384 = vmatpush1.msra.mxu0 0.0
        %5385 = vmatprep.subr.mxu0 0.0
        %5386 = vmatpush1.msra.mxu0 0.0
        %5387 = vmatprep.subr.mxu0 0.0
        %5388 = vmatpush1.msra.mxu0 0.0
        %5389 = vmatprep.subr.mxu0 0.0
        %5390 = vmatpush1.msra.mxu0 0.0
        %5391 = vmatprep.subr.mxu0 0.0
        %5392 = vmatpush1.msra.mxu0 0.0
        %5393 = vmatprep.subr.mxu0 0.0
        %5394 = vmatpush1.msra.mxu0 0.0
        %5395 = vmatprep.subr.mxu0 0.0
        %5396 = vmatpush1.msra.mxu0 0.0
        %5397 = vmatprep.mubr.f32.mxu0 0.0
        %5398 = vmatmul.mubr.f32.gmra.mrb[0].mxu0 %v692
        %v5399 = vpop.f32.mrb[0].mxu0
        %v5400 = vadd.f32 0.0, %v5399
        %v5401 = vpop.f32.mrb[0].mxu0
        %5402 = vdwg.mxu0
        %v5403 = vadd.f32 %v5327, %v5400
        %v5405 = vsel %vm541, %v5181, 0
        %5407 = vmatprep.subr.mxu0 0.0
        %5408 = vmatpush1.msra.mxu0 %v5405
        %5409 = vmatprep.subr.mxu0 0.0
        %5410 = vmatpush1.msra.mxu0 0.0
        %5411 = vmatprep.subr.mxu0 0.0
        %5412 = vmatpush1.msra.mxu0 0.0
        %5413 = vmatprep.subr.mxu0 0.0
        %5414 = vmatpush1.msra.mxu0 0.0
        %5415 = vmatprep.subr.mxu0 0.0
        %5416 = vmatpush1.msra.mxu0 0.0
        %5417 = vmatprep.subr.mxu0 0.0
        %5418 = vmatpush1.msra.mxu0 0.0
        %5419 = vmatprep.subr.mxu0 0.0
        %5420 = vmatpush1.msra.mxu0 0.0
        %5421 = vmatprep.subr.mxu0 0.0
        %5422 = vmatpush1.msra.mxu0 0.0
        %5423 = vmatprep.subr.mxu0 0.0
        %5424 = vmatpush1.msra.mxu0 0.0
        %5425 = vmatprep.subr.mxu0 0.0
        %5426 = vmatpush1.msra.mxu0 0.0
        %5427 = vmatprep.subr.mxu0 0.0
        %5428 = vmatpush1.msra.mxu0 0.0
        %5429 = vmatprep.subr.mxu0 0.0
        %5430 = vmatpush1.msra.mxu0 0.0
        %5431 = vmatprep.subr.mxu0 0.0
        %5432 = vmatpush1.msra.mxu0 0.0
        %5433 = vmatprep.subr.mxu0 0.0
        %5434 = vmatpush1.msra.mxu0 0.0
        %5435 = vmatprep.subr.mxu0 0.0
        %5436 = vmatpush1.msra.mxu0 0.0
        %5437 = vmatprep.subr.mxu0 0.0
        %5438 = vmatpush1.msra.mxu0 0.0
        %5439 = vmatprep.subr.mxu0 0.0
        %5440 = vmatpush1.msra.mxu0 0.0
        %5441 = vmatprep.subr.mxu0 0.0
        %5442 = vmatpush1.msra.mxu0 0.0
        %5443 = vmatprep.subr.mxu0 0.0
        %5444 = vmatpush1.msra.mxu0 0.0
        %5445 = vmatprep.subr.mxu0 0.0
        %5446 = vmatpush1.msra.mxu0 0.0
        %5447 = vmatprep.subr.mxu0 0.0
        %5448 = vmatpush1.msra.mxu0 0.0
        %5449 = vmatprep.subr.mxu0 0.0
        %5450 = vmatpush1.msra.mxu0 0.0
        %5451 = vmatprep.subr.mxu0 0.0
        %5452 = vmatpush1.msra.mxu0 0.0
        %5453 = vmatprep.subr.mxu0 0.0
        %5454 = vmatpush1.msra.mxu0 0.0
        %5455 = vmatprep.subr.mxu0 0.0
        %5456 = vmatpush1.msra.mxu0 0.0
        %5457 = vmatprep.subr.mxu0 0.0
        %5458 = vmatpush1.msra.mxu0 0.0
        %5459 = vmatprep.subr.mxu0 0.0
        %5460 = vmatpush1.msra.mxu0 0.0
        %5461 = vmatprep.subr.mxu0 0.0
        %5462 = vmatpush1.msra.mxu0 0.0
        %5463 = vmatprep.subr.mxu0 0.0
        %5464 = vmatpush1.msra.mxu0 0.0
        %5465 = vmatprep.subr.mxu0 0.0
        %5466 = vmatpush1.msra.mxu0 0.0
        %5467 = vmatprep.subr.mxu0 0.0
        %5468 = vmatpush1.msra.mxu0 0.0
        %5469 = vmatprep.subr.mxu0 0.0
        %5470 = vmatpush1.msra.mxu0 0.0
        %5471 = vmatprep.mubr.f32.mxu0 0.0
        %5472 = vmatmul.mubr.f32.gmra.mrb[0].mxu0 %v769
        %v5473 = vpop.f32.mrb[0].mxu0
        %v5474 = vadd.f32 0.0, %v5473
        %v5475 = vpop.f32.mrb[0].mxu0
        %5476 = vdwg.mxu0
        %v5477 = vadd.f32 %v5403, %v5474
        %v5478 = vadd.f32 %v5477, %v848
        %v5480 = vcombine.high %v5478, %v5478
        %v5482 = vunpack.c.l.s4 1966171168
        %v5483 = vunpack.c.0.s8 %v5482
        %v5484 = vlaneseq
        %v5485 = vshrl.u32 %v5484, 7
        %v5486 = vsub.s32 %v5483, %v5485
        %v5487 = vrot.slane %v5478, %v5486
        %v5489 = vunpack.c.l.s4 1966171168
        %v5490 = vunpack.c.0.s8 %v5489
        %v5491 = vlaneseq
        %v5492 = vshrl.u32 %v5491, 7
        %v5493 = vsub.s32 %v5490, %v5492
        %v5494 = vrot.slane %v5480, %v5493
        %v5495 = vcombine.high %v5487, %v5487
        %v5496 = vcombine.high %v5494, %v5494
        %v5498 = vunpack.c.l.s4 1966171168
        %v5499 = vunpack.c.0.s8 %v5498
        %v5500 = vlaneseq
        %v5501 = vshrl.u32 %v5500, 7
        %v5502 = vsub.s32 %v5499, %v5501
        %v5503 = vrot.slane %v5487, %v5502
        %v5505 = vunpack.c.l.s4 1966171168
        %v5506 = vunpack.c.0.s8 %v5505
        %v5507 = vlaneseq
        %v5508 = vshrl.u32 %v5507, 7
        %v5509 = vsub.s32 %v5506, %v5508
        %v5510 = vrot.slane %v5494, %v5509
        %v5512 = vunpack.c.l.s4 1966171168
        %v5513 = vunpack.c.0.s8 %v5512
        %v5514 = vlaneseq
        %v5515 = vshrl.u32 %v5514, 7
        %v5516 = vsub.s32 %v5513, %v5515
        %v5517 = vrot.slane %v5495, %v5516
        %v5519 = vunpack.c.l.s4 1966171168
        %v5520 = vunpack.c.0.s8 %v5519
        %v5521 = vlaneseq
        %v5522 = vshrl.u32 %v5521, 7
        %v5523 = vsub.s32 %v5520, %v5522
        %v5524 = vrot.slane %v5496, %v5523
        %v5525 = vcombine.high %v5503, %v5503
        %v5526 = vcombine.high %v5510, %v5510
        %v5527 = vcombine.high %v5517, %v5517
        %v5528 = vcombine.high %v5524, %v5524
        %5537 = vst.msk [vmem:[%s205 + $0x7] sm:$0x1] %vm909, %v5503
        %5538 = vst.msk [vmem:[%s205 + $0xf] sm:$0x1] %vm909, %v5517
        %5539 = vst.msk [vmem:[%s205 + $0x17] sm:$0x1] %vm909, %v5525
        %5540 = vst.msk [vmem:[%s205 + $0x1f] sm:$0x1] %vm909, %v5527
        %5541 = vst.msk [vmem:[%s205 + $0x27] sm:$0x1] %vm909, %v5510
        %5542 = vst.msk [vmem:[%s205 + $0x2f] sm:$0x1] %vm909, %v5524
        %5543 = vst.msk [vmem:[%s205 + $0x37] sm:$0x1] %vm909, %v5526
        %5544 = vst.msk [vmem:[%s205 + $0x3f] sm:$0x1] %vm909, %v5528
        %s5545 = sand.u32 %s112, 1
        %s5546 = scalar_lea.sflag [#allocation4], %s5545
        %s5547 = sand.u32 %s112, 1
        %s5548 = smul.addr %s5547, 64
        %s5549 = scalar_lea.vmem [#allocation5], %s5548
        // Predicated region
        $region37: #{tpu_custom_call.1} parent=31 // pred_check
          %p5550 = pneg %p122
        $region38: #{tpu_custom_call.1} parent=31 // pred_check_branch
          %5552 = sbr.rel (%p5550) target = $region40
        $region39: #{tpu_custom_call.1} parent=31 // pred_region
          %s5554 = ssub.s32 1024, 1024
          %5555 = vsyncadd %s5546, %s5554
          %s5556 = smul.addr %s24, 8
          %s5557 = sadd.s32 %s25, %s5556
          %s5558 = smul.addr %s5557, 128
          %s5559 = scalar_lea.hbm %s3, %s5558
          %s5560 = sshll.u32 %s5549, 4
          %s5561 = int_to_ptr.vmem [resolvable:$true] %s5560
          %5566 = dma.vmem_to_hbm [thread:$0]  %s5561, 1024, %s5559, %s5546, 128, 128, 8
        $region40: #{tpu_custom_call.1} parent=31 // pred_fallthru
          _
      $region32: #{tpu_custom_call.1} parent=5 // pred_fallthru
        _
      %p5567 = scmp.le.s32.totalorder 2, %s15
      // Predicated region
      $region41: #{tpu_custom_call.1} parent=5 // pred_check
        %p5568 = pneg %p5567
      $region42: #{tpu_custom_call.1} parent=5 // pred_check_branch
        %5570 = sbr.rel (%p5568) target = $region44
      $region43: #{tpu_custom_call.1} parent=5 // pred_region
        %s5571 = ssub.s32 %s15, 2
        // Predicated region
        $region45: #{tpu_custom_call.1} parent=43 // pred_check
          %p5572 = pneg %p128
        $region46: #{tpu_custom_call.1} parent=43 // pred_check_branch
          %5574 = sbr.rel (%p5572) target = $region48
        $region47: #{tpu_custom_call.1} parent=43 // pred_region
          %s5575 = sand.u32 %s113, 1
          %s5576 = scalar_lea.sflag [#allocation4], %s5575
          %s5577 = sand.u32 %s113, 1
          %s5578 = smul.addr %s5577, 64
          %s5579 = scalar_lea.vmem [#allocation5], %s5578
          %5580 = dma.done %s5576, 1024
        $region48: #{tpu_custom_call.1} parent=43 // pred_fallthru
          _
      $region44: #{tpu_custom_call.1} parent=5 // pred_fallthru
        _
    $region6: #{tpu_custom_call.1} parent=1 // loop_footer
      %s19 = sadd.s32 1, %s15
    $region7: #{tpu_custom_call.1} parent=1 // loop_footer_branch
      %14 = sbr.rel target = $region3
    $region8: #{tpu_custom_call.1} parent=1 // loop_exit
      _
    %5581 = vsyncpa [#allocation3], 1
    %s5582 = scalar_lea.sflag [#allocation3], 1
    %5583 = vsyncpa %s5582, 1
    %5584 = vsyncpa [#allocation4], 1
    %s5585 = scalar_lea.sflag [#allocation4], 1
    %5586 = vsyncpa %s5585, 1

</llo_original>
